<compile_context>
chip_gen: v7x
topology: tpu7x:2x2x1
jax: 0.10.0
libtpu: 0.0.40
codegen_flags: <defaults>
</compile_context>

<pallas_src>
import numpy as np
import jax
import jax.numpy as jnp
from jax import lax
from jax.experimental import pallas as pl
from jax.experimental.pallas import tpu as pltpu

EPS = 1e-5          # nn.BatchNorm3d default eps
NEG_SLOPE = 0.01    # nn.LeakyReLU() default negative_slope


# ---------------- fused Pallas kernel ----------------

def _build_dsb_kernel(inv_n, offs1, offs2, s1, s2):
    """inv_n : 1 / (N*D*H*W)  (BatchNorm reduction count per channel)
       offs1 : 27 flat lane offsets of the dilated 3x3x3 taps (dilation 2)
       offs2 : 8  flat lane offsets of the 2x2x2 taps
       s1/s2 : stage-1 / stage-2 lane widths (multiples of 128)."""

    def kernel(xp_ref, min_ref, mout_ref, p8_ref,
               g1_ref, be1_ref, w1_ref, b1_ref,
               g2_ref, be2_ref, w2_ref, b2_ref,
               out_ref, rhs1_ref, rhs2_ref):
        rows = xp_ref.shape[0]                 # C*N (= 8): full sublane occupancy

        xp = xp_ref[...]                       # (C*N, s1) zero-padded input slab
        m_in = min_ref[...]                    # (1, s1)   1.0 at real input positions
        m_out = mout_ref[...]                  # (1, s2)   1.0 at valid conv1-output positions
        p8 = p8_ref[...]                       # (C*N, C*N) channel-pooling matrix

        # ---- step1: BatchNorm3d (batch stats) + LeakyReLU ----
        # per-channel stats = channel-pool matmul over the (c, n) rows + lane sum
        mean1 = jnp.sum(jnp.dot(p8, xp, preferred_element_type=jnp.float32),
                        axis=1, keepdims=True) * inv_n
        xc1 = (xp - mean1) * m_in                                   # centered, 0 in halo/pad
        var1 = jnp.sum(jnp.dot(p8, xc1 * xc1, preferred_element_type=jnp.float32),
                       axis=1, keepdims=True) * inv_n               # biased, two-pass
        a1 = xc1 * (g1_ref[...] * lax.rsqrt(var1 + EPS)) + be1_ref[...]
        a1 = jnp.where(a1 >= 0, a1, NEG_SLOPE * a1) * m_in          # zero-padded activation

        # ---- step1 conv (k=3, dilation=2): stacked-K im2col + ONE matmul ----
        for t, off in enumerate(offs1):
            sh = a1 if off == 0 else pltpu.roll(a1, s1 - off, axis=1)
            rhs1_ref[pl.ds(t * rows, rows), :] = sh[:, :s2]         # tile-aligned store
        x1 = jnp.dot(w1_ref[...], rhs1_ref[...],
                     preferred_element_type=jnp.float32) + b1_ref[...]   # (C*N, s2)

        # ---- step2: BatchNorm3d (masked batch stats) + LeakyReLU ----
        mean2 = jnp.sum(jnp.dot(p8, x1 * m_out, preferred_element_type=jnp.float32),
                        axis=1, keepdims=True) * inv_n
        xc2 = (x1 - mean2) * m_out
        var2 = jnp.sum(jnp.dot(p8, xc2 * xc2, preferred_element_type=jnp.float32),
                       axis=1, keepdims=True) * inv_n
        a2 = xc2 * (g2_ref[...] * lax.rsqrt(var2 + EPS)) + be2_ref[...]
        a2 = jnp.where(a2 >= 0, a2, NEG_SLOPE * a2)
        # valid conv2 windows only read valid x1 positions -> no re-mask needed

        # ---- step2 conv (k=2): stacked-K im2col + ONE matmul ----
        for t, off in enumerate(offs2):
            sh = a2 if off == 0 else pltpu.roll(a2, s2 - off, axis=1)
            rhs2_ref[pl.ds(t * rows, rows), :] = sh
        out_ref[...] = jnp.dot(w2_ref[...], rhs2_ref[...],
                               preferred_element_type=jnp.float32) + b2_ref[...]

    return kernel


# ---------------- DSB forward (wrapper: layout plumbing + weight packing) ----------------

def dsb_forward(x_ncdhw, params):
    """x: (N, C, D, H, W) float32 (PyTorch NCDHW). Returns NCDHW output."""
    N, Cin, D, H, W = x_ncdhw.shape
    w1 = params["w1"]                     # (3, 3, 3, Cin, Cout)
    w2 = params["w2"]                     # (2, 2, 2, Cout, Cout)
    Cout = w1.shape[-1]
    assert Cin == Cout, "DSB only type-checks for in_ch == out_ch"

    P = 2                                 # conv1 padding (= dilation)
    Dp, Hp, Wp = D + 2 * P, H + 2 * P, W + 2 * P
    S = Dp * Hp * Wp                      # per-volume padded flat spatial
    R = Cout * N                          # rows = (c, n), c-major (full 8 sublanes)
    n_valid = N * D * H * W               # BN reduction count per channel
    inv_n = 1.0 / float(n_valid)

    S1 = ((S + 127) // 128) * 128         # stage-1 lane width (zero tail pad), 1792
    S2 = D * Hp * Wp                      # stage-2 lane width (covers all conv2 reads), 1152

    offs1 = tuple(2 * kd * Hp * Wp + 2 * kh * Wp + 2 * kw
                  for kd in range(3) for kh in range(3) for kw in range(3))
    offs2 = tuple(kd * Hp * Wp + kh * Wp + kw
                  for kd in range(2) for kh in range(2) for kw in range(2))

    # ---- static geometry checks (review correctness items) ----
    last_out1 = (D - 1) * Hp * Wp + (H - 1) * Wp + (W - 1)
    last_out2 = (D - 2) * Hp * Wp + (H - 2) * Wp + (W - 2)
    assert last_out1 + max(offs1) < S, "conv1 tap escapes padded volume / roll wrap unsafe"
    assert last_out2 + max(offs2) < S2, "conv2 tap escapes stage-2 slab / roll wrap unsafe"
    assert S2 % 128 == 0 and S2 <= S

    # masks (numpy, static): real-input positions & valid conv1-output positions
    dp = np.arange(Dp); hp = np.arange(Hp); wp = np.arange(Wp)
    in_sp = (((dp >= P) & (dp < P + D))[:, None, None]
             & ((hp >= P) & (hp < P + H))[None, :, None]
             & ((wp >= P) & (wp < P + W))[None, None, :])
    out_sp = ((dp < D)[:, None, None] & (hp < H)[None, :, None]
              & (wp < W)[None, None, :])
    assert int(in_sp.sum()) == D * H * W
    assert int(out_sp.sum()) == D * H * W   # conv1 preserves extent -> BN2 count == BN1 count
    m_in = np.zeros((1, S1), np.float32)
    m_in[0, :S] = in_sp.reshape(-1).astype(np.float32)
    out_flat = out_sp.reshape(-1).astype(np.float32)
    assert float(out_flat[S2:].sum()) == 0.0
    m_out = out_flat[:S2].reshape(1, S2)

    # channel-pooling matrix: rows/cols are (c, n) c-major; 1 iff same channel
    p8 = np.kron(np.eye(Cout, dtype=np.float32), np.ones((N, N), np.float32))

    # input slab: (C*N, S1), rows = c*N + n, lanes = flat padded (d, h, w)
    xt = jnp.transpose(x_ncdhw.astype(jnp.float32), (1, 0, 2, 3, 4))   # (C, N, D, H, W)
    xpad = jnp.pad(xt, ((0, 0), (0, 0), (P, P), (P, P), (P, P)))
    xflat = jnp.pad(xpad.reshape(Cin, N, S), ((0, 0), (0, 0), (0, S1 - S)))
    xflat = xflat.reshape(R, S1)

    # packed conv weights: per tap (co, ci) block, block-diagonal over batch rows
    eye_n = jnp.eye(N, dtype=jnp.float32)
    w1_t = jnp.transpose(w1.reshape(27, Cin, Cout), (0, 2, 1)).astype(jnp.float32)
    w2_t = jnp.transpose(w2.reshape(8, Cout, Cout), (0, 2, 1)).astype(jnp.float32)
    w1_big = jnp.concatenate([jnp.kron(w1_t[t], eye_n) for t in range(27)], axis=1)  # (R, 27R)
    w2_big = jnp.concatenate([jnp.kron(w2_t[t], eye_n) for t in range(8)], axis=1)   # (R, 8R)

    def rows_col(v):            # per-channel param -> per-(c,n)-row column (R, 1)
        return jnp.repeat(v.astype(jnp.float32), N).reshape(R, 1)

    def full(shape):            # whole-array block (single grid step)
        return pl.BlockSpec(shape, lambda i: (0,) * len(shape))

    # VMEM footprint sanity check (plan for v7x's 64 MiB before scaling up)
    vmem_bytes = 4 * (27 * R * S2 + 8 * R * S2 + 2 * R * S1 + 2 * R * S2)
    vmem_limit = 32 * 1024 * 1024
    assert vmem_bytes < vmem_limit // 2, "working set too large for single-block kernel"

    kernel = _build_dsb_kernel(inv_n, offs1, offs2, S1, S2)
    g = pl.pallas_call(
        kernel,
        out_shape=jax.ShapeDtypeStruct((R, S2), jnp.float32),
        grid=(1,),
        in_specs=[full((R, S1)), full((1, S1)), full((1, S2)), full((R, R)),
                  full((R, 1)), full((R, 1)), full((R, 27 * R)), full((R, 1)),
                  full((R, 1)), full((R, 1)), full((R, 8 * R)), full((R, 1))],
        out_specs=full((R, S2)),
        scratch_shapes=[pltpu.VMEM((27 * R, S2), jnp.float32),   # stacked-K RHS, conv1
                        pltpu.VMEM((8 * R, S2), jnp.float32)],   # stacked-K RHS, conv2
        compiler_params=pltpu.CompilerParams(
            dimension_semantics=("arbitrary",),
            vmem_limit_bytes=vmem_limit),
    )(xflat, jnp.asarray(m_in), jnp.asarray(m_out), jnp.asarray(p8),
      rows_col(params["gamma1"]), rows_col(params["beta1"]), w1_big, rows_col(params["b1"]),
      rows_col(params["gamma2"]), rows_col(params["beta2"]), w2_big, rows_col(params["b2"]))

    # stride-2 selection of the valid conv2 outputs + back to NCDHW (layout only)
    y = g.reshape(Cout, N, D, Hp, Wp)[:, :, 0:D:2, 0:H:2, 0:W:2]
    return jnp.transpose(y, (1, 0, 2, 3, 4))


# ---------------- pure-JAX reference (NCDHW, mirrors the PyTorch module) ----------------

def reference_ncdhw(x, params):
    def bn(y, gamma, beta):
        mean = y.mean(axis=(0, 2, 3, 4), keepdims=True)
        var = y.var(axis=(0, 2, 3, 4), keepdims=True)   # biased, like BN training mode
        return (y - mean) / jnp.sqrt(var + EPS) * gamma.reshape(1, -1, 1, 1, 1) \
               + beta.reshape(1, -1, 1, 1, 1)

    def lrelu(y):
        return jnp.where(y >= 0, y, NEG_SLOPE * y)

    dn = ("NCDHW", "OIDHW", "NCDHW")
    w1 = jnp.transpose(params["w1"], (4, 3, 0, 1, 2))
    w2 = jnp.transpose(params["w2"], (4, 3, 0, 1, 2))
    a1 = lrelu(bn(x, params["gamma1"], params["beta1"]))
    x1 = lax.conv_general_dilated(a1, w1, window_strides=(1, 1, 1),
                                  padding=((2, 2), (2, 2), (2, 2)),
                                  rhs_dilation=(2, 2, 2), dimension_numbers=dn)
    x1 = x1 + params["b1"].reshape(1, -1, 1, 1, 1)
    a2 = lrelu(bn(x1, params["gamma2"], params["beta2"]))
    x2 = lax.conv_general_dilated(a2, w2, window_strides=(2, 2, 2),
                                  padding="VALID", dimension_numbers=dn)
    return x2 + params["b2"].reshape(1, -1, 1, 1, 1)


if __name__ == "__main__":
    key = jax.random.PRNGKey(0)
    ks = jax.random.split(key, 9)

    N, C, D, H, W = 2, 4, 8, 8, 8        # in_ch == out_ch == 4 (required by the module)
    x = jax.random.normal(ks[0], (N, C, D, H, W), jnp.float32)

    params = {
        "gamma1": jax.random.uniform(ks[1], (C,), jnp.float32, 0.5, 1.5),
        "beta1":  0.1 * jax.random.normal(ks[2], (C,), jnp.float32),
        "w1":     0.1 * jax.random.normal(ks[3], (3, 3, 3, C, C), jnp.float32),
        "b1":     0.1 * jax.random.normal(ks[4], (C,), jnp.float32),
        "gamma2": jax.random.uniform(ks[5], (C,), jnp.float32, 0.5, 1.5),
        "beta2":  0.1 * jax.random.normal(ks[6], (C,), jnp.float32),
        "w2":     0.1 * jax.random.normal(ks[7], (2, 2, 2, C, C), jnp.float32),
        "b2":     0.1 * jax.random.normal(ks[8], (C,), jnp.float32),
    }

    out = jax.jit(dsb_forward)(x, params)
    out = jax.block_until_ready(out)

    ref = reference_ncdhw(x, params)
    assert out.shape == ref.shape == (N, C, D // 2, H // 2, W // 2), (out.shape, ref.shape)
    max_err = float(jnp.max(jnp.abs(out - ref)))
    # tolerance covers TPU default (bf16-pass) matmul precision in both the Pallas
    # kernel and the XLA reference convolutions; real indexing bugs give O(0.1+) errors.
    assert max_err < 5e-3, f"mismatch vs reference: {max_err}"

    print("KERNEL_OK")
</pallas_src>

<mosaic_0001>
module attributes {stable_mosaic.version = 11 : i64} {
  func.func @kernel(%arg0: i32, %arg1: memref<8x1792xf32, #tpu.memory_space<vmem>>, %arg2: memref<1x1792xf32, #tpu.memory_space<vmem>>, %arg3: memref<1x1152xf32, #tpu.memory_space<vmem>>, %arg4: memref<8x8xf32, #tpu.memory_space<vmem>>, %arg5: memref<8x1xf32, #tpu.memory_space<vmem>>, %arg6: memref<8x1xf32, #tpu.memory_space<vmem>>, %arg7: memref<8x216xf32, #tpu.memory_space<vmem>>, %arg8: memref<8x1xf32, #tpu.memory_space<vmem>>, %arg9: memref<8x1xf32, #tpu.memory_space<vmem>>, %arg10: memref<8x1xf32, #tpu.memory_space<vmem>>, %arg11: memref<8x64xf32, #tpu.memory_space<vmem>>, %arg12: memref<8x1xf32, #tpu.memory_space<vmem>>, %arg13: memref<8x1152xf32, #tpu.memory_space<vmem>>, %arg14: memref<216x1152xf32, #tpu.memory_space<vmem>>, %arg15: memref<64x1152xf32, #tpu.memory_space<vmem>>) attributes {dimension_semantics = [#tpu.dimension_semantics<arbitrary>], iteration_bounds = array<i64: 1>, scalar_prefetch = 0 : i64, scratch_operands = 2 : i64, tpu.core_type = #tpu.core_type<tc>, window_params = [{pipeline_mode = #tpu.pipeline_mode<synchronous>, transform_indices = @transform_0, window_bounds = array<i64: 8, 1792>}, {pipeline_mode = #tpu.pipeline_mode<synchronous>, transform_indices = @transform_1, window_bounds = array<i64: 1, 1792>}, {pipeline_mode = #tpu.pipeline_mode<synchronous>, transform_indices = @transform_2, window_bounds = array<i64: 1, 1152>}, {pipeline_mode = #tpu.pipeline_mode<synchronous>, transform_indices = @transform_3, window_bounds = array<i64: 8, 8>}, {pipeline_mode = #tpu.pipeline_mode<synchronous>, transform_indices = @transform_4, window_bounds = array<i64: 8, 1>}, {pipeline_mode = #tpu.pipeline_mode<synchronous>, transform_indices = @transform_5, window_bounds = array<i64: 8, 1>}, {pipeline_mode = #tpu.pipeline_mode<synchronous>, transform_indices = @transform_6, window_bounds = array<i64: 8, 216>}, {pipeline_mode = #tpu.pipeline_mode<synchronous>, transform_indices = @transform_7, window_bounds = array<i64: 8, 1>}, {pipeline_mode = #tpu.pipeline_mode<synchronous>, transform_indices = @transform_8, window_bounds = array<i64: 8, 1>}, {pipeline_mode = #tpu.pipeline_mode<synchronous>, transform_indices = @transform_9, window_bounds = array<i64: 8, 1>}, {pipeline_mode = #tpu.pipeline_mode<synchronous>, transform_indices = @transform_10, window_bounds = array<i64: 8, 64>}, {pipeline_mode = #tpu.pipeline_mode<synchronous>, transform_indices = @transform_11, window_bounds = array<i64: 8, 1>}, {pipeline_mode = #tpu.pipeline_mode<synchronous>, transform_indices = @transform_12, window_bounds = array<i64: 8, 1152>}]} {
    %c0 = arith.constant 0 : index
    %c0_0 = arith.constant 0 : index
    %0 = vector.load %arg1[%c0, %c0_0] : memref<8x1792xf32, #tpu.memory_space<vmem>>, vector<8x1792xf32>
    %c0_1 = arith.constant 0 : index
    %c0_2 = arith.constant 0 : index
    %1 = vector.load %arg2[%c0_1, %c0_2] : memref<1x1792xf32, #tpu.memory_space<vmem>>, vector<1x1792xf32>
    %c0_3 = arith.constant 0 : index
    %c0_4 = arith.constant 0 : index
    %2 = vector.load %arg3[%c0_3, %c0_4] : memref<1x1152xf32, #tpu.memory_space<vmem>>, vector<1x1152xf32>
    %c0_5 = arith.constant 0 : index
    %c0_6 = arith.constant 0 : index
    %3 = vector.load %arg4[%c0_5, %c0_6] : memref<8x8xf32, #tpu.memory_space<vmem>>, vector<8x8xf32>
    %cst = arith.constant dense<0.000000e+00> : vector<8x1792xf32>
    %4 = tpu.matmul %3, %0, %cst {dimension_numbers = #tpu.dot_dimension_numbers<[1], [0], [0], [1], [0, 0, 1, 1], [], []>} : vector<8x8xf32>, vector<8x1792xf32>, vector<8x1792xf32> -> vector<8x1792xf32>
    %cst_7 = arith.constant dense<0.000000e+00> : vector<8xf32>
    %5 = vector.multi_reduction <add>, %4, %cst_7 [1] : vector<8x1792xf32> to vector<8xf32>
    %6 = vector.shape_cast %5 : vector<8xf32> to vector<8x1xf32>
    %cst_8 = arith.constant 9.765625E-4 : f32
    %7 = vector.broadcast %cst_8 : f32 to vector<8x1xf32>
    %8 = arith.mulf %6, %7 : vector<8x1xf32>
    %9 = vector.broadcast %8 : vector<8x1xf32> to vector<8x1792xf32>
    %10 = arith.subf %0, %9 : vector<8x1792xf32>
    %11 = vector.broadcast %1 : vector<1x1792xf32> to vector<8x1792xf32>
    %12 = arith.mulf %10, %11 : vector<8x1792xf32>
    %13 = arith.mulf %12, %12 : vector<8x1792xf32>
    %cst_9 = arith.constant dense<0.000000e+00> : vector<8x1792xf32>
    %14 = tpu.matmul %3, %13, %cst_9 {dimension_numbers = #tpu.dot_dimension_numbers<[1], [0], [0], [1], [0, 0, 1, 1], [], []>} : vector<8x8xf32>, vector<8x1792xf32>, vector<8x1792xf32> -> vector<8x1792xf32>
    %cst_10 = arith.constant dense<0.000000e+00> : vector<8xf32>
    %15 = vector.multi_reduction <add>, %14, %cst_10 [1] : vector<8x1792xf32> to vector<8xf32>
    %16 = vector.shape_cast %15 : vector<8xf32> to vector<8x1xf32>
    %cst_11 = arith.constant 9.765625E-4 : f32
    %17 = vector.broadcast %cst_11 : f32 to vector<8x1xf32>
    %18 = arith.mulf %16, %17 : vector<8x1xf32>
    %c0_12 = arith.constant 0 : index
    %c0_13 = arith.constant 0 : index
    %19 = vector.load %arg5[%c0_12, %c0_13] : memref<8x1xf32, #tpu.memory_space<vmem>>, vector<8x1xf32>
    %cst_14 = arith.constant 9.99999974E-6 : f32
    %20 = vector.broadcast %cst_14 : f32 to vector<8x1xf32>
    %21 = arith.addf %18, %20 : vector<8x1xf32>
    %22 = math.rsqrt %21 : vector<8x1xf32>
    %23 = arith.mulf %19, %22 : vector<8x1xf32>
    %24 = vector.broadcast %23 : vector<8x1xf32> to vector<8x1792xf32>
    %25 = arith.mulf %12, %24 : vector<8x1792xf32>
    %c0_15 = arith.constant 0 : index
    %c0_16 = arith.constant 0 : index
    %26 = vector.load %arg6[%c0_15, %c0_16] : memref<8x1xf32, #tpu.memory_space<vmem>>, vector<8x1xf32>
    %27 = vector.broadcast %26 : vector<8x1xf32> to vector<8x1792xf32>
    %28 = arith.addf %25, %27 : vector<8x1792xf32>
    %cst_17 = arith.constant 0.000000e+00 : f32
    %29 = vector.broadcast %cst_17 : f32 to vector<8x1792xf32>
    %30 = arith.cmpf oge, %28, %29 : vector<8x1792xf32>
    %cst_18 = arith.constant 0.00999999977 : f32
    %31 = vector.broadcast %cst_18 : f32 to vector<8x1792xf32>
    %32 = arith.mulf %31, %28 : vector<8x1792xf32>
    %33 = arith.select %30, %28, %32 : vector<8x1792xi1>, vector<8x1792xf32>
    %34 = vector.broadcast %1 : vector<1x1792xf32> to vector<8x1792xf32>
    %35 = arith.mulf %33, %34 : vector<8x1792xf32>
    %36 = vector.extract_strided_slice %35 {offsets = [0, 0], sizes = [8, 1152], strides = [1, 1]} : vector<8x1792xf32> to vector<8x1152xf32>
    %c0_19 = arith.constant 0 : index
    %c0_20 = arith.constant 0 : index
    %37 = vector.load %arg14[%c0_19, %c0_20] : memref<216x1152xf32, #tpu.memory_space<vmem>>, vector<8x1152xf32>
    tpu.vector_store %arg14[%c0_19, %c0_20], %36 {strides = array<i32>} : memref<216x1152xf32, #tpu.memory_space<vmem>>, vector<8x1152xf32>,
    %c1790_i32 = arith.constant 1790 : i32
    %38 = tpu.dynamic_rotate %35 by %c1790_i32 dim 1 : vector<8x1792xf32>, i32 -> vector<8x1792xf32>
    %39 = vector.extract_strided_slice %38 {offsets = [0, 0], sizes = [8, 1152], strides = [1, 1]} : vector<8x1792xf32> to vector<8x1152xf32>
    %c8 = arith.constant 8 : index
    %c0_21 = arith.constant 0 : index
    %40 = vector.load %arg14[%c8, %c0_21] : memref<216x1152xf32, #tpu.memory_space<vmem>>, vector<8x1152xf32>
    tpu.vector_store %arg14[%c8, %c0_21], %39 {strides = array<i32>} : memref<216x1152xf32, #tpu.memory_space<vmem>>, vector<8x1152xf32>,
    %c1788_i32 = arith.constant 1788 : i32
    %41 = tpu.dynamic_rotate %35 by %c1788_i32 dim 1 : vector<8x1792xf32>, i32 -> vector<8x1792xf32>
    %42 = vector.extract_strided_slice %41 {offsets = [0, 0], sizes = [8, 1152], strides = [1, 1]} : vector<8x1792xf32> to vector<8x1152xf32>
    %c16 = arith.constant 16 : index
    %c0_22 = arith.constant 0 : index
    %43 = vector.load %arg14[%c16, %c0_22] : memref<216x1152xf32, #tpu.memory_space<vmem>>, vector<8x1152xf32>
    tpu.vector_store %arg14[%c16, %c0_22], %42 {strides = array<i32>} : memref<216x1152xf32, #tpu.memory_space<vmem>>, vector<8x1152xf32>,
    %c1768_i32 = arith.constant 1768 : i32
    %44 = tpu.dynamic_rotate %35 by %c1768_i32 dim 1 : vector<8x1792xf32>, i32 -> vector<8x1792xf32>
    %45 = vector.extract_strided_slice %44 {offsets = [0, 0], sizes = [8, 1152], strides = [1, 1]} : vector<8x1792xf32> to vector<8x1152xf32>
    %c24 = arith.constant 24 : index
    %c0_23 = arith.constant 0 : index
    %46 = vector.load %arg14[%c24, %c0_23] : memref<216x1152xf32, #tpu.memory_space<vmem>>, vector<8x1152xf32>
    tpu.vector_store %arg14[%c24, %c0_23], %45 {strides = array<i32>} : memref<216x1152xf32, #tpu.memory_space<vmem>>, vector<8x1152xf32>,
    %c1766_i32 = arith.constant 1766 : i32
    %47 = tpu.dynamic_rotate %35 by %c1766_i32 dim 1 : vector<8x1792xf32>, i32 -> vector<8x1792xf32>
    %48 = vector.extract_strided_slice %47 {offsets = [0, 0], sizes = [8, 1152], strides = [1, 1]} : vector<8x1792xf32> to vector<8x1152xf32>
    %c32 = arith.constant 32 : index
    %c0_24 = arith.constant 0 : index
    %49 = vector.load %arg14[%c32, %c0_24] : memref<216x1152xf32, #tpu.memory_space<vmem>>, vector<8x1152xf32>
    tpu.vector_store %arg14[%c32, %c0_24], %48 {strides = array<i32>} : memref<216x1152xf32, #tpu.memory_space<vmem>>, vector<8x1152xf32>,
    %c1764_i32 = arith.constant 1764 : i32
    %50 = tpu.dynamic_rotate %35 by %c1764_i32 dim 1 : vector<8x1792xf32>, i32 -> vector<8x1792xf32>
    %51 = vector.extract_strided_slice %50 {offsets = [0, 0], sizes = [8, 1152], strides = [1, 1]} : vector<8x1792xf32> to vector<8x1152xf32>
    %c40 = arith.constant 40 : index
    %c0_25 = arith.constant 0 : index
    %52 = vector.load %arg14[%c40, %c0_25] : memref<216x1152xf32, #tpu.memory_space<vmem>>, vector<8x1152xf32>
    tpu.vector_store %arg14[%c40, %c0_25], %51 {strides = array<i32>} : memref<216x1152xf32, #tpu.memory_space<vmem>>, vector<8x1152xf32>,
    %c1744_i32 = arith.constant 1744 : i32
    %53 = tpu.dynamic_rotate %35 by %c1744_i32 dim 1 : vector<8x1792xf32>, i32 -> vector<8x1792xf32>
    %54 = vector.extract_strided_slice %53 {offsets = [0, 0], sizes = [8, 1152], strides = [1, 1]} : vector<8x1792xf32> to vector<8x1152xf32>
    %c48 = arith.constant 48 : index
    %c0_26 = arith.constant 0 : index
    %55 = vector.load %arg14[%c48, %c0_26] : memref<216x1152xf32, #tpu.memory_space<vmem>>, vector<8x1152xf32>
    tpu.vector_store %arg14[%c48, %c0_26], %54 {strides = array<i32>} : memref<216x1152xf32, #tpu.memory_space<vmem>>, vector<8x1152xf32>,
    %c1742_i32 = arith.constant 1742 : i32
    %56 = tpu.dynamic_rotate %35 by %c1742_i32 dim 1 : vector<8x1792xf32>, i32 -> vector<8x1792xf32>
    %57 = vector.extract_strided_slice %56 {offsets = [0, 0], sizes = [8, 1152], strides = [1, 1]} : vector<8x1792xf32> to vector<8x1152xf32>
    %c56 = arith.constant 56 : index
    %c0_27 = arith.constant 0 : index
    %58 = vector.load %arg14[%c56, %c0_27] : memref<216x1152xf32, #tpu.memory_space<vmem>>, vector<8x1152xf32>
    tpu.vector_store %arg14[%c56, %c0_27], %57 {strides = array<i32>} : memref<216x1152xf32, #tpu.memory_space<vmem>>, vector<8x1152xf32>,
    %c1740_i32 = arith.constant 1740 : i32
    %59 = tpu.dynamic_rotate %35 by %c1740_i32 dim 1 : vector<8x1792xf32>, i32 -> vector<8x1792xf32>
    %60 = vector.extract_strided_slice %59 {offsets = [0, 0], sizes = [8, 1152], strides = [1, 1]} : vector<8x1792xf32> to vector<8x1152xf32>
    %c64 = arith.constant 64 : index
    %c0_28 = arith.constant 0 : index
    %61 = vector.load %arg14[%c64, %c0_28] : memref<216x1152xf32, #tpu.memory_space<vmem>>, vector<8x1152xf32>
    tpu.vector_store %arg14[%c64, %c0_28], %60 {strides = array<i32>} : memref<216x1152xf32, #tpu.memory_space<vmem>>, vector<8x1152xf32>,
    %c1504_i32 = arith.constant 1504 : i32
    %62 = tpu.dynamic_rotate %35 by %c1504_i32 dim 1 : vector<8x1792xf32>, i32 -> vector<8x1792xf32>
    %63 = vector.extract_strided_slice %62 {offsets = [0, 0], sizes = [8, 1152], strides = [1, 1]} : vector<8x1792xf32> to vector<8x1152xf32>
    %c72 = arith.constant 72 : index
    %c0_29 = arith.constant 0 : index
    %64 = vector.load %arg14[%c72, %c0_29] : memref<216x1152xf32, #tpu.memory_space<vmem>>, vector<8x1152xf32>
    tpu.vector_store %arg14[%c72, %c0_29], %63 {strides = array<i32>} : memref<216x1152xf32, #tpu.memory_space<vmem>>, vector<8x1152xf32>,
    %c1502_i32 = arith.constant 1502 : i32
    %65 = tpu.dynamic_rotate %35 by %c1502_i32 dim 1 : vector<8x1792xf32>, i32 -> vector<8x1792xf32>
    %66 = vector.extract_strided_slice %65 {offsets = [0, 0], sizes = [8, 1152], strides = [1, 1]} : vector<8x1792xf32> to vector<8x1152xf32>
    %c80 = arith.constant 80 : index
    %c0_30 = arith.constant 0 : index
    %67 = vector.load %arg14[%c80, %c0_30] : memref<216x1152xf32, #tpu.memory_space<vmem>>, vector<8x1152xf32>
    tpu.vector_store %arg14[%c80, %c0_30], %66 {strides = array<i32>} : memref<216x1152xf32, #tpu.memory_space<vmem>>, vector<8x1152xf32>,
    %c1500_i32 = arith.constant 1500 : i32
    %68 = tpu.dynamic_rotate %35 by %c1500_i32 dim 1 : vector<8x1792xf32>, i32 -> vector<8x1792xf32>
    %69 = vector.extract_strided_slice %68 {offsets = [0, 0], sizes = [8, 1152], strides = [1, 1]} : vector<8x1792xf32> to vector<8x1152xf32>
    %c88 = arith.constant 88 : index
    %c0_31 = arith.constant 0 : index
    %70 = vector.load %arg14[%c88, %c0_31] : memref<216x1152xf32, #tpu.memory_space<vmem>>, vector<8x1152xf32>
    tpu.vector_store %arg14[%c88, %c0_31], %69 {strides = array<i32>} : memref<216x1152xf32, #tpu.memory_space<vmem>>, vector<8x1152xf32>,
    %c1480_i32 = arith.constant 1480 : i32
    %71 = tpu.dynamic_rotate %35 by %c1480_i32 dim 1 : vector<8x1792xf32>, i32 -> vector<8x1792xf32>
    %72 = vector.extract_strided_slice %71 {offsets = [0, 0], sizes = [8, 1152], strides = [1, 1]} : vector<8x1792xf32> to vector<8x1152xf32>
    %c96 = arith.constant 96 : index
    %c0_32 = arith.constant 0 : index
    %73 = vector.load %arg14[%c96, %c0_32] : memref<216x1152xf32, #tpu.memory_space<vmem>>, vector<8x1152xf32>
    tpu.vector_store %arg14[%c96, %c0_32], %72 {strides = array<i32>} : memref<216x1152xf32, #tpu.memory_space<vmem>>, vector<8x1152xf32>,
    %c1478_i32 = arith.constant 1478 : i32
    %74 = tpu.dynamic_rotate %35 by %c1478_i32 dim 1 : vector<8x1792xf32>, i32 -> vector<8x1792xf32>
    %75 = vector.extract_strided_slice %74 {offsets = [0, 0], sizes = [8, 1152], strides = [1, 1]} : vector<8x1792xf32> to vector<8x1152xf32>
    %c104 = arith.constant 104 : index
    %c0_33 = arith.constant 0 : index
    %76 = vector.load %arg14[%c104, %c0_33] : memref<216x1152xf32, #tpu.memory_space<vmem>>, vector<8x1152xf32>
    tpu.vector_store %arg14[%c104, %c0_33], %75 {strides = array<i32>} : memref<216x1152xf32, #tpu.memory_space<vmem>>, vector<8x1152xf32>,
    %c1476_i32 = arith.constant 1476 : i32
    %77 = tpu.dynamic_rotate %35 by %c1476_i32 dim 1 : vector<8x1792xf32>, i32 -> vector<8x1792xf32>
    %78 = vector.extract_strided_slice %77 {offsets = [0, 0], sizes = [8, 1152], strides = [1, 1]} : vector<8x1792xf32> to vector<8x1152xf32>
    %c112 = arith.constant 112 : index
    %c0_34 = arith.constant 0 : index
    %79 = vector.load %arg14[%c112, %c0_34] : memref<216x1152xf32, #tpu.memory_space<vmem>>, vector<8x1152xf32>
    tpu.vector_store %arg14[%c112, %c0_34], %78 {strides = array<i32>} : memref<216x1152xf32, #tpu.memory_space<vmem>>, vector<8x1152xf32>,
    %c1456_i32 = arith.constant 1456 : i32
    %80 = tpu.dynamic_rotate %35 by %c1456_i32 dim 1 : vector<8x1792xf32>, i32 -> vector<8x1792xf32>
    %81 = vector.extract_strided_slice %80 {offsets = [0, 0], sizes = [8, 1152], strides = [1, 1]} : vector<8x1792xf32> to vector<8x1152xf32>
    %c120 = arith.constant 120 : index
    %c0_35 = arith.constant 0 : index
    %82 = vector.load %arg14[%c120, %c0_35] : memref<216x1152xf32, #tpu.memory_space<vmem>>, vector<8x1152xf32>
    tpu.vector_store %arg14[%c120, %c0_35], %81 {strides = array<i32>} : memref<216x1152xf32, #tpu.memory_space<vmem>>, vector<8x1152xf32>,
    %c1454_i32 = arith.constant 1454 : i32
    %83 = tpu.dynamic_rotate %35 by %c1454_i32 dim 1 : vector<8x1792xf32>, i32 -> vector<8x1792xf32>
    %84 = vector.extract_strided_slice %83 {offsets = [0, 0], sizes = [8, 1152], strides = [1, 1]} : vector<8x1792xf32> to vector<8x1152xf32>
    %c128 = arith.constant 128 : index
    %c0_36 = arith.constant 0 : index
    %85 = vector.load %arg14[%c128, %c0_36] : memref<216x1152xf32, #tpu.memory_space<vmem>>, vector<8x1152xf32>
    tpu.vector_store %arg14[%c128, %c0_36], %84 {strides = array<i32>} : memref<216x1152xf32, #tpu.memory_space<vmem>>, vector<8x1152xf32>,
    %c1452_i32 = arith.constant 1452 : i32
    %86 = tpu.dynamic_rotate %35 by %c1452_i32 dim 1 : vector<8x1792xf32>, i32 -> vector<8x1792xf32>
    %87 = vector.extract_strided_slice %86 {offsets = [0, 0], sizes = [8, 1152], strides = [1, 1]} : vector<8x1792xf32> to vector<8x1152xf32>
    %c136 = arith.constant 136 : index
    %c0_37 = arith.constant 0 : index
    %88 = vector.load %arg14[%c136, %c0_37] : memref<216x1152xf32, #tpu.memory_space<vmem>>, vector<8x1152xf32>
    tpu.vector_store %arg14[%c136, %c0_37], %87 {strides = array<i32>} : memref<216x1152xf32, #tpu.memory_space<vmem>>, vector<8x1152xf32>,
    %c1216_i32 = arith.constant 1216 : i32
    %89 = tpu.dynamic_rotate %35 by %c1216_i32 dim 1 : vector<8x1792xf32>, i32 -> vector<8x1792xf32>
    %90 = vector.extract_strided_slice %89 {offsets = [0, 0], sizes = [8, 1152], strides = [1, 1]} : vector<8x1792xf32> to vector<8x1152xf32>
    %c144 = arith.constant 144 : index
    %c0_38 = arith.constant 0 : index
    %91 = vector.load %arg14[%c144, %c0_38] : memref<216x1152xf32, #tpu.memory_space<vmem>>, vector<8x1152xf32>
    tpu.vector_store %arg14[%c144, %c0_38], %90 {strides = array<i32>} : memref<216x1152xf32, #tpu.memory_space<vmem>>, vector<8x1152xf32>,
    %c1214_i32 = arith.constant 1214 : i32
    %92 = tpu.dynamic_rotate %35 by %c1214_i32 dim 1 : vector<8x1792xf32>, i32 -> vector<8x1792xf32>
    %93 = vector.extract_strided_slice %92 {offsets = [0, 0], sizes = [8, 1152], strides = [1, 1]} : vector<8x1792xf32> to vector<8x1152xf32>
    %c152 = arith.constant 152 : index
    %c0_39 = arith.constant 0 : index
    %94 = vector.load %arg14[%c152, %c0_39] : memref<216x1152xf32, #tpu.memory_space<vmem>>, vector<8x1152xf32>
    tpu.vector_store %arg14[%c152, %c0_39], %93 {strides = array<i32>} : memref<216x1152xf32, #tpu.memory_space<vmem>>, vector<8x1152xf32>,
    %c1212_i32 = arith.constant 1212 : i32
    %95 = tpu.dynamic_rotate %35 by %c1212_i32 dim 1 : vector<8x1792xf32>, i32 -> vector<8x1792xf32>
    %96 = vector.extract_strided_slice %95 {offsets = [0, 0], sizes = [8, 1152], strides = [1, 1]} : vector<8x1792xf32> to vector<8x1152xf32>
    %c160 = arith.constant 160 : index
    %c0_40 = arith.constant 0 : index
    %97 = vector.load %arg14[%c160, %c0_40] : memref<216x1152xf32, #tpu.memory_space<vmem>>, vector<8x1152xf32>
    tpu.vector_store %arg14[%c160, %c0_40], %96 {strides = array<i32>} : memref<216x1152xf32, #tpu.memory_space<vmem>>, vector<8x1152xf32>,
    %c1192_i32 = arith.constant 1192 : i32
    %98 = tpu.dynamic_rotate %35 by %c1192_i32 dim 1 : vector<8x1792xf32>, i32 -> vector<8x1792xf32>
    %99 = vector.extract_strided_slice %98 {offsets = [0, 0], sizes = [8, 1152], strides = [1, 1]} : vector<8x1792xf32> to vector<8x1152xf32>
    %c168 = arith.constant 168 : index
    %c0_41 = arith.constant 0 : index
    %100 = vector.load %arg14[%c168, %c0_41] : memref<216x1152xf32, #tpu.memory_space<vmem>>, vector<8x1152xf32>
    tpu.vector_store %arg14[%c168, %c0_41], %99 {strides = array<i32>} : memref<216x1152xf32, #tpu.memory_space<vmem>>, vector<8x1152xf32>,
    %c1190_i32 = arith.constant 1190 : i32
    %101 = tpu.dynamic_rotate %35 by %c1190_i32 dim 1 : vector<8x1792xf32>, i32 -> vector<8x1792xf32>
    %102 = vector.extract_strided_slice %101 {offsets = [0, 0], sizes = [8, 1152], strides = [1, 1]} : vector<8x1792xf32> to vector<8x1152xf32>
    %c176 = arith.constant 176 : index
    %c0_42 = arith.constant 0 : index
    %103 = vector.load %arg14[%c176, %c0_42] : memref<216x1152xf32, #tpu.memory_space<vmem>>, vector<8x1152xf32>
    tpu.vector_store %arg14[%c176, %c0_42], %102 {strides = array<i32>} : memref<216x1152xf32, #tpu.memory_space<vmem>>, vector<8x1152xf32>,
    %c1188_i32 = arith.constant 1188 : i32
    %104 = tpu.dynamic_rotate %35 by %c1188_i32 dim 1 : vector<8x1792xf32>, i32 -> vector<8x1792xf32>
    %105 = vector.extract_strided_slice %104 {offsets = [0, 0], sizes = [8, 1152], strides = [1, 1]} : vector<8x1792xf32> to vector<8x1152xf32>
    %c184 = arith.constant 184 : index
    %c0_43 = arith.constant 0 : index
    %106 = vector.load %arg14[%c184, %c0_43] : memref<216x1152xf32, #tpu.memory_space<vmem>>, vector<8x1152xf32>
    tpu.vector_store %arg14[%c184, %c0_43], %105 {strides = array<i32>} : memref<216x1152xf32, #tpu.memory_space<vmem>>, vector<8x1152xf32>,
    %c1168_i32 = arith.constant 1168 : i32
    %107 = tpu.dynamic_rotate %35 by %c1168_i32 dim 1 : vector<8x1792xf32>, i32 -> vector<8x1792xf32>
    %108 = vector.extract_strided_slice %107 {offsets = [0, 0], sizes = [8, 1152], strides = [1, 1]} : vector<8x1792xf32> to vector<8x1152xf32>
    %c192 = arith.constant 192 : index
    %c0_44 = arith.constant 0 : index
    %109 = vector.load %arg14[%c192, %c0_44] : memref<216x1152xf32, #tpu.memory_space<vmem>>, vector<8x1152xf32>
    tpu.vector_store %arg14[%c192, %c0_44], %108 {strides = array<i32>} : memref<216x1152xf32, #tpu.memory_space<vmem>>, vector<8x1152xf32>,
    %c1166_i32 = arith.constant 1166 : i32
    %110 = tpu.dynamic_rotate %35 by %c1166_i32 dim 1 : vector<8x1792xf32>, i32 -> vector<8x1792xf32>
    %111 = vector.extract_strided_slice %110 {offsets = [0, 0], sizes = [8, 1152], strides = [1, 1]} : vector<8x1792xf32> to vector<8x1152xf32>
    %c200 = arith.constant 200 : index
    %c0_45 = arith.constant 0 : index
    %112 = vector.load %arg14[%c200, %c0_45] : memref<216x1152xf32, #tpu.memory_space<vmem>>, vector<8x1152xf32>
    tpu.vector_store %arg14[%c200, %c0_45], %111 {strides = array<i32>} : memref<216x1152xf32, #tpu.memory_space<vmem>>, vector<8x1152xf32>,
    %c1164_i32 = arith.constant 1164 : i32
    %113 = tpu.dynamic_rotate %35 by %c1164_i32 dim 1 : vector<8x1792xf32>, i32 -> vector<8x1792xf32>
    %114 = vector.extract_strided_slice %113 {offsets = [0, 0], sizes = [8, 1152], strides = [1, 1]} : vector<8x1792xf32> to vector<8x1152xf32>
    %c208 = arith.constant 208 : index
    %c0_46 = arith.constant 0 : index
    %115 = vector.load %arg14[%c208, %c0_46] : memref<216x1152xf32, #tpu.memory_space<vmem>>, vector<8x1152xf32>
    tpu.vector_store %arg14[%c208, %c0_46], %114 {strides = array<i32>} : memref<216x1152xf32, #tpu.memory_space<vmem>>, vector<8x1152xf32>,
    %c0_47 = arith.constant 0 : index
    %c0_48 = arith.constant 0 : index
    %116 = vector.load %arg7[%c0_47, %c0_48] : memref<8x216xf32, #tpu.memory_space<vmem>>, vector<8x216xf32>
    %c0_49 = arith.constant 0 : index
    %c0_50 = arith.constant 0 : index
    %117 = vector.load %arg14[%c0_49, %c0_50] : memref<216x1152xf32, #tpu.memory_space<vmem>>, vector<216x1152xf32>
    %cst_51 = arith.constant dense<0.000000e+00> : vector<8x1152xf32>
    %118 = tpu.matmul %116, %117, %cst_51 {dimension_numbers = #tpu.dot_dimension_numbers<[1], [0], [0], [1], [0, 0, 1, 1], [], []>} : vector<8x216xf32>, vector<216x1152xf32>, vector<8x1152xf32> -> vector<8x1152xf32>
    %c0_52 = arith.constant 0 : index
    %c0_53 = arith.constant 0 : index
    %119 = vector.load %arg8[%c0_52, %c0_53] : memref<8x1xf32, #tpu.memory_space<vmem>>, vector<8x1xf32>
    %120 = vector.broadcast %119 : vector<8x1xf32> to vector<8x1152xf32>
    %121 = arith.addf %118, %120 : vector<8x1152xf32>
    %122 = vector.broadcast %2 : vector<1x1152xf32> to vector<8x1152xf32>
    %123 = arith.mulf %121, %122 : vector<8x1152xf32>
    %cst_54 = arith.constant dense<0.000000e+00> : vector<8x1152xf32>
    %124 = tpu.matmul %3, %123, %cst_54 {dimension_numbers = #tpu.dot_dimension_numbers<[1], [0], [0], [1], [0, 0, 1, 1], [], []>} : vector<8x8xf32>, vector<8x1152xf32>, vector<8x1152xf32> -> vector<8x1152xf32>
    %cst_55 = arith.constant dense<0.000000e+00> : vector<8xf32>
    %125 = vector.multi_reduction <add>, %124, %cst_55 [1] : vector<8x1152xf32> to vector<8xf32>
    %126 = vector.shape_cast %125 : vector<8xf32> to vector<8x1xf32>
    %cst_56 = arith.constant 9.765625E-4 : f32
    %127 = vector.broadcast %cst_56 : f32 to vector<8x1xf32>
    %128 = arith.mulf %126, %127 : vector<8x1xf32>
    %129 = vector.broadcast %128 : vector<8x1xf32> to vector<8x1152xf32>
    %130 = arith.subf %121, %129 : vector<8x1152xf32>
    %131 = vector.broadcast %2 : vector<1x1152xf32> to vector<8x1152xf32>
    %132 = arith.mulf %130, %131 : vector<8x1152xf32>
    %133 = arith.mulf %132, %132 : vector<8x1152xf32>
    %cst_57 = arith.constant dense<0.000000e+00> : vector<8x1152xf32>
    %134 = tpu.matmul %3, %133, %cst_57 {dimension_numbers = #tpu.dot_dimension_numbers<[1], [0], [0], [1], [0, 0, 1, 1], [], []>} : vector<8x8xf32>, vector<8x1152xf32>, vector<8x1152xf32> -> vector<8x1152xf32>
    %cst_58 = arith.constant dense<0.000000e+00> : vector<8xf32>
    %135 = vector.multi_reduction <add>, %134, %cst_58 [1] : vector<8x1152xf32> to vector<8xf32>
    %136 = vector.shape_cast %135 : vector<8xf32> to vector<8x1xf32>
    %cst_59 = arith.constant 9.765625E-4 : f32
    %137 = vector.broadcast %cst_59 : f32 to vector<8x1xf32>
    %138 = arith.mulf %136, %137 : vector<8x1xf32>
    %c0_60 = arith.constant 0 : index
    %c0_61 = arith.constant 0 : index
    %139 = vector.load %arg9[%c0_60, %c0_61] : memref<8x1xf32, #tpu.memory_space<vmem>>, vector<8x1xf32>
    %cst_62 = arith.constant 9.99999974E-6 : f32
    %140 = vector.broadcast %cst_62 : f32 to vector<8x1xf32>
    %141 = arith.addf %138, %140 : vector<8x1xf32>
    %142 = math.rsqrt %141 : vector<8x1xf32>
    %143 = arith.mulf %139, %142 : vector<8x1xf32>
    %144 = vector.broadcast %143 : vector<8x1xf32> to vector<8x1152xf32>
    %145 = arith.mulf %132, %144 : vector<8x1152xf32>
    %c0_63 = arith.constant 0 : index
    %c0_64 = arith.constant 0 : index
    %146 = vector.load %arg10[%c0_63, %c0_64] : memref<8x1xf32, #tpu.memory_space<vmem>>, vector<8x1xf32>
    %147 = vector.broadcast %146 : vector<8x1xf32> to vector<8x1152xf32>
    %148 = arith.addf %145, %147 : vector<8x1152xf32>
    %cst_65 = arith.constant 0.000000e+00 : f32
    %149 = vector.broadcast %cst_65 : f32 to vector<8x1152xf32>
    %150 = arith.cmpf oge, %148, %149 : vector<8x1152xf32>
    %cst_66 = arith.constant 0.00999999977 : f32
    %151 = vector.broadcast %cst_66 : f32 to vector<8x1152xf32>
    %152 = arith.mulf %151, %148 : vector<8x1152xf32>
    %153 = arith.select %150, %148, %152 : vector<8x1152xi1>, vector<8x1152xf32>
    %c0_67 = arith.constant 0 : index
    %c0_68 = arith.constant 0 : index
    %154 = vector.load %arg15[%c0_67, %c0_68] : memref<64x1152xf32, #tpu.memory_space<vmem>>, vector<8x1152xf32>
    tpu.vector_store %arg15[%c0_67, %c0_68], %153 {strides = array<i32>} : memref<64x1152xf32, #tpu.memory_space<vmem>>, vector<8x1152xf32>,
    %c1151_i32 = arith.constant 1151 : i32
    %155 = tpu.dynamic_rotate %153 by %c1151_i32 dim 1 : vector<8x1152xf32>, i32 -> vector<8x1152xf32>
    %c8_69 = arith.constant 8 : index
    %c0_70 = arith.constant 0 : index
    %156 = vector.load %arg15[%c8_69, %c0_70] : memref<64x1152xf32, #tpu.memory_space<vmem>>, vector<8x1152xf32>
    tpu.vector_store %arg15[%c8_69, %c0_70], %155 {strides = array<i32>} : memref<64x1152xf32, #tpu.memory_space<vmem>>, vector<8x1152xf32>,
    %c1140_i32 = arith.constant 1140 : i32
    %157 = tpu.dynamic_rotate %153 by %c1140_i32 dim 1 : vector<8x1152xf32>, i32 -> vector<8x1152xf32>
    %c16_71 = arith.constant 16 : index
    %c0_72 = arith.constant 0 : index
    %158 = vector.load %arg15[%c16_71, %c0_72] : memref<64x1152xf32, #tpu.memory_space<vmem>>, vector<8x1152xf32>
    tpu.vector_store %arg15[%c16_71, %c0_72], %157 {strides = array<i32>} : memref<64x1152xf32, #tpu.memory_space<vmem>>, vector<8x1152xf32>,
    %c1139_i32 = arith.constant 1139 : i32
    %159 = tpu.dynamic_rotate %153 by %c1139_i32 dim 1 : vector<8x1152xf32>, i32 -> vector<8x1152xf32>
    %c24_73 = arith.constant 24 : index
    %c0_74 = arith.constant 0 : index
    %160 = vector.load %arg15[%c24_73, %c0_74] : memref<64x1152xf32, #tpu.memory_space<vmem>>, vector<8x1152xf32>
    tpu.vector_store %arg15[%c24_73, %c0_74], %159 {strides = array<i32>} : memref<64x1152xf32, #tpu.memory_space<vmem>>, vector<8x1152xf32>,
    %c1008_i32 = arith.constant 1008 : i32
    %161 = tpu.dynamic_rotate %153 by %c1008_i32 dim 1 : vector<8x1152xf32>, i32 -> vector<8x1152xf32>
    %c32_75 = arith.constant 32 : index
    %c0_76 = arith.constant 0 : index
    %162 = vector.load %arg15[%c32_75, %c0_76] : memref<64x1152xf32, #tpu.memory_space<vmem>>, vector<8x1152xf32>
    tpu.vector_store %arg15[%c32_75, %c0_76], %161 {strides = array<i32>} : memref<64x1152xf32, #tpu.memory_space<vmem>>, vector<8x1152xf32>,
    %c1007_i32 = arith.constant 1007 : i32
    %163 = tpu.dynamic_rotate %153 by %c1007_i32 dim 1 : vector<8x1152xf32>, i32 -> vector<8x1152xf32>
    %c40_77 = arith.constant 40 : index
    %c0_78 = arith.constant 0 : index
    %164 = vector.load %arg15[%c40_77, %c0_78] : memref<64x1152xf32, #tpu.memory_space<vmem>>, vector<8x1152xf32>
    tpu.vector_store %arg15[%c40_77, %c0_78], %163 {strides = array<i32>} : memref<64x1152xf32, #tpu.memory_space<vmem>>, vector<8x1152xf32>,
    %c996_i32 = arith.constant 996 : i32
    %165 = tpu.dynamic_rotate %153 by %c996_i32 dim 1 : vector<8x1152xf32>, i32 -> vector<8x1152xf32>
    %c48_79 = arith.constant 48 : index
    %c0_80 = arith.constant 0 : index
    %166 = vector.load %arg15[%c48_79, %c0_80] : memref<64x1152xf32, #tpu.memory_space<vmem>>, vector<8x1152xf32>
    tpu.vector_store %arg15[%c48_79, %c0_80], %165 {strides = array<i32>} : memref<64x1152xf32, #tpu.memory_space<vmem>>, vector<8x1152xf32>,
    %c995_i32 = arith.constant 995 : i32
    %167 = tpu.dynamic_rotate %153 by %c995_i32 dim 1 : vector<8x1152xf32>, i32 -> vector<8x1152xf32>
    %c56_81 = arith.constant 56 : index
    %c0_82 = arith.constant 0 : index
    %168 = vector.load %arg15[%c56_81, %c0_82] : memref<64x1152xf32, #tpu.memory_space<vmem>>, vector<8x1152xf32>
    tpu.vector_store %arg15[%c56_81, %c0_82], %167 {strides = array<i32>} : memref<64x1152xf32, #tpu.memory_space<vmem>>, vector<8x1152xf32>,
    %c0_83 = arith.constant 0 : index
    %c0_84 = arith.constant 0 : index
    %169 = vector.load %arg11[%c0_83, %c0_84] : memref<8x64xf32, #tpu.memory_space<vmem>>, vector<8x64xf32>
    %c0_85 = arith.constant 0 : index
    %c0_86 = arith.constant 0 : index
    %170 = vector.load %arg15[%c0_85, %c0_86] : memref<64x1152xf32, #tpu.memory_space<vmem>>, vector<64x1152xf32>
    %cst_87 = arith.constant dense<0.000000e+00> : vector<8x1152xf32>
    %171 = tpu.matmul %169, %170, %cst_87 {dimension_numbers = #tpu.dot_dimension_numbers<[1], [0], [0], [1], [0, 0, 1, 1], [], []>} : vector<8x64xf32>, vector<64x1152xf32>, vector<8x1152xf32> -> vector<8x1152xf32>
    %c0_88 = arith.constant 0 : index
    %c0_89 = arith.constant 0 : index
    %172 = vector.load %arg12[%c0_88, %c0_89] : memref<8x1xf32, #tpu.memory_space<vmem>>, vector<8x1xf32>
    %173 = vector.broadcast %172 : vector<8x1xf32> to vector<8x1152xf32>
    %174 = arith.addf %171, %173 : vector<8x1152xf32>
    %c0_90 = arith.constant 0 : index
    %c0_91 = arith.constant 0 : index
    %175 = vector.load %arg13[%c0_90, %c0_91] : memref<8x1152xf32, #tpu.memory_space<vmem>>, vector<8x1152xf32>
    tpu.vector_store %arg13[%c0_90, %c0_91], %174 {strides = array<i32>} : memref<8x1152xf32, #tpu.memory_space<vmem>>, vector<8x1152xf32>,
    return
  }
  func.func @transform_0(%arg0: i32) -> (i32, i32) {
    %c0_i32 = arith.constant 0 : i32
    %c0_i32_0 = arith.constant 0 : i32
    %c0_i32_1 = arith.constant 0 : i32
    return %c0_i32, %c0_i32_0 : i32, i32
  }
  func.func @transform_1(%arg0: i32) -> (i32, i32) {
    %c0_i32 = arith.constant 0 : i32
    %c0_i32_0 = arith.constant 0 : i32
    %c0_i32_1 = arith.constant 0 : i32
    return %c0_i32, %c0_i32_0 : i32, i32
  }
  func.func @transform_2(%arg0: i32) -> (i32, i32) {
    %c0_i32 = arith.constant 0 : i32
    %c0_i32_0 = arith.constant 0 : i32
    %c0_i32_1 = arith.constant 0 : i32
    return %c0_i32, %c0_i32_0 : i32, i32
  }
  func.func @transform_3(%arg0: i32) -> (i32, i32) {
    %c0_i32 = arith.constant 0 : i32
    %c0_i32_0 = arith.constant 0 : i32
    %c0_i32_1 = arith.constant 0 : i32
    return %c0_i32, %c0_i32_0 : i32, i32
  }
  func.func @transform_4(%arg0: i32) -> (i32, i32) {
    %c0_i32 = arith.constant 0 : i32
    %c0_i32_0 = arith.constant 0 : i32
    %c0_i32_1 = arith.constant 0 : i32
    return %c0_i32, %c0_i32_0 : i32, i32
  }
  func.func @transform_5(%arg0: i32) -> (i32, i32) {
    %c0_i32 = arith.constant 0 : i32
    %c0_i32_0 = arith.constant 0 : i32
    %c0_i32_1 = arith.constant 0 : i32
    return %c0_i32, %c0_i32_0 : i32, i32
  }
  func.func @transform_6(%arg0: i32) -> (i32, i32) {
    %c0_i32 = arith.constant 0 : i32
    %c0_i32_0 = arith.constant 0 : i32
    %c0_i32_1 = arith.constant 0 : i32
    return %c0_i32, %c0_i32_0 : i32, i32
  }
  func.func @transform_7(%arg0: i32) -> (i32, i32) {
    %c0_i32 = arith.constant 0 : i32
    %c0_i32_0 = arith.constant 0 : i32
    %c0_i32_1 = arith.constant 0 : i32
    return %c0_i32, %c0_i32_0 : i32, i32
  }
  func.func @transform_8(%arg0: i32) -> (i32, i32) {
    %c0_i32 = arith.constant 0 : i32
    %c0_i32_0 = arith.constant 0 : i32
    %c0_i32_1 = arith.constant 0 : i32
    return %c0_i32, %c0_i32_0 : i32, i32
  }
  func.func @transform_9(%arg0: i32) -> (i32, i32) {
    %c0_i32 = arith.constant 0 : i32
    %c0_i32_0 = arith.constant 0 : i32
    %c0_i32_1 = arith.constant 0 : i32
    return %c0_i32, %c0_i32_0 : i32, i32
  }
  func.func @transform_10(%arg0: i32) -> (i32, i32) {
    %c0_i32 = arith.constant 0 : i32
    %c0_i32_0 = arith.constant 0 : i32
    %c0_i32_1 = arith.constant 0 : i32
    return %c0_i32, %c0_i32_0 : i32, i32
  }
  func.func @transform_11(%arg0: i32) -> (i32, i32) {
    %c0_i32 = arith.constant 0 : i32
    %c0_i32_0 = arith.constant 0 : i32
    %c0_i32_1 = arith.constant 0 : i32
    return %c0_i32, %c0_i32_0 : i32, i32
  }
  func.func @transform_12(%arg0: i32) -> (i32, i32) {
    %c0_i32 = arith.constant 0 : i32
    %c0_i32_0 = arith.constant 0 : i32
    %c0_i32_1 = arith.constant 0 : i32
    return %c0_i32, %c0_i32_0 : i32, i32
  }
}

</mosaic_0001>

<llo_original>
// kernel: dsb_forward.1
$region0: #{dsb_forward.1}
  #allocation0 [shape = 'u32[]', space=smem, size = 0x4, offset = 0x4, fixed_abs, tag = 'smem constant byte address 0x4 - core index']
  #allocation1 [shape = 'u32[144,128]{1,0:T(1,128)}', space=vmem, size = 0x12000, scoped, tag = 'internal scratch']
  #allocation2 [shape = 'f32[216,1152]{1,0:T(8,128)}', space=vmem, size = 0xf3000, scoped, tag = 'scratch operand']
  #allocation3 [shape = 'f32[64,1152]{1,0:T(8,128)}', space=vmem, size = 0x48000, scoped, tag = 'scratch operand']
  %s0 = inlined_call_operand.vmem [shape: f32[8,1792], index: 0, kind: input, shape index: {}]
  %s1 = inlined_call_operand.vmem [shape: f32[1,1792], index: 1, kind: input, shape index: {}]
  %s2 = inlined_call_operand.vmem [shape: f32[1,1152], index: 2, kind: input, shape index: {}]
  %s3 = inlined_call_operand.vmem [shape: f32[8,8], index: 3, kind: input, shape index: {}]
  %s4 = inlined_call_operand.vmem [shape: f32[8,1], index: 4, kind: input, shape index: {}]
  %s5 = inlined_call_operand.vmem [shape: f32[8,1], index: 5, kind: input, shape index: {}]
  %s6 = inlined_call_operand.vmem [shape: f32[8,216], index: 6, kind: input, shape index: {}]
  %s7 = inlined_call_operand.vmem [shape: f32[8,1], index: 7, kind: input, shape index: {}]
  %s8 = inlined_call_operand.vmem [shape: f32[8,1], index: 8, kind: input, shape index: {}]
  %s9 = inlined_call_operand.vmem [shape: f32[8,1], index: 9, kind: input, shape index: {}]
  %s10 = inlined_call_operand.vmem [shape: f32[8,64], index: 10, kind: input, shape index: {}]
  %s11 = inlined_call_operand.vmem [shape: f32[8,1], index: 11, kind: input, shape index: {}]
  %s12 = inlined_call_operand.vmem [shape: f32[8,1152], index: 12, kind: output, shape index: {}]
  %s13 = sld [smem:[#allocation0]]
  $region58: #{dsb_forward.1} parent=0
    _
  %s15 = ssub.s32 1, %s13
  %s16 = scalar_select 0, %s15, %s13
  // Predicated region
  $region2: #{dsb_forward.1} parent=0 // pred_check
    _
  $region3: #{dsb_forward.1} parent=0 // pred_check_branch
    %18 = sbr.rel (0) target = $region5
  $region4: #{dsb_forward.1} parent=0 // pred_region
    _
  $region5: #{dsb_forward.1} parent=0 // pred_fallthru
    _
  // Predicated region
  $region6: #{dsb_forward.1} parent=0 // pred_check
    _
  $region7: #{dsb_forward.1} parent=0 // pred_check_branch
    %20 = sbr.rel (0) target = $region9
  $region8: #{dsb_forward.1} parent=0 // pred_region
    _
  $region9: #{dsb_forward.1} parent=0 // pred_fallthru
    _
  // Predicated region
  $region10: #{dsb_forward.1} parent=0 // pred_check
    _
  $region11: #{dsb_forward.1} parent=0 // pred_check_branch
    %22 = sbr.rel (0) target = $region13
  $region12: #{dsb_forward.1} parent=0 // pred_region
    _
  $region13: #{dsb_forward.1} parent=0 // pred_fallthru
    _
  // Predicated region
  $region14: #{dsb_forward.1} parent=0 // pred_check
    _
  $region15: #{dsb_forward.1} parent=0 // pred_check_branch
    %24 = sbr.rel (0) target = $region17
  $region16: #{dsb_forward.1} parent=0 // pred_region
    _
  $region17: #{dsb_forward.1} parent=0 // pred_fallthru
    _
  // Predicated region
  $region18: #{dsb_forward.1} parent=0 // pred_check
    _
  $region19: #{dsb_forward.1} parent=0 // pred_check_branch
    %26 = sbr.rel (0) target = $region21
  $region20: #{dsb_forward.1} parent=0 // pred_region
    _
  $region21: #{dsb_forward.1} parent=0 // pred_fallthru
    _
  // Predicated region
  $region22: #{dsb_forward.1} parent=0 // pred_check
    _
  $region23: #{dsb_forward.1} parent=0 // pred_check_branch
    %28 = sbr.rel (0) target = $region25
  $region24: #{dsb_forward.1} parent=0 // pred_region
    _
  $region25: #{dsb_forward.1} parent=0 // pred_fallthru
    _
  // Predicated region
  $region26: #{dsb_forward.1} parent=0 // pred_check
    _
  $region27: #{dsb_forward.1} parent=0 // pred_check_branch
    %30 = sbr.rel (0) target = $region29
  $region28: #{dsb_forward.1} parent=0 // pred_region
    _
  $region29: #{dsb_forward.1} parent=0 // pred_fallthru
    _
  // Predicated region
  $region30: #{dsb_forward.1} parent=0 // pred_check
    _
  $region31: #{dsb_forward.1} parent=0 // pred_check_branch
    %32 = sbr.rel (0) target = $region33
  $region32: #{dsb_forward.1} parent=0 // pred_region
    _
  $region33: #{dsb_forward.1} parent=0 // pred_fallthru
    _
  // Predicated region
  $region34: #{dsb_forward.1} parent=0 // pred_check
    _
  $region35: #{dsb_forward.1} parent=0 // pred_check_branch
    %34 = sbr.rel (0) target = $region37
  $region36: #{dsb_forward.1} parent=0 // pred_region
    _
  $region37: #{dsb_forward.1} parent=0 // pred_fallthru
    _
  // Predicated region
  $region38: #{dsb_forward.1} parent=0 // pred_check
    _
  $region39: #{dsb_forward.1} parent=0 // pred_check_branch
    %36 = sbr.rel (0) target = $region41
  $region40: #{dsb_forward.1} parent=0 // pred_region
    _
  $region41: #{dsb_forward.1} parent=0 // pred_fallthru
    _
  // Predicated region
  $region42: #{dsb_forward.1} parent=0 // pred_check
    _
  $region43: #{dsb_forward.1} parent=0 // pred_check_branch
    %38 = sbr.rel (0) target = $region45
  $region44: #{dsb_forward.1} parent=0 // pred_region
    _
  $region45: #{dsb_forward.1} parent=0 // pred_fallthru
    _
  // Predicated region
  $region46: #{dsb_forward.1} parent=0 // pred_check
    _
  $region47: #{dsb_forward.1} parent=0 // pred_check_branch
    %40 = sbr.rel (0) target = $region49
  $region48: #{dsb_forward.1} parent=0 // pred_region
    _
  $region49: #{dsb_forward.1} parent=0 // pred_fallthru
    _
  %v41 = vld [vmem:[%s0] sm:$0xff]
  %v42 = vld [vmem:[%s0 + $0x8] sm:$0xff]
  %v43 = vld [vmem:[%s0 + $0x10] sm:$0xff]
  %v44 = vld [vmem:[%s0 + $0x18] sm:$0xff]
  %v45 = vld [vmem:[%s0 + $0x20] sm:$0xff]
  %v46 = vld [vmem:[%s0 + $0x28] sm:$0xff]
  %v47 = vld [vmem:[%s0 + $0x30] sm:$0xff]
  %v48 = vld [vmem:[%s0 + $0x38] sm:$0xff]
  %v49 = vld [vmem:[%s0 + $0x40] sm:$0xff]
  %v50 = vld [vmem:[%s0 + $0x48] sm:$0xff]
  %v51 = vld [vmem:[%s0 + $0x50] sm:$0xff]
  %v52 = vld [vmem:[%s0 + $0x58] sm:$0xff]
  %v53 = vld [vmem:[%s0 + $0x60] sm:$0xff]
  %v54 = vld [vmem:[%s0 + $0x68] sm:$0xff]
  %v55 = vld [vmem:[%s1] sm:$0xff]
  %v56 = vld [vmem:[%s1 + $0x8] sm:$0x3f]
  %v57 = vld [vmem:[%s2] sm:$0xff]
  %v58 = vld [vmem:[%s2 + $0x8] sm:$0x1]
  %v59 = vld [vmem:[%s3] sm:$0xff]
  %vm60 = vcmask 64512
  %v62 = vsel %vm60, %v59, 0
  %64 = vmatprep.subr.mxu0 %v42
  %65 = vmatpush1.msra.mxu0 %v41
  %66 = vmatprep.subr.mxu0 0.0
  %67 = vmatpush1.msra.mxu0 0.0
  %68 = vmatprep.subr.mxu0 0.0
  %69 = vmatpush1.msra.mxu0 0.0
  %70 = vmatprep.subr.mxu0 0.0
  %71 = vmatpush1.msra.mxu0 0.0
  %72 = vmatprep.subr.mxu0 0.0
  %73 = vmatpush1.msra.mxu0 0.0
  %74 = vmatprep.subr.mxu0 0.0
  %75 = vmatpush1.msra.mxu0 0.0
  %76 = vmatprep.subr.mxu0 0.0
  %77 = vmatpush1.msra.mxu0 0.0
  %78 = vmatprep.subr.mxu0 0.0
  %79 = vmatpush1.msra.mxu0 0.0
  %80 = vmatprep.subr.mxu0 0.0
  %81 = vmatpush1.msra.mxu0 0.0
  %82 = vmatprep.subr.mxu0 0.0
  %83 = vmatpush1.msra.mxu0 0.0
  %84 = vmatprep.subr.mxu0 0.0
  %85 = vmatpush1.msra.mxu0 0.0
  %86 = vmatprep.subr.mxu0 0.0
  %87 = vmatpush1.msra.mxu0 0.0
  %88 = vmatprep.subr.mxu0 0.0
  %89 = vmatpush1.msra.mxu0 0.0
  %90 = vmatprep.subr.mxu0 0.0
  %91 = vmatpush1.msra.mxu0 0.0
  %92 = vmatprep.subr.mxu0 0.0
  %93 = vmatpush1.msra.mxu0 0.0
  %94 = vmatprep.subr.mxu0 0.0
  %95 = vmatpush1.msra.mxu0 0.0
  %96 = vmatprep.subr.mxu0 0.0
  %97 = vmatpush1.msra.mxu0 0.0
  %98 = vmatprep.subr.mxu0 0.0
  %99 = vmatpush1.msra.mxu0 0.0
  %100 = vmatprep.subr.mxu0 0.0
  %101 = vmatpush1.msra.mxu0 0.0
  %102 = vmatprep.subr.mxu0 0.0
  %103 = vmatpush1.msra.mxu0 0.0
  %104 = vmatprep.subr.mxu0 0.0
  %105 = vmatpush1.msra.mxu0 0.0
  %106 = vmatprep.subr.mxu0 0.0
  %107 = vmatpush1.msra.mxu0 0.0
  %108 = vmatprep.subr.mxu0 0.0
  %109 = vmatpush1.msra.mxu0 0.0
  %110 = vmatprep.subr.mxu0 0.0
  %111 = vmatpush1.msra.mxu0 0.0
  %112 = vmatprep.subr.mxu0 0.0
  %113 = vmatpush1.msra.mxu0 0.0
  %114 = vmatprep.subr.mxu0 0.0
  %115 = vmatpush1.msra.mxu0 0.0
  %116 = vmatprep.subr.mxu0 0.0
  %117 = vmatpush1.msra.mxu0 0.0
  %118 = vmatprep.subr.mxu0 0.0
  %119 = vmatpush1.msra.mxu0 0.0
  %120 = vmatprep.subr.mxu0 0.0
  %121 = vmatpush1.msra.mxu0 0.0
  %122 = vmatprep.subr.mxu0 0.0
  %123 = vmatpush1.msra.mxu0 0.0
  %124 = vmatprep.subr.mxu0 0.0
  %125 = vmatpush1.msra.mxu0 0.0
  %126 = vmatprep.subr.mxu0 0.0
  %127 = vmatpush1.msra.mxu0 0.0
  %128 = vmatprep.mubr.f32.mxu0 0.0
  %129 = vmatmul.mubr.f32.gmra.mrb[0].mxu0 %v62
  %v130 = vpop.f32.mrb[0].mxu0
  %v131 = vadd.f32 0.0, %v130
  %v132 = vpop.f32.mrb[0].mxu0
  %v133 = vadd.f32 0.0, %v132
  %134 = vdwg.mxu0
  %135 = vmatprep.subr.mxu0 %v44
  %136 = vmatpush1.msra.mxu0 %v43
  %137 = vmatprep.subr.mxu0 0.0
  %138 = vmatpush1.msra.mxu0 0.0
  %139 = vmatprep.subr.mxu0 0.0
  %140 = vmatpush1.msra.mxu0 0.0
  %141 = vmatprep.subr.mxu0 0.0
  %142 = vmatpush1.msra.mxu0 0.0
  %143 = vmatprep.subr.mxu0 0.0
  %144 = vmatpush1.msra.mxu0 0.0
  %145 = vmatprep.subr.mxu0 0.0
  %146 = vmatpush1.msra.mxu0 0.0
  %147 = vmatprep.subr.mxu0 0.0
  %148 = vmatpush1.msra.mxu0 0.0
  %149 = vmatprep.subr.mxu0 0.0
  %150 = vmatpush1.msra.mxu0 0.0
  %151 = vmatprep.subr.mxu0 0.0
  %152 = vmatpush1.msra.mxu0 0.0
  %153 = vmatprep.subr.mxu0 0.0
  %154 = vmatpush1.msra.mxu0 0.0
  %155 = vmatprep.subr.mxu0 0.0
  %156 = vmatpush1.msra.mxu0 0.0
  %157 = vmatprep.subr.mxu0 0.0
  %158 = vmatpush1.msra.mxu0 0.0
  %159 = vmatprep.subr.mxu0 0.0
  %160 = vmatpush1.msra.mxu0 0.0
  %161 = vmatprep.subr.mxu0 0.0
  %162 = vmatpush1.msra.mxu0 0.0
  %163 = vmatprep.subr.mxu0 0.0
  %164 = vmatpush1.msra.mxu0 0.0
  %165 = vmatprep.subr.mxu0 0.0
  %166 = vmatpush1.msra.mxu0 0.0
  %167 = vmatprep.subr.mxu0 0.0
  %168 = vmatpush1.msra.mxu0 0.0
  %169 = vmatprep.subr.mxu0 0.0
  %170 = vmatpush1.msra.mxu0 0.0
  %171 = vmatprep.subr.mxu0 0.0
  %172 = vmatpush1.msra.mxu0 0.0
  %173 = vmatprep.subr.mxu0 0.0
  %174 = vmatpush1.msra.mxu0 0.0
  %175 = vmatprep.subr.mxu0 0.0
  %176 = vmatpush1.msra.mxu0 0.0
  %177 = vmatprep.subr.mxu0 0.0
  %178 = vmatpush1.msra.mxu0 0.0
  %179 = vmatprep.subr.mxu0 0.0
  %180 = vmatpush1.msra.mxu0 0.0
  %181 = vmatprep.subr.mxu0 0.0
  %182 = vmatpush1.msra.mxu0 0.0
  %183 = vmatprep.subr.mxu0 0.0
  %184 = vmatpush1.msra.mxu0 0.0
  %185 = vmatprep.subr.mxu0 0.0
  %186 = vmatpush1.msra.mxu0 0.0
  %187 = vmatprep.subr.mxu0 0.0
  %188 = vmatpush1.msra.mxu0 0.0
  %189 = vmatprep.subr.mxu0 0.0
  %190 = vmatpush1.msra.mxu0 0.0
  %191 = vmatprep.subr.mxu0 0.0
  %192 = vmatpush1.msra.mxu0 0.0
  %193 = vmatprep.subr.mxu0 0.0
  %194 = vmatpush1.msra.mxu0 0.0
  %195 = vmatprep.subr.mxu0 0.0
  %196 = vmatpush1.msra.mxu0 0.0
  %197 = vmatprep.subr.mxu0 0.0
  %198 = vmatpush1.msra.mxu0 0.0
  %199 = vmatprep.mubr.f32.mxu0 0.0
  %200 = vmatmul.mubr.f32.gmra.mrb[0].mxu0 %v62
  %v201 = vpop.f32.mrb[0].mxu0
  %v202 = vadd.f32 0.0, %v201
  %v203 = vpop.f32.mrb[0].mxu0
  %v204 = vadd.f32 0.0, %v203
  %205 = vdwg.mxu0
  %206 = vmatprep.subr.mxu0 %v46
  %207 = vmatpush1.msra.mxu0 %v45
  %208 = vmatprep.subr.mxu0 0.0
  %209 = vmatpush1.msra.mxu0 0.0
  %210 = vmatprep.subr.mxu0 0.0
  %211 = vmatpush1.msra.mxu0 0.0
  %212 = vmatprep.subr.mxu0 0.0
  %213 = vmatpush1.msra.mxu0 0.0
  %214 = vmatprep.subr.mxu0 0.0
  %215 = vmatpush1.msra.mxu0 0.0
  %216 = vmatprep.subr.mxu0 0.0
  %217 = vmatpush1.msra.mxu0 0.0
  %218 = vmatprep.subr.mxu0 0.0
  %219 = vmatpush1.msra.mxu0 0.0
  %220 = vmatprep.subr.mxu0 0.0
  %221 = vmatpush1.msra.mxu0 0.0
  %222 = vmatprep.subr.mxu0 0.0
  %223 = vmatpush1.msra.mxu0 0.0
  %224 = vmatprep.subr.mxu0 0.0
  %225 = vmatpush1.msra.mxu0 0.0
  %226 = vmatprep.subr.mxu0 0.0
  %227 = vmatpush1.msra.mxu0 0.0
  %228 = vmatprep.subr.mxu0 0.0
  %229 = vmatpush1.msra.mxu0 0.0
  %230 = vmatprep.subr.mxu0 0.0
  %231 = vmatpush1.msra.mxu0 0.0
  %232 = vmatprep.subr.mxu0 0.0
  %233 = vmatpush1.msra.mxu0 0.0
  %234 = vmatprep.subr.mxu0 0.0
  %235 = vmatpush1.msra.mxu0 0.0
  %236 = vmatprep.subr.mxu0 0.0
  %237 = vmatpush1.msra.mxu0 0.0
  %238 = vmatprep.subr.mxu0 0.0
  %239 = vmatpush1.msra.mxu0 0.0
  %240 = vmatprep.subr.mxu0 0.0
  %241 = vmatpush1.msra.mxu0 0.0
  %242 = vmatprep.subr.mxu0 0.0
  %243 = vmatpush1.msra.mxu0 0.0
  %244 = vmatprep.subr.mxu0 0.0
  %245 = vmatpush1.msra.mxu0 0.0
  %246 = vmatprep.subr.mxu0 0.0
  %247 = vmatpush1.msra.mxu0 0.0
  %248 = vmatprep.subr.mxu0 0.0
  %249 = vmatpush1.msra.mxu0 0.0
  %250 = vmatprep.subr.mxu0 0.0
  %251 = vmatpush1.msra.mxu0 0.0
  %252 = vmatprep.subr.mxu0 0.0
  %253 = vmatpush1.msra.mxu0 0.0
  %254 = vmatprep.subr.mxu0 0.0
  %255 = vmatpush1.msra.mxu0 0.0
  %256 = vmatprep.subr.mxu0 0.0
  %257 = vmatpush1.msra.mxu0 0.0
  %258 = vmatprep.subr.mxu0 0.0
  %259 = vmatpush1.msra.mxu0 0.0
  %260 = vmatprep.subr.mxu0 0.0
  %261 = vmatpush1.msra.mxu0 0.0
  %262 = vmatprep.subr.mxu0 0.0
  %263 = vmatpush1.msra.mxu0 0.0
  %264 = vmatprep.subr.mxu0 0.0
  %265 = vmatpush1.msra.mxu0 0.0
  %266 = vmatprep.subr.mxu0 0.0
  %267 = vmatpush1.msra.mxu0 0.0
  %268 = vmatprep.subr.mxu0 0.0
  %269 = vmatpush1.msra.mxu0 0.0
  %270 = vmatprep.mubr.f32.mxu0 0.0
  %271 = vmatmul.mubr.f32.gmra.mrb[0].mxu0 %v62
  %v272 = vpop.f32.mrb[0].mxu0
  %v273 = vadd.f32 0.0, %v272
  %v274 = vpop.f32.mrb[0].mxu0
  %v275 = vadd.f32 0.0, %v274
  %276 = vdwg.mxu0
  %277 = vmatprep.subr.mxu0 %v48
  %278 = vmatpush1.msra.mxu0 %v47
  %279 = vmatprep.subr.mxu0 0.0
  %280 = vmatpush1.msra.mxu0 0.0
  %281 = vmatprep.subr.mxu0 0.0
  %282 = vmatpush1.msra.mxu0 0.0
  %283 = vmatprep.subr.mxu0 0.0
  %284 = vmatpush1.msra.mxu0 0.0
  %285 = vmatprep.subr.mxu0 0.0
  %286 = vmatpush1.msra.mxu0 0.0
  %287 = vmatprep.subr.mxu0 0.0
  %288 = vmatpush1.msra.mxu0 0.0
  %289 = vmatprep.subr.mxu0 0.0
  %290 = vmatpush1.msra.mxu0 0.0
  %291 = vmatprep.subr.mxu0 0.0
  %292 = vmatpush1.msra.mxu0 0.0
  %293 = vmatprep.subr.mxu0 0.0
  %294 = vmatpush1.msra.mxu0 0.0
  %295 = vmatprep.subr.mxu0 0.0
  %296 = vmatpush1.msra.mxu0 0.0
  %297 = vmatprep.subr.mxu0 0.0
  %298 = vmatpush1.msra.mxu0 0.0
  %299 = vmatprep.subr.mxu0 0.0
  %300 = vmatpush1.msra.mxu0 0.0
  %301 = vmatprep.subr.mxu0 0.0
  %302 = vmatpush1.msra.mxu0 0.0
  %303 = vmatprep.subr.mxu0 0.0
  %304 = vmatpush1.msra.mxu0 0.0
  %305 = vmatprep.subr.mxu0 0.0
  %306 = vmatpush1.msra.mxu0 0.0
  %307 = vmatprep.subr.mxu0 0.0
  %308 = vmatpush1.msra.mxu0 0.0
  %309 = vmatprep.subr.mxu0 0.0
  %310 = vmatpush1.msra.mxu0 0.0
  %311 = vmatprep.subr.mxu0 0.0
  %312 = vmatpush1.msra.mxu0 0.0
  %313 = vmatprep.subr.mxu0 0.0
  %314 = vmatpush1.msra.mxu0 0.0
  %315 = vmatprep.subr.mxu0 0.0
  %316 = vmatpush1.msra.mxu0 0.0
  %317 = vmatprep.subr.mxu0 0.0
  %318 = vmatpush1.msra.mxu0 0.0
  %319 = vmatprep.subr.mxu0 0.0
  %320 = vmatpush1.msra.mxu0 0.0
  %321 = vmatprep.subr.mxu0 0.0
  %322 = vmatpush1.msra.mxu0 0.0
  %323 = vmatprep.subr.mxu0 0.0
  %324 = vmatpush1.msra.mxu0 0.0
  %325 = vmatprep.subr.mxu0 0.0
  %326 = vmatpush1.msra.mxu0 0.0
  %327 = vmatprep.subr.mxu0 0.0
  %328 = vmatpush1.msra.mxu0 0.0
  %329 = vmatprep.subr.mxu0 0.0
  %330 = vmatpush1.msra.mxu0 0.0
  %331 = vmatprep.subr.mxu0 0.0
  %332 = vmatpush1.msra.mxu0 0.0
  %333 = vmatprep.subr.mxu0 0.0
  %334 = vmatpush1.msra.mxu0 0.0
  %335 = vmatprep.subr.mxu0 0.0
  %336 = vmatpush1.msra.mxu0 0.0
  %337 = vmatprep.subr.mxu0 0.0
  %338 = vmatpush1.msra.mxu0 0.0
  %339 = vmatprep.subr.mxu0 0.0
  %340 = vmatpush1.msra.mxu0 0.0
  %341 = vmatprep.mubr.f32.mxu0 0.0
  %342 = vmatmul.mubr.f32.gmra.mrb[0].mxu0 %v62
  %v343 = vpop.f32.mrb[0].mxu0
  %v344 = vadd.f32 0.0, %v343
  %v345 = vpop.f32.mrb[0].mxu0
  %v346 = vadd.f32 0.0, %v345
  %347 = vdwg.mxu0
  %348 = vmatprep.subr.mxu0 %v50
  %349 = vmatpush1.msra.mxu0 %v49
  %350 = vmatprep.subr.mxu0 0.0
  %351 = vmatpush1.msra.mxu0 0.0
  %352 = vmatprep.subr.mxu0 0.0
  %353 = vmatpush1.msra.mxu0 0.0
  %354 = vmatprep.subr.mxu0 0.0
  %355 = vmatpush1.msra.mxu0 0.0
  %356 = vmatprep.subr.mxu0 0.0
  %357 = vmatpush1.msra.mxu0 0.0
  %358 = vmatprep.subr.mxu0 0.0
  %359 = vmatpush1.msra.mxu0 0.0
  %360 = vmatprep.subr.mxu0 0.0
  %361 = vmatpush1.msra.mxu0 0.0
  %362 = vmatprep.subr.mxu0 0.0
  %363 = vmatpush1.msra.mxu0 0.0
  %364 = vmatprep.subr.mxu0 0.0
  %365 = vmatpush1.msra.mxu0 0.0
  %366 = vmatprep.subr.mxu0 0.0
  %367 = vmatpush1.msra.mxu0 0.0
  %368 = vmatprep.subr.mxu0 0.0
  %369 = vmatpush1.msra.mxu0 0.0
  %370 = vmatprep.subr.mxu0 0.0
  %371 = vmatpush1.msra.mxu0 0.0
  %372 = vmatprep.subr.mxu0 0.0
  %373 = vmatpush1.msra.mxu0 0.0
  %374 = vmatprep.subr.mxu0 0.0
  %375 = vmatpush1.msra.mxu0 0.0
  %376 = vmatprep.subr.mxu0 0.0
  %377 = vmatpush1.msra.mxu0 0.0
  %378 = vmatprep.subr.mxu0 0.0
  %379 = vmatpush1.msra.mxu0 0.0
  %380 = vmatprep.subr.mxu0 0.0
  %381 = vmatpush1.msra.mxu0 0.0
  %382 = vmatprep.subr.mxu0 0.0
  %383 = vmatpush1.msra.mxu0 0.0
  %384 = vmatprep.subr.mxu0 0.0
  %385 = vmatpush1.msra.mxu0 0.0
  %386 = vmatprep.subr.mxu0 0.0
  %387 = vmatpush1.msra.mxu0 0.0
  %388 = vmatprep.subr.mxu0 0.0
  %389 = vmatpush1.msra.mxu0 0.0
  %390 = vmatprep.subr.mxu0 0.0
  %391 = vmatpush1.msra.mxu0 0.0
  %392 = vmatprep.subr.mxu0 0.0
  %393 = vmatpush1.msra.mxu0 0.0
  %394 = vmatprep.subr.mxu0 0.0
  %395 = vmatpush1.msra.mxu0 0.0
  %396 = vmatprep.subr.mxu0 0.0
  %397 = vmatpush1.msra.mxu0 0.0
  %398 = vmatprep.subr.mxu0 0.0
  %399 = vmatpush1.msra.mxu0 0.0
  %400 = vmatprep.subr.mxu0 0.0
  %401 = vmatpush1.msra.mxu0 0.0
  %402 = vmatprep.subr.mxu0 0.0
  %403 = vmatpush1.msra.mxu0 0.0
  %404 = vmatprep.subr.mxu0 0.0
  %405 = vmatpush1.msra.mxu0 0.0
  %406 = vmatprep.subr.mxu0 0.0
  %407 = vmatpush1.msra.mxu0 0.0
  %408 = vmatprep.subr.mxu0 0.0
  %409 = vmatpush1.msra.mxu0 0.0
  %410 = vmatprep.subr.mxu0 0.0
  %411 = vmatpush1.msra.mxu0 0.0
  %412 = vmatprep.mubr.f32.mxu0 0.0
  %413 = vmatmul.mubr.f32.gmra.mrb[0].mxu0 %v62
  %v414 = vpop.f32.mrb[0].mxu0
  %v415 = vadd.f32 0.0, %v414
  %v416 = vpop.f32.mrb[0].mxu0
  %v417 = vadd.f32 0.0, %v416
  %418 = vdwg.mxu0
  %419 = vmatprep.subr.mxu0 %v52
  %420 = vmatpush1.msra.mxu0 %v51
  %421 = vmatprep.subr.mxu0 0.0
  %422 = vmatpush1.msra.mxu0 0.0
  %423 = vmatprep.subr.mxu0 0.0
  %424 = vmatpush1.msra.mxu0 0.0
  %425 = vmatprep.subr.mxu0 0.0
  %426 = vmatpush1.msra.mxu0 0.0
  %427 = vmatprep.subr.mxu0 0.0
  %428 = vmatpush1.msra.mxu0 0.0
  %429 = vmatprep.subr.mxu0 0.0
  %430 = vmatpush1.msra.mxu0 0.0
  %431 = vmatprep.subr.mxu0 0.0
  %432 = vmatpush1.msra.mxu0 0.0
  %433 = vmatprep.subr.mxu0 0.0
  %434 = vmatpush1.msra.mxu0 0.0
  %435 = vmatprep.subr.mxu0 0.0
  %436 = vmatpush1.msra.mxu0 0.0
  %437 = vmatprep.subr.mxu0 0.0
  %438 = vmatpush1.msra.mxu0 0.0
  %439 = vmatprep.subr.mxu0 0.0
  %440 = vmatpush1.msra.mxu0 0.0
  %441 = vmatprep.subr.mxu0 0.0
  %442 = vmatpush1.msra.mxu0 0.0
  %443 = vmatprep.subr.mxu0 0.0
  %444 = vmatpush1.msra.mxu0 0.0
  %445 = vmatprep.subr.mxu0 0.0
  %446 = vmatpush1.msra.mxu0 0.0
  %447 = vmatprep.subr.mxu0 0.0
  %448 = vmatpush1.msra.mxu0 0.0
  %449 = vmatprep.subr.mxu0 0.0
  %450 = vmatpush1.msra.mxu0 0.0
  %451 = vmatprep.subr.mxu0 0.0
  %452 = vmatpush1.msra.mxu0 0.0
  %453 = vmatprep.subr.mxu0 0.0
  %454 = vmatpush1.msra.mxu0 0.0
  %455 = vmatprep.subr.mxu0 0.0
  %456 = vmatpush1.msra.mxu0 0.0
  %457 = vmatprep.subr.mxu0 0.0
  %458 = vmatpush1.msra.mxu0 0.0
  %459 = vmatprep.subr.mxu0 0.0
  %460 = vmatpush1.msra.mxu0 0.0
  %461 = vmatprep.subr.mxu0 0.0
  %462 = vmatpush1.msra.mxu0 0.0
  %463 = vmatprep.subr.mxu0 0.0
  %464 = vmatpush1.msra.mxu0 0.0
  %465 = vmatprep.subr.mxu0 0.0
  %466 = vmatpush1.msra.mxu0 0.0
  %467 = vmatprep.subr.mxu0 0.0
  %468 = vmatpush1.msra.mxu0 0.0
  %469 = vmatprep.subr.mxu0 0.0
  %470 = vmatpush1.msra.mxu0 0.0
  %471 = vmatprep.subr.mxu0 0.0
  %472 = vmatpush1.msra.mxu0 0.0
  %473 = vmatprep.subr.mxu0 0.0
  %474 = vmatpush1.msra.mxu0 0.0
  %475 = vmatprep.subr.mxu0 0.0
  %476 = vmatpush1.msra.mxu0 0.0
  %477 = vmatprep.subr.mxu0 0.0
  %478 = vmatpush1.msra.mxu0 0.0
  %479 = vmatprep.subr.mxu0 0.0
  %480 = vmatpush1.msra.mxu0 0.0
  %481 = vmatprep.subr.mxu0 0.0
  %482 = vmatpush1.msra.mxu0 0.0
  %483 = vmatprep.mubr.f32.mxu0 0.0
  %484 = vmatmul.mubr.f32.gmra.mrb[0].mxu0 %v62
  %v485 = vpop.f32.mrb[0].mxu0
  %v486 = vadd.f32 0.0, %v485
  %v487 = vpop.f32.mrb[0].mxu0
  %v488 = vadd.f32 0.0, %v487
  %489 = vdwg.mxu0
  %490 = vmatprep.subr.mxu0 %v54
  %491 = vmatpush1.msra.mxu0 %v53
  %492 = vmatprep.subr.mxu0 0.0
  %493 = vmatpush1.msra.mxu0 0.0
  %494 = vmatprep.subr.mxu0 0.0
  %495 = vmatpush1.msra.mxu0 0.0
  %496 = vmatprep.subr.mxu0 0.0
  %497 = vmatpush1.msra.mxu0 0.0
  %498 = vmatprep.subr.mxu0 0.0
  %499 = vmatpush1.msra.mxu0 0.0
  %500 = vmatprep.subr.mxu0 0.0
  %501 = vmatpush1.msra.mxu0 0.0
  %502 = vmatprep.subr.mxu0 0.0
  %503 = vmatpush1.msra.mxu0 0.0
  %504 = vmatprep.subr.mxu0 0.0
  %505 = vmatpush1.msra.mxu0 0.0
  %506 = vmatprep.subr.mxu0 0.0
  %507 = vmatpush1.msra.mxu0 0.0
  %508 = vmatprep.subr.mxu0 0.0
  %509 = vmatpush1.msra.mxu0 0.0
  %510 = vmatprep.subr.mxu0 0.0
  %511 = vmatpush1.msra.mxu0 0.0
  %512 = vmatprep.subr.mxu0 0.0
  %513 = vmatpush1.msra.mxu0 0.0
  %514 = vmatprep.subr.mxu0 0.0
  %515 = vmatpush1.msra.mxu0 0.0
  %516 = vmatprep.subr.mxu0 0.0
  %517 = vmatpush1.msra.mxu0 0.0
  %518 = vmatprep.subr.mxu0 0.0
  %519 = vmatpush1.msra.mxu0 0.0
  %520 = vmatprep.subr.mxu0 0.0
  %521 = vmatpush1.msra.mxu0 0.0
  %522 = vmatprep.subr.mxu0 0.0
  %523 = vmatpush1.msra.mxu0 0.0
  %524 = vmatprep.subr.mxu0 0.0
  %525 = vmatpush1.msra.mxu0 0.0
  %526 = vmatprep.subr.mxu0 0.0
  %527 = vmatpush1.msra.mxu0 0.0
  %528 = vmatprep.subr.mxu0 0.0
  %529 = vmatpush1.msra.mxu0 0.0
  %530 = vmatprep.subr.mxu0 0.0
  %531 = vmatpush1.msra.mxu0 0.0
  %532 = vmatprep.subr.mxu0 0.0
  %533 = vmatpush1.msra.mxu0 0.0
  %534 = vmatprep.subr.mxu0 0.0
  %535 = vmatpush1.msra.mxu0 0.0
  %536 = vmatprep.subr.mxu0 0.0
  %537 = vmatpush1.msra.mxu0 0.0
  %538 = vmatprep.subr.mxu0 0.0
  %539 = vmatpush1.msra.mxu0 0.0
  %540 = vmatprep.subr.mxu0 0.0
  %541 = vmatpush1.msra.mxu0 0.0
  %542 = vmatprep.subr.mxu0 0.0
  %543 = vmatpush1.msra.mxu0 0.0
  %544 = vmatprep.subr.mxu0 0.0
  %545 = vmatpush1.msra.mxu0 0.0
  %546 = vmatprep.subr.mxu0 0.0
  %547 = vmatpush1.msra.mxu0 0.0
  %548 = vmatprep.subr.mxu0 0.0
  %549 = vmatpush1.msra.mxu0 0.0
  %550 = vmatprep.subr.mxu0 0.0
  %551 = vmatpush1.msra.mxu0 0.0
  %552 = vmatprep.subr.mxu0 0.0
  %553 = vmatpush1.msra.mxu0 0.0
  %554 = vmatprep.mubr.f32.mxu0 0.0
  %555 = vmatmul.mubr.f32.gmra.mrb[0].mxu0 %v62
  %v556 = vpop.f32.mrb[0].mxu0
  %v557 = vadd.f32 0.0, %v556
  %v558 = vpop.f32.mrb[0].mxu0
  %v559 = vadd.f32 0.0, %v558
  %560 = vdwg.mxu0
  %v561 = vadd.f32 %v131, %v133
  %v562 = vadd.f32 %v561, %v202
  %v563 = vadd.f32 %v562, %v204
  %v564 = vadd.f32 %v563, %v273
  %v565 = vadd.f32 %v564, %v275
  %v566 = vadd.f32 %v565, %v344
  %v567 = vadd.f32 %v566, %v346
  %v568 = vadd.f32 %v567, %v415
  %v569 = vadd.f32 %v568, %v417
  %v570 = vadd.f32 %v569, %v486
  %v571 = vadd.f32 %v570, %v488
  %v572 = vadd.f32 %v571, %v557
  %v573 = vadd.f32 %v572, %v559
  %574 = vadd.xlane.f32.xlu0 %v573
  %v575 = vpop.xlane.xlu0 %574
  %v576 = vmul.f32 %v575, 0.0009765625
  %v577 = vsub.f32 %v41, %v576
  %v578 = vsub.f32 %v42, %v576
  %v579 = vsub.f32 %v43, %v576
  %v580 = vsub.f32 %v44, %v576
  %v581 = vsub.f32 %v45, %v576
  %v582 = vsub.f32 %v46, %v576
  %v583 = vsub.f32 %v47, %v576
  %v584 = vsub.f32 %v48, %v576
  %v585 = vsub.f32 %v49, %v576
  %v586 = vsub.f32 %v50, %v576
  %v587 = vsub.f32 %v51, %v576
  %v588 = vsub.f32 %v52, %v576
  %v589 = vsub.f32 %v53, %v576
  %v590 = vsub.f32 %v54, %v576
  %v593 = vlaneseq
  %v594 = vshrl.u32 %v593, 7
  %v595 = vsub.s32 0, %v594
  %v596 = vrot.slane %v55, %v595
  %v597 = vlaneseq
  %v598 = vshrl.u32 %v597, 7
  %v599 = vsub.s32 1, %v598
  %v600 = vrot.slane %v55, %v599
  %v601 = vlaneseq
  %v602 = vshrl.u32 %v601, 7
  %v603 = vsub.s32 2, %v602
  %v604 = vrot.slane %v55, %v603
  %v605 = vlaneseq
  %v606 = vshrl.u32 %v605, 7
  %v607 = vsub.s32 3, %v606
  %v608 = vrot.slane %v55, %v607
  %v609 = vlaneseq
  %v610 = vshrl.u32 %v609, 7
  %v611 = vsub.s32 4, %v610
  %v612 = vrot.slane %v55, %v611
  %v613 = vlaneseq
  %v614 = vshrl.u32 %v613, 7
  %v615 = vsub.s32 5, %v614
  %v616 = vrot.slane %v55, %v615
  %v617 = vlaneseq
  %v618 = vshrl.u32 %v617, 7
  %v619 = vsub.s32 6, %v618
  %v620 = vrot.slane %v55, %v619
  %v621 = vlaneseq
  %v622 = vshrl.u32 %v621, 7
  %v623 = vsub.s32 7, %v622
  %v624 = vrot.slane %v55, %v623
  %v625 = vlaneseq
  %v626 = vshrl.u32 %v625, 7
  %v627 = vsub.s32 0, %v626
  %v628 = vrot.slane %v56, %v627
  %v629 = vlaneseq
  %v630 = vshrl.u32 %v629, 7
  %v631 = vsub.s32 1, %v630
  %v632 = vrot.slane %v56, %v631
  %v633 = vlaneseq
  %v634 = vshrl.u32 %v633, 7
  %v635 = vsub.s32 2, %v634
  %v636 = vrot.slane %v56, %v635
  %v637 = vlaneseq
  %v638 = vshrl.u32 %v637, 7
  %v639 = vsub.s32 3, %v638
  %v640 = vrot.slane %v56, %v639
  %v641 = vlaneseq
  %v642 = vshrl.u32 %v641, 7
  %v643 = vsub.s32 4, %v642
  %v644 = vrot.slane %v56, %v643
  %v645 = vlaneseq
  %v646 = vshrl.u32 %v645, 7
  %v647 = vsub.s32 5, %v646
  %v648 = vrot.slane %v56, %v647
  %v663 = vmul.f32 %v577, %v596
  %v664 = vmul.f32 %v578, %v600
  %v665 = vmul.f32 %v579, %v604
  %v666 = vmul.f32 %v580, %v608
  %v667 = vmul.f32 %v581, %v612
  %v668 = vmul.f32 %v582, %v616
  %v669 = vmul.f32 %v583, %v620
  %v670 = vmul.f32 %v584, %v624
  %v671 = vmul.f32 %v585, %v628
  %v672 = vmul.f32 %v586, %v632
  %v673 = vmul.f32 %v587, %v636
  %v674 = vmul.f32 %v588, %v640
  %v675 = vmul.f32 %v589, %v644
  %v676 = vmul.f32 %v590, %v648
  %v677 = vmul.f32 %v663, %v663
  %v678 = vmul.f32 %v664, %v664
  %v679 = vmul.f32 %v665, %v665
  %v680 = vmul.f32 %v666, %v666
  %v681 = vmul.f32 %v667, %v667
  %v682 = vmul.f32 %v668, %v668
  %v683 = vmul.f32 %v669, %v669
  %v684 = vmul.f32 %v670, %v670
  %v685 = vmul.f32 %v671, %v671
  %v686 = vmul.f32 %v672, %v672
  %v687 = vmul.f32 %v673, %v673
  %v688 = vmul.f32 %v674, %v674
  %v689 = vmul.f32 %v675, %v675
  %v690 = vmul.f32 %v676, %v676
  %691 = vmatprep.subr.mxu0 %v678
  %692 = vmatpush1.msra.mxu0 %v677
  %693 = vmatprep.subr.mxu0 0.0
  %694 = vmatpush1.msra.mxu0 0.0
  %695 = vmatprep.subr.mxu0 0.0
  %696 = vmatpush1.msra.mxu0 0.0
  %697 = vmatprep.subr.mxu0 0.0
  %698 = vmatpush1.msra.mxu0 0.0
  %699 = vmatprep.subr.mxu0 0.0
  %700 = vmatpush1.msra.mxu0 0.0
  %701 = vmatprep.subr.mxu0 0.0
  %702 = vmatpush1.msra.mxu0 0.0
  %703 = vmatprep.subr.mxu0 0.0
  %704 = vmatpush1.msra.mxu0 0.0
  %705 = vmatprep.subr.mxu0 0.0
  %706 = vmatpush1.msra.mxu0 0.0
  %707 = vmatprep.subr.mxu0 0.0
  %708 = vmatpush1.msra.mxu0 0.0
  %709 = vmatprep.subr.mxu0 0.0
  %710 = vmatpush1.msra.mxu0 0.0
  %711 = vmatprep.subr.mxu0 0.0
  %712 = vmatpush1.msra.mxu0 0.0
  %713 = vmatprep.subr.mxu0 0.0
  %714 = vmatpush1.msra.mxu0 0.0
  %715 = vmatprep.subr.mxu0 0.0
  %716 = vmatpush1.msra.mxu0 0.0
  %717 = vmatprep.subr.mxu0 0.0
  %718 = vmatpush1.msra.mxu0 0.0
  %719 = vmatprep.subr.mxu0 0.0
  %720 = vmatpush1.msra.mxu0 0.0
  %721 = vmatprep.subr.mxu0 0.0
  %722 = vmatpush1.msra.mxu0 0.0
  %723 = vmatprep.subr.mxu0 0.0
  %724 = vmatpush1.msra.mxu0 0.0
  %725 = vmatprep.subr.mxu0 0.0
  %726 = vmatpush1.msra.mxu0 0.0
  %727 = vmatprep.subr.mxu0 0.0
  %728 = vmatpush1.msra.mxu0 0.0
  %729 = vmatprep.subr.mxu0 0.0
  %730 = vmatpush1.msra.mxu0 0.0
  %731 = vmatprep.subr.mxu0 0.0
  %732 = vmatpush1.msra.mxu0 0.0
  %733 = vmatprep.subr.mxu0 0.0
  %734 = vmatpush1.msra.mxu0 0.0
  %735 = vmatprep.subr.mxu0 0.0
  %736 = vmatpush1.msra.mxu0 0.0
  %737 = vmatprep.subr.mxu0 0.0
  %738 = vmatpush1.msra.mxu0 0.0
  %739 = vmatprep.subr.mxu0 0.0
  %740 = vmatpush1.msra.mxu0 0.0
  %741 = vmatprep.subr.mxu0 0.0
  %742 = vmatpush1.msra.mxu0 0.0
  %743 = vmatprep.subr.mxu0 0.0
  %744 = vmatpush1.msra.mxu0 0.0
  %745 = vmatprep.subr.mxu0 0.0
  %746 = vmatpush1.msra.mxu0 0.0
  %747 = vmatprep.subr.mxu0 0.0
  %748 = vmatpush1.msra.mxu0 0.0
  %749 = vmatprep.subr.mxu0 0.0
  %750 = vmatpush1.msra.mxu0 0.0
  %751 = vmatprep.subr.mxu0 0.0
  %752 = vmatpush1.msra.mxu0 0.0
  %753 = vmatprep.subr.mxu0 0.0
  %754 = vmatpush1.msra.mxu0 0.0
  %755 = vmatprep.mubr.f32.mxu0 0.0
  %756 = vmatmul.mubr.f32.gmra.mrb[0].mxu0 %v62
  %v757 = vpop.f32.mrb[0].mxu0
  %v758 = vadd.f32 0.0, %v757
  %v759 = vpop.f32.mrb[0].mxu0
  %v760 = vadd.f32 0.0, %v759
  %761 = vdwg.mxu0
  %762 = vmatprep.subr.mxu0 %v680
  %763 = vmatpush1.msra.mxu0 %v679
  %764 = vmatprep.subr.mxu0 0.0
  %765 = vmatpush1.msra.mxu0 0.0
  %766 = vmatprep.subr.mxu0 0.0
  %767 = vmatpush1.msra.mxu0 0.0
  %768 = vmatprep.subr.mxu0 0.0
  %769 = vmatpush1.msra.mxu0 0.0
  %770 = vmatprep.subr.mxu0 0.0
  %771 = vmatpush1.msra.mxu0 0.0
  %772 = vmatprep.subr.mxu0 0.0
  %773 = vmatpush1.msra.mxu0 0.0
  %774 = vmatprep.subr.mxu0 0.0
  %775 = vmatpush1.msra.mxu0 0.0
  %776 = vmatprep.subr.mxu0 0.0
  %777 = vmatpush1.msra.mxu0 0.0
  %778 = vmatprep.subr.mxu0 0.0
  %779 = vmatpush1.msra.mxu0 0.0
  %780 = vmatprep.subr.mxu0 0.0
  %781 = vmatpush1.msra.mxu0 0.0
  %782 = vmatprep.subr.mxu0 0.0
  %783 = vmatpush1.msra.mxu0 0.0
  %784 = vmatprep.subr.mxu0 0.0
  %785 = vmatpush1.msra.mxu0 0.0
  %786 = vmatprep.subr.mxu0 0.0
  %787 = vmatpush1.msra.mxu0 0.0
  %788 = vmatprep.subr.mxu0 0.0
  %789 = vmatpush1.msra.mxu0 0.0
  %790 = vmatprep.subr.mxu0 0.0
  %791 = vmatpush1.msra.mxu0 0.0
  %792 = vmatprep.subr.mxu0 0.0
  %793 = vmatpush1.msra.mxu0 0.0
  %794 = vmatprep.subr.mxu0 0.0
  %795 = vmatpush1.msra.mxu0 0.0
  %796 = vmatprep.subr.mxu0 0.0
  %797 = vmatpush1.msra.mxu0 0.0
  %798 = vmatprep.subr.mxu0 0.0
  %799 = vmatpush1.msra.mxu0 0.0
  %800 = vmatprep.subr.mxu0 0.0
  %801 = vmatpush1.msra.mxu0 0.0
  %802 = vmatprep.subr.mxu0 0.0
  %803 = vmatpush1.msra.mxu0 0.0
  %804 = vmatprep.subr.mxu0 0.0
  %805 = vmatpush1.msra.mxu0 0.0
  %806 = vmatprep.subr.mxu0 0.0
  %807 = vmatpush1.msra.mxu0 0.0
  %808 = vmatprep.subr.mxu0 0.0
  %809 = vmatpush1.msra.mxu0 0.0
  %810 = vmatprep.subr.mxu0 0.0
  %811 = vmatpush1.msra.mxu0 0.0
  %812 = vmatprep.subr.mxu0 0.0
  %813 = vmatpush1.msra.mxu0 0.0
  %814 = vmatprep.subr.mxu0 0.0
  %815 = vmatpush1.msra.mxu0 0.0
  %816 = vmatprep.subr.mxu0 0.0
  %817 = vmatpush1.msra.mxu0 0.0
  %818 = vmatprep.subr.mxu0 0.0
  %819 = vmatpush1.msra.mxu0 0.0
  %820 = vmatprep.subr.mxu0 0.0
  %821 = vmatpush1.msra.mxu0 0.0
  %822 = vmatprep.subr.mxu0 0.0
  %823 = vmatpush1.msra.mxu0 0.0
  %824 = vmatprep.subr.mxu0 0.0
  %825 = vmatpush1.msra.mxu0 0.0
  %826 = vmatprep.mubr.f32.mxu0 0.0
  %827 = vmatmul.mubr.f32.gmra.mrb[0].mxu0 %v62
  %v828 = vpop.f32.mrb[0].mxu0
  %v829 = vadd.f32 0.0, %v828
  %v830 = vpop.f32.mrb[0].mxu0
  %v831 = vadd.f32 0.0, %v830
  %832 = vdwg.mxu0
  %833 = vmatprep.subr.mxu0 %v682
  %834 = vmatpush1.msra.mxu0 %v681
  %835 = vmatprep.subr.mxu0 0.0
  %836 = vmatpush1.msra.mxu0 0.0
  %837 = vmatprep.subr.mxu0 0.0
  %838 = vmatpush1.msra.mxu0 0.0
  %839 = vmatprep.subr.mxu0 0.0
  %840 = vmatpush1.msra.mxu0 0.0
  %841 = vmatprep.subr.mxu0 0.0
  %842 = vmatpush1.msra.mxu0 0.0
  %843 = vmatprep.subr.mxu0 0.0
  %844 = vmatpush1.msra.mxu0 0.0
  %845 = vmatprep.subr.mxu0 0.0
  %846 = vmatpush1.msra.mxu0 0.0
  %847 = vmatprep.subr.mxu0 0.0
  %848 = vmatpush1.msra.mxu0 0.0
  %849 = vmatprep.subr.mxu0 0.0
  %850 = vmatpush1.msra.mxu0 0.0
  %851 = vmatprep.subr.mxu0 0.0
  %852 = vmatpush1.msra.mxu0 0.0
  %853 = vmatprep.subr.mxu0 0.0
  %854 = vmatpush1.msra.mxu0 0.0
  %855 = vmatprep.subr.mxu0 0.0
  %856 = vmatpush1.msra.mxu0 0.0
  %857 = vmatprep.subr.mxu0 0.0
  %858 = vmatpush1.msra.mxu0 0.0
  %859 = vmatprep.subr.mxu0 0.0
  %860 = vmatpush1.msra.mxu0 0.0
  %861 = vmatprep.subr.mxu0 0.0
  %862 = vmatpush1.msra.mxu0 0.0
  %863 = vmatprep.subr.mxu0 0.0
  %864 = vmatpush1.msra.mxu0 0.0
  %865 = vmatprep.subr.mxu0 0.0
  %866 = vmatpush1.msra.mxu0 0.0
  %867 = vmatprep.subr.mxu0 0.0
  %868 = vmatpush1.msra.mxu0 0.0
  %869 = vmatprep.subr.mxu0 0.0
  %870 = vmatpush1.msra.mxu0 0.0
  %871 = vmatprep.subr.mxu0 0.0
  %872 = vmatpush1.msra.mxu0 0.0
  %873 = vmatprep.subr.mxu0 0.0
  %874 = vmatpush1.msra.mxu0 0.0
  %875 = vmatprep.subr.mxu0 0.0
  %876 = vmatpush1.msra.mxu0 0.0
  %877 = vmatprep.subr.mxu0 0.0
  %878 = vmatpush1.msra.mxu0 0.0
  %879 = vmatprep.subr.mxu0 0.0
  %880 = vmatpush1.msra.mxu0 0.0
  %881 = vmatprep.subr.mxu0 0.0
  %882 = vmatpush1.msra.mxu0 0.0
  %883 = vmatprep.subr.mxu0 0.0
  %884 = vmatpush1.msra.mxu0 0.0
  %885 = vmatprep.subr.mxu0 0.0
  %886 = vmatpush1.msra.mxu0 0.0
  %887 = vmatprep.subr.mxu0 0.0
  %888 = vmatpush1.msra.mxu0 0.0
  %889 = vmatprep.subr.mxu0 0.0
  %890 = vmatpush1.msra.mxu0 0.0
  %891 = vmatprep.subr.mxu0 0.0
  %892 = vmatpush1.msra.mxu0 0.0
  %893 = vmatprep.subr.mxu0 0.0
  %894 = vmatpush1.msra.mxu0 0.0
  %895 = vmatprep.subr.mxu0 0.0
  %896 = vmatpush1.msra.mxu0 0.0
  %897 = vmatprep.mubr.f32.mxu0 0.0
  %898 = vmatmul.mubr.f32.gmra.mrb[0].mxu0 %v62
  %v899 = vpop.f32.mrb[0].mxu0
  %v900 = vadd.f32 0.0, %v899
  %v901 = vpop.f32.mrb[0].mxu0
  %v902 = vadd.f32 0.0, %v901
  %903 = vdwg.mxu0
  %904 = vmatprep.subr.mxu0 %v684
  %905 = vmatpush1.msra.mxu0 %v683
  %906 = vmatprep.subr.mxu0 0.0
  %907 = vmatpush1.msra.mxu0 0.0
  %908 = vmatprep.subr.mxu0 0.0
  %909 = vmatpush1.msra.mxu0 0.0
  %910 = vmatprep.subr.mxu0 0.0
  %911 = vmatpush1.msra.mxu0 0.0
  %912 = vmatprep.subr.mxu0 0.0
  %913 = vmatpush1.msra.mxu0 0.0
  %914 = vmatprep.subr.mxu0 0.0
  %915 = vmatpush1.msra.mxu0 0.0
  %916 = vmatprep.subr.mxu0 0.0
  %917 = vmatpush1.msra.mxu0 0.0
  %918 = vmatprep.subr.mxu0 0.0
  %919 = vmatpush1.msra.mxu0 0.0
  %920 = vmatprep.subr.mxu0 0.0
  %921 = vmatpush1.msra.mxu0 0.0
  %922 = vmatprep.subr.mxu0 0.0
  %923 = vmatpush1.msra.mxu0 0.0
  %924 = vmatprep.subr.mxu0 0.0
  %925 = vmatpush1.msra.mxu0 0.0
  %926 = vmatprep.subr.mxu0 0.0
  %927 = vmatpush1.msra.mxu0 0.0
  %928 = vmatprep.subr.mxu0 0.0
  %929 = vmatpush1.msra.mxu0 0.0
  %930 = vmatprep.subr.mxu0 0.0
  %931 = vmatpush1.msra.mxu0 0.0
  %932 = vmatprep.subr.mxu0 0.0
  %933 = vmatpush1.msra.mxu0 0.0
  %934 = vmatprep.subr.mxu0 0.0
  %935 = vmatpush1.msra.mxu0 0.0
  %936 = vmatprep.subr.mxu0 0.0
  %937 = vmatpush1.msra.mxu0 0.0
  %938 = vmatprep.subr.mxu0 0.0
  %939 = vmatpush1.msra.mxu0 0.0
  %940 = vmatprep.subr.mxu0 0.0
  %941 = vmatpush1.msra.mxu0 0.0
  %942 = vmatprep.subr.mxu0 0.0
  %943 = vmatpush1.msra.mxu0 0.0
  %944 = vmatprep.subr.mxu0 0.0
  %945 = vmatpush1.msra.mxu0 0.0
  %946 = vmatprep.subr.mxu0 0.0
  %947 = vmatpush1.msra.mxu0 0.0
  %948 = vmatprep.subr.mxu0 0.0
  %949 = vmatpush1.msra.mxu0 0.0
  %950 = vmatprep.subr.mxu0 0.0
  %951 = vmatpush1.msra.mxu0 0.0
  %952 = vmatprep.subr.mxu0 0.0
  %953 = vmatpush1.msra.mxu0 0.0
  %954 = vmatprep.subr.mxu0 0.0
  %955 = vmatpush1.msra.mxu0 0.0
  %956 = vmatprep.subr.mxu0 0.0
  %957 = vmatpush1.msra.mxu0 0.0
  %958 = vmatprep.subr.mxu0 0.0
  %959 = vmatpush1.msra.mxu0 0.0
  %960 = vmatprep.subr.mxu0 0.0
  %961 = vmatpush1.msra.mxu0 0.0
  %962 = vmatprep.subr.mxu0 0.0
  %963 = vmatpush1.msra.mxu0 0.0
  %964 = vmatprep.subr.mxu0 0.0
  %965 = vmatpush1.msra.mxu0 0.0
  %966 = vmatprep.subr.mxu0 0.0
  %967 = vmatpush1.msra.mxu0 0.0
  %968 = vmatprep.mubr.f32.mxu0 0.0
  %969 = vmatmul.mubr.f32.gmra.mrb[0].mxu0 %v62
  %v970 = vpop.f32.mrb[0].mxu0
  %v971 = vadd.f32 0.0, %v970
  %v972 = vpop.f32.mrb[0].mxu0
  %v973 = vadd.f32 0.0, %v972
  %974 = vdwg.mxu0
  %975 = vmatprep.subr.mxu0 %v686
  %976 = vmatpush1.msra.mxu0 %v685
  %977 = vmatprep.subr.mxu0 0.0
  %978 = vmatpush1.msra.mxu0 0.0
  %979 = vmatprep.subr.mxu0 0.0
  %980 = vmatpush1.msra.mxu0 0.0
  %981 = vmatprep.subr.mxu0 0.0
  %982 = vmatpush1.msra.mxu0 0.0
  %983 = vmatprep.subr.mxu0 0.0
  %984 = vmatpush1.msra.mxu0 0.0
  %985 = vmatprep.subr.mxu0 0.0
  %986 = vmatpush1.msra.mxu0 0.0
  %987 = vmatprep.subr.mxu0 0.0
  %988 = vmatpush1.msra.mxu0 0.0
  %989 = vmatprep.subr.mxu0 0.0
  %990 = vmatpush1.msra.mxu0 0.0
  %991 = vmatprep.subr.mxu0 0.0
  %992 = vmatpush1.msra.mxu0 0.0
  %993 = vmatprep.subr.mxu0 0.0
  %994 = vmatpush1.msra.mxu0 0.0
  %995 = vmatprep.subr.mxu0 0.0
  %996 = vmatpush1.msra.mxu0 0.0
  %997 = vmatprep.subr.mxu0 0.0
  %998 = vmatpush1.msra.mxu0 0.0
  %999 = vmatprep.subr.mxu0 0.0
  %1000 = vmatpush1.msra.mxu0 0.0
  %1001 = vmatprep.subr.mxu0 0.0
  %1002 = vmatpush1.msra.mxu0 0.0
  %1003 = vmatprep.subr.mxu0 0.0
  %1004 = vmatpush1.msra.mxu0 0.0
  %1005 = vmatprep.subr.mxu0 0.0
  %1006 = vmatpush1.msra.mxu0 0.0
  %1007 = vmatprep.subr.mxu0 0.0
  %1008 = vmatpush1.msra.mxu0 0.0
  %1009 = vmatprep.subr.mxu0 0.0
  %1010 = vmatpush1.msra.mxu0 0.0
  %1011 = vmatprep.subr.mxu0 0.0
  %1012 = vmatpush1.msra.mxu0 0.0
  %1013 = vmatprep.subr.mxu0 0.0
  %1014 = vmatpush1.msra.mxu0 0.0
  %1015 = vmatprep.subr.mxu0 0.0
  %1016 = vmatpush1.msra.mxu0 0.0
  %1017 = vmatprep.subr.mxu0 0.0
  %1018 = vmatpush1.msra.mxu0 0.0
  %1019 = vmatprep.subr.mxu0 0.0
  %1020 = vmatpush1.msra.mxu0 0.0
  %1021 = vmatprep.subr.mxu0 0.0
  %1022 = vmatpush1.msra.mxu0 0.0
  %1023 = vmatprep.subr.mxu0 0.0
  %1024 = vmatpush1.msra.mxu0 0.0
  %1025 = vmatprep.subr.mxu0 0.0
  %1026 = vmatpush1.msra.mxu0 0.0
  %1027 = vmatprep.subr.mxu0 0.0
  %1028 = vmatpush1.msra.mxu0 0.0
  %1029 = vmatprep.subr.mxu0 0.0
  %1030 = vmatpush1.msra.mxu0 0.0
  %1031 = vmatprep.subr.mxu0 0.0
  %1032 = vmatpush1.msra.mxu0 0.0
  %1033 = vmatprep.subr.mxu0 0.0
  %1034 = vmatpush1.msra.mxu0 0.0
  %1035 = vmatprep.subr.mxu0 0.0
  %1036 = vmatpush1.msra.mxu0 0.0
  %1037 = vmatprep.subr.mxu0 0.0
  %1038 = vmatpush1.msra.mxu0 0.0
  %1039 = vmatprep.mubr.f32.mxu0 0.0
  %1040 = vmatmul.mubr.f32.gmra.mrb[0].mxu0 %v62
  %v1041 = vpop.f32.mrb[0].mxu0
  %v1042 = vadd.f32 0.0, %v1041
  %v1043 = vpop.f32.mrb[0].mxu0
  %v1044 = vadd.f32 0.0, %v1043
  %1045 = vdwg.mxu0
  %1046 = vmatprep.subr.mxu0 %v688
  %1047 = vmatpush1.msra.mxu0 %v687
  %1048 = vmatprep.subr.mxu0 0.0
  %1049 = vmatpush1.msra.mxu0 0.0
  %1050 = vmatprep.subr.mxu0 0.0
  %1051 = vmatpush1.msra.mxu0 0.0
  %1052 = vmatprep.subr.mxu0 0.0
  %1053 = vmatpush1.msra.mxu0 0.0
  %1054 = vmatprep.subr.mxu0 0.0
  %1055 = vmatpush1.msra.mxu0 0.0
  %1056 = vmatprep.subr.mxu0 0.0
  %1057 = vmatpush1.msra.mxu0 0.0
  %1058 = vmatprep.subr.mxu0 0.0
  %1059 = vmatpush1.msra.mxu0 0.0
  %1060 = vmatprep.subr.mxu0 0.0
  %1061 = vmatpush1.msra.mxu0 0.0
  %1062 = vmatprep.subr.mxu0 0.0
  %1063 = vmatpush1.msra.mxu0 0.0
  %1064 = vmatprep.subr.mxu0 0.0
  %1065 = vmatpush1.msra.mxu0 0.0
  %1066 = vmatprep.subr.mxu0 0.0
  %1067 = vmatpush1.msra.mxu0 0.0
  %1068 = vmatprep.subr.mxu0 0.0
  %1069 = vmatpush1.msra.mxu0 0.0
  %1070 = vmatprep.subr.mxu0 0.0
  %1071 = vmatpush1.msra.mxu0 0.0
  %1072 = vmatprep.subr.mxu0 0.0
  %1073 = vmatpush1.msra.mxu0 0.0
  %1074 = vmatprep.subr.mxu0 0.0
  %1075 = vmatpush1.msra.mxu0 0.0
  %1076 = vmatprep.subr.mxu0 0.0
  %1077 = vmatpush1.msra.mxu0 0.0
  %1078 = vmatprep.subr.mxu0 0.0
  %1079 = vmatpush1.msra.mxu0 0.0
  %1080 = vmatprep.subr.mxu0 0.0
  %1081 = vmatpush1.msra.mxu0 0.0
  %1082 = vmatprep.subr.mxu0 0.0
  %1083 = vmatpush1.msra.mxu0 0.0
  %1084 = vmatprep.subr.mxu0 0.0
  %1085 = vmatpush1.msra.mxu0 0.0
  %1086 = vmatprep.subr.mxu0 0.0
  %1087 = vmatpush1.msra.mxu0 0.0
  %1088 = vmatprep.subr.mxu0 0.0
  %1089 = vmatpush1.msra.mxu0 0.0
  %1090 = vmatprep.subr.mxu0 0.0
  %1091 = vmatpush1.msra.mxu0 0.0
  %1092 = vmatprep.subr.mxu0 0.0
  %1093 = vmatpush1.msra.mxu0 0.0
  %1094 = vmatprep.subr.mxu0 0.0
  %1095 = vmatpush1.msra.mxu0 0.0
  %1096 = vmatprep.subr.mxu0 0.0
  %1097 = vmatpush1.msra.mxu0 0.0
  %1098 = vmatprep.subr.mxu0 0.0
  %1099 = vmatpush1.msra.mxu0 0.0
  %1100 = vmatprep.subr.mxu0 0.0
  %1101 = vmatpush1.msra.mxu0 0.0
  %1102 = vmatprep.subr.mxu0 0.0
  %1103 = vmatpush1.msra.mxu0 0.0
  %1104 = vmatprep.subr.mxu0 0.0
  %1105 = vmatpush1.msra.mxu0 0.0
  %1106 = vmatprep.subr.mxu0 0.0
  %1107 = vmatpush1.msra.mxu0 0.0
  %1108 = vmatprep.subr.mxu0 0.0
  %1109 = vmatpush1.msra.mxu0 0.0
  %1110 = vmatprep.mubr.f32.mxu0 0.0
  %1111 = vmatmul.mubr.f32.gmra.mrb[0].mxu0 %v62
  %v1112 = vpop.f32.mrb[0].mxu0
  %v1113 = vadd.f32 0.0, %v1112
  %v1114 = vpop.f32.mrb[0].mxu0
  %v1115 = vadd.f32 0.0, %v1114
  %1116 = vdwg.mxu0
  %1117 = vmatprep.subr.mxu0 %v690
  %1118 = vmatpush1.msra.mxu0 %v689
  %1119 = vmatprep.subr.mxu0 0.0
  %1120 = vmatpush1.msra.mxu0 0.0
  %1121 = vmatprep.subr.mxu0 0.0
  %1122 = vmatpush1.msra.mxu0 0.0
  %1123 = vmatprep.subr.mxu0 0.0
  %1124 = vmatpush1.msra.mxu0 0.0
  %1125 = vmatprep.subr.mxu0 0.0
  %1126 = vmatpush1.msra.mxu0 0.0
  %1127 = vmatprep.subr.mxu0 0.0
  %1128 = vmatpush1.msra.mxu0 0.0
  %1129 = vmatprep.subr.mxu0 0.0
  %1130 = vmatpush1.msra.mxu0 0.0
  %1131 = vmatprep.subr.mxu0 0.0
  %1132 = vmatpush1.msra.mxu0 0.0
  %1133 = vmatprep.subr.mxu0 0.0
  %1134 = vmatpush1.msra.mxu0 0.0
  %1135 = vmatprep.subr.mxu0 0.0
  %1136 = vmatpush1.msra.mxu0 0.0
  %1137 = vmatprep.subr.mxu0 0.0
  %1138 = vmatpush1.msra.mxu0 0.0
  %1139 = vmatprep.subr.mxu0 0.0
  %1140 = vmatpush1.msra.mxu0 0.0
  %1141 = vmatprep.subr.mxu0 0.0
  %1142 = vmatpush1.msra.mxu0 0.0
  %1143 = vmatprep.subr.mxu0 0.0
  %1144 = vmatpush1.msra.mxu0 0.0
  %1145 = vmatprep.subr.mxu0 0.0
  %1146 = vmatpush1.msra.mxu0 0.0
  %1147 = vmatprep.subr.mxu0 0.0
  %1148 = vmatpush1.msra.mxu0 0.0
  %1149 = vmatprep.subr.mxu0 0.0
  %1150 = vmatpush1.msra.mxu0 0.0
  %1151 = vmatprep.subr.mxu0 0.0
  %1152 = vmatpush1.msra.mxu0 0.0
  %1153 = vmatprep.subr.mxu0 0.0
  %1154 = vmatpush1.msra.mxu0 0.0
  %1155 = vmatprep.subr.mxu0 0.0
  %1156 = vmatpush1.msra.mxu0 0.0
  %1157 = vmatprep.subr.mxu0 0.0
  %1158 = vmatpush1.msra.mxu0 0.0
  %1159 = vmatprep.subr.mxu0 0.0
  %1160 = vmatpush1.msra.mxu0 0.0
  %1161 = vmatprep.subr.mxu0 0.0
  %1162 = vmatpush1.msra.mxu0 0.0
  %1163 = vmatprep.subr.mxu0 0.0
  %1164 = vmatpush1.msra.mxu0 0.0
  %1165 = vmatprep.subr.mxu0 0.0
  %1166 = vmatpush1.msra.mxu0 0.0
  %1167 = vmatprep.subr.mxu0 0.0
  %1168 = vmatpush1.msra.mxu0 0.0
  %1169 = vmatprep.subr.mxu0 0.0
  %1170 = vmatpush1.msra.mxu0 0.0
  %1171 = vmatprep.subr.mxu0 0.0
  %1172 = vmatpush1.msra.mxu0 0.0
  %1173 = vmatprep.subr.mxu0 0.0
  %1174 = vmatpush1.msra.mxu0 0.0
  %1175 = vmatprep.subr.mxu0 0.0
  %1176 = vmatpush1.msra.mxu0 0.0
  %1177 = vmatprep.subr.mxu0 0.0
  %1178 = vmatpush1.msra.mxu0 0.0
  %1179 = vmatprep.subr.mxu0 0.0
  %1180 = vmatpush1.msra.mxu0 0.0
  %1181 = vmatprep.mubr.f32.mxu0 0.0
  %1182 = vmatmul.mubr.f32.gmra.mrb[0].mxu0 %v62
  %v1183 = vpop.f32.mrb[0].mxu0
  %v1184 = vadd.f32 0.0, %v1183
  %v1185 = vpop.f32.mrb[0].mxu0
  %v1186 = vadd.f32 0.0, %v1185
  %1187 = vdwg.mxu0
  %v1188 = vadd.f32 %v758, %v760
  %v1189 = vadd.f32 %v1188, %v829
  %v1190 = vadd.f32 %v1189, %v831
  %v1191 = vadd.f32 %v1190, %v900
  %v1192 = vadd.f32 %v1191, %v902
  %v1193 = vadd.f32 %v1192, %v971
  %v1194 = vadd.f32 %v1193, %v973
  %v1195 = vadd.f32 %v1194, %v1042
  %v1196 = vadd.f32 %v1195, %v1044
  %v1197 = vadd.f32 %v1196, %v1113
  %v1198 = vadd.f32 %v1197, %v1115
  %v1199 = vadd.f32 %v1198, %v1184
  %v1200 = vadd.f32 %v1199, %v1186
  %1201 = vadd.xlane.f32.xlu0 %v1200
  %v1202 = vpop.xlane.xlu0 %1201
  %v1203 = vmul.f32 %v1202, 0.0009765625
  %v1204 = vld [vmem:[%s4] sm:$0xff]
  %v1205 = vadd.f32 %v1203, 1e-05
  %v1206 = vrsqrt.pop %v1205
  %v1207 = vmul.f32 %v1204, %v1206
  %1209 = vset.pattern.permute.xlu0 0
  %1210 = vperm.xlu0 %1209, %v1207
  %v1211 = vpop.permute.xlu0 %1210
  %v1213 = vmul.f32 %v663, %v1211
  %v1214 = vmul.f32 %v664, %v1211
  %v1215 = vmul.f32 %v665, %v1211
  %v1216 = vmul.f32 %v666, %v1211
  %v1217 = vmul.f32 %v667, %v1211
  %v1218 = vmul.f32 %v668, %v1211
  %v1219 = vmul.f32 %v669, %v1211
  %v1220 = vmul.f32 %v670, %v1211
  %v1221 = vmul.f32 %v671, %v1211
  %v1222 = vmul.f32 %v672, %v1211
  %v1223 = vmul.f32 %v673, %v1211
  %v1224 = vmul.f32 %v674, %v1211
  %v1225 = vmul.f32 %v675, %v1211
  %v1226 = vmul.f32 %v676, %v1211
  %v1227 = vld [vmem:[%s5] sm:$0xff]
  %1229 = vset.pattern.permute.xlu0 0
  %1230 = vperm.xlu0 %1229, %v1227
  %v1231 = vpop.permute.xlu0 %1230
  %v1233 = vadd.f32 %v1213, %v1231
  %v1234 = vadd.f32 %v1214, %v1231
  %v1235 = vadd.f32 %v1215, %v1231
  %v1236 = vadd.f32 %v1216, %v1231
  %v1237 = vadd.f32 %v1217, %v1231
  %v1238 = vadd.f32 %v1218, %v1231
  %v1239 = vadd.f32 %v1219, %v1231
  %v1240 = vadd.f32 %v1220, %v1231
  %v1241 = vadd.f32 %v1221, %v1231
  %v1242 = vadd.f32 %v1222, %v1231
  %v1243 = vadd.f32 %v1223, %v1231
  %v1244 = vadd.f32 %v1224, %v1231
  %v1245 = vadd.f32 %v1225, %v1231
  %v1246 = vadd.f32 %v1226, %v1231
  %vm1247 = vcmp.ge.f32.partialorder %v1233, 0.0
  %vm1248 = vcmp.ge.f32.partialorder %v1234, 0.0
  %vm1249 = vcmp.ge.f32.partialorder %v1235, 0.0
  %vm1250 = vcmp.ge.f32.partialorder %v1236, 0.0
  %vm1251 = vcmp.ge.f32.partialorder %v1237, 0.0
  %vm1252 = vcmp.ge.f32.partialorder %v1238, 0.0
  %vm1253 = vcmp.ge.f32.partialorder %v1239, 0.0
  %vm1254 = vcmp.ge.f32.partialorder %v1240, 0.0
  %vm1255 = vcmp.ge.f32.partialorder %v1241, 0.0
  %vm1256 = vcmp.ge.f32.partialorder %v1242, 0.0
  %vm1257 = vcmp.ge.f32.partialorder %v1243, 0.0
  %vm1258 = vcmp.ge.f32.partialorder %v1244, 0.0
  %vm1259 = vcmp.ge.f32.partialorder %v1245, 0.0
  %vm1260 = vcmp.ge.f32.partialorder %v1246, 0.0
  %v1261 = vmul.f32 %v1233, 0.01
  %v1262 = vmul.f32 %v1234, 0.01
  %v1263 = vmul.f32 %v1235, 0.01
  %v1264 = vmul.f32 %v1236, 0.01
  %v1265 = vmul.f32 %v1237, 0.01
  %v1266 = vmul.f32 %v1238, 0.01
  %v1267 = vmul.f32 %v1239, 0.01
  %v1268 = vmul.f32 %v1240, 0.01
  %v1269 = vmul.f32 %v1241, 0.01
  %v1270 = vmul.f32 %v1242, 0.01
  %v1271 = vmul.f32 %v1243, 0.01
  %v1272 = vmul.f32 %v1244, 0.01
  %v1273 = vmul.f32 %v1245, 0.01
  %v1274 = vmul.f32 %v1246, 0.01
  %v1275 = vsel %vm1247, %v1233, %v1261
  %v1276 = vsel %vm1248, %v1234, %v1262
  %v1277 = vsel %vm1249, %v1235, %v1263
  %v1278 = vsel %vm1250, %v1236, %v1264
  %v1279 = vsel %vm1251, %v1237, %v1265
  %v1280 = vsel %vm1252, %v1238, %v1266
  %v1281 = vsel %vm1253, %v1239, %v1267
  %v1282 = vsel %vm1254, %v1240, %v1268
  %v1283 = vsel %vm1255, %v1241, %v1269
  %v1284 = vsel %vm1256, %v1242, %v1270
  %v1285 = vsel %vm1257, %v1243, %v1271
  %v1286 = vsel %vm1258, %v1244, %v1272
  %v1287 = vsel %vm1259, %v1245, %v1273
  %v1288 = vsel %vm1260, %v1246, %v1274
  %v1289 = vmul.f32 %v1275, %v596
  %v1290 = vmul.f32 %v1276, %v600
  %v1291 = vmul.f32 %v1277, %v604
  %v1292 = vmul.f32 %v1278, %v608
  %v1293 = vmul.f32 %v1279, %v612
  %v1294 = vmul.f32 %v1280, %v616
  %v1295 = vmul.f32 %v1281, %v620
  %v1296 = vmul.f32 %v1282, %v624
  %v1297 = vmul.f32 %v1283, %v628
  %v1298 = vmul.f32 %v1284, %v632
  %v1299 = vmul.f32 %v1285, %v636
  %v1300 = vmul.f32 %v1286, %v640
  %v1301 = vmul.f32 %v1287, %v644
  %v1302 = vmul.f32 %v1288, %v648
  %1303 = vst [vmem:[#allocation2] sm:$0xff] %v1289
  %1304 = vst [vmem:[#allocation2 + $0x8] sm:$0xff] %v1290
  %1305 = vst [vmem:[#allocation2 + $0x10] sm:$0xff] %v1291
  %1306 = vst [vmem:[#allocation2 + $0x18] sm:$0xff] %v1292
  %1307 = vst [vmem:[#allocation2 + $0x20] sm:$0xff] %v1293
  %1308 = vst [vmem:[#allocation2 + $0x28] sm:$0xff] %v1294
  %1309 = vst [vmem:[#allocation2 + $0x30] sm:$0xff] %v1295
  %1310 = vst [vmem:[#allocation2 + $0x38] sm:$0xff] %v1296
  %1311 = vst [vmem:[#allocation2 + $0x40] sm:$0xff] %v1297
  %1312 = vrot.lane.b32.xlu0 %v1289, 126
  %v1313 = vpop.permute.xlu0 %1312
  %1314 = vrot.lane.b32.xlu0 %v1290, 126
  %v1315 = vpop.permute.xlu0 %1314
  %1316 = vrot.lane.b32.xlu0 %v1291, 126
  %v1317 = vpop.permute.xlu0 %1316
  %1318 = vrot.lane.b32.xlu0 %v1292, 126
  %v1319 = vpop.permute.xlu0 %1318
  %1320 = vrot.lane.b32.xlu0 %v1293, 126
  %v1321 = vpop.permute.xlu0 %1320
  %1322 = vrot.lane.b32.xlu0 %v1294, 126
  %v1323 = vpop.permute.xlu0 %1322
  %1324 = vrot.lane.b32.xlu0 %v1295, 126
  %v1325 = vpop.permute.xlu0 %1324
  %1326 = vrot.lane.b32.xlu0 %v1296, 126
  %v1327 = vpop.permute.xlu0 %1326
  %1328 = vrot.lane.b32.xlu0 %v1297, 126
  %v1329 = vpop.permute.xlu0 %1328
  %1330 = vrot.lane.b32.xlu0 %v1298, 126
  %v1331 = vpop.permute.xlu0 %1330
  %v1332 = vlaneseq
  %v1333 = vand.u32 %v1332, 127
  %vm1334 = vcmp.lt.s32.totalorder %v1333, 126
  %v1335 = vsel %vm1334, %v1329, %v1331
  %v1336 = vsel %vm1334, %v1327, %v1329
  %v1337 = vsel %vm1334, %v1325, %v1327
  %v1338 = vsel %vm1334, %v1323, %v1325
  %v1339 = vsel %vm1334, %v1321, %v1323
  %v1340 = vsel %vm1334, %v1319, %v1321
  %v1341 = vsel %vm1334, %v1317, %v1319
  %v1342 = vsel %vm1334, %v1315, %v1317
  %v1343 = vsel %vm1334, %v1313, %v1315
  %1344 = vst [vmem:[#allocation2 + $0x48] sm:$0xff] %v1343
  %1345 = vst [vmem:[#allocation2 + $0x50] sm:$0xff] %v1342
  %1346 = vst [vmem:[#allocation2 + $0x58] sm:$0xff] %v1341
  %1347 = vst [vmem:[#allocation2 + $0x60] sm:$0xff] %v1340
  %1348 = vst [vmem:[#allocation2 + $0x68] sm:$0xff] %v1339
  %1349 = vst [vmem:[#allocation2 + $0x70] sm:$0xff] %v1338
  %1350 = vst [vmem:[#allocation2 + $0x78] sm:$0xff] %v1337
  %1351 = vst [vmem:[#allocation2 + $0x80] sm:$0xff] %v1336
  %1352 = vst [vmem:[#allocation2 + $0x88] sm:$0xff] %v1335
  %1353 = vrot.lane.b32.xlu0 %v1289, 124
  %v1354 = vpop.permute.xlu0 %1353
  %1355 = vrot.lane.b32.xlu0 %v1290, 124
  %v1356 = vpop.permute.xlu0 %1355
  %1357 = vrot.lane.b32.xlu0 %v1291, 124
  %v1358 = vpop.permute.xlu0 %1357
  %1359 = vrot.lane.b32.xlu0 %v1292, 124
  %v1360 = vpop.permute.xlu0 %1359
  %1361 = vrot.lane.b32.xlu0 %v1293, 124
  %v1362 = vpop.permute.xlu0 %1361
  %1363 = vrot.lane.b32.xlu0 %v1294, 124
  %v1364 = vpop.permute.xlu0 %1363
  %1365 = vrot.lane.b32.xlu0 %v1295, 124
  %v1366 = vpop.permute.xlu0 %1365
  %1367 = vrot.lane.b32.xlu0 %v1296, 124
  %v1368 = vpop.permute.xlu0 %1367
  %1369 = vrot.lane.b32.xlu0 %v1297, 124
  %v1370 = vpop.permute.xlu0 %1369
  %1371 = vrot.lane.b32.xlu0 %v1298, 124
  %v1372 = vpop.permute.xlu0 %1371
  %vm1373 = vcmp.lt.s32.totalorder %v1333, 124
  %v1374 = vsel %vm1373, %v1370, %v1372
  %v1375 = vsel %vm1373, %v1368, %v1370
  %v1376 = vsel %vm1373, %v1366, %v1368
  %v1377 = vsel %vm1373, %v1364, %v1366
  %v1378 = vsel %vm1373, %v1362, %v1364
  %v1379 = vsel %vm1373, %v1360, %v1362
  %v1380 = vsel %vm1373, %v1358, %v1360
  %v1381 = vsel %vm1373, %v1356, %v1358
  %v1382 = vsel %vm1373, %v1354, %v1356
  %1383 = vst [vmem:[#allocation2 + $0x90] sm:$0xff] %v1382
  %1384 = vst [vmem:[#allocation2 + $0x98] sm:$0xff] %v1381
  %1385 = vst [vmem:[#allocation2 + $0xa0] sm:$0xff] %v1380
  %1386 = vst [vmem:[#allocation2 + $0xa8] sm:$0xff] %v1379
  %1387 = vst [vmem:[#allocation2 + $0xb0] sm:$0xff] %v1378
  %1388 = vst [vmem:[#allocation2 + $0xb8] sm:$0xff] %v1377
  %1389 = vst [vmem:[#allocation2 + $0xc0] sm:$0xff] %v1376
  %1390 = vst [vmem:[#allocation2 + $0xc8] sm:$0xff] %v1375
  %1391 = vst [vmem:[#allocation2 + $0xd0] sm:$0xff] %v1374
  %1392 = vrot.lane.b32.xlu0 %v1289, 104
  %v1393 = vpop.permute.xlu0 %1392
  %1394 = vrot.lane.b32.xlu0 %v1290, 104
  %v1395 = vpop.permute.xlu0 %1394
  %1396 = vrot.lane.b32.xlu0 %v1291, 104
  %v1397 = vpop.permute.xlu0 %1396
  %1398 = vrot.lane.b32.xlu0 %v1292, 104
  %v1399 = vpop.permute.xlu0 %1398
  %1400 = vrot.lane.b32.xlu0 %v1293, 104
  %v1401 = vpop.permute.xlu0 %1400
  %1402 = vrot.lane.b32.xlu0 %v1294, 104
  %v1403 = vpop.permute.xlu0 %1402
  %1404 = vrot.lane.b32.xlu0 %v1295, 104
  %v1405 = vpop.permute.xlu0 %1404
  %1406 = vrot.lane.b32.xlu0 %v1296, 104
  %v1407 = vpop.permute.xlu0 %1406
  %1408 = vrot.lane.b32.xlu0 %v1297, 104
  %v1409 = vpop.permute.xlu0 %1408
  %1410 = vrot.lane.b32.xlu0 %v1298, 104
  %v1411 = vpop.permute.xlu0 %1410
  %vm1412 = vcmp.lt.s32.totalorder %v1333, 104
  %v1413 = vsel %vm1412, %v1409, %v1411
  %v1414 = vsel %vm1412, %v1407, %v1409
  %v1415 = vsel %vm1412, %v1405, %v1407
  %v1416 = vsel %vm1412, %v1403, %v1405
  %v1417 = vsel %vm1412, %v1401, %v1403
  %v1418 = vsel %vm1412, %v1399, %v1401
  %v1419 = vsel %vm1412, %v1397, %v1399
  %v1420 = vsel %vm1412, %v1395, %v1397
  %v1421 = vsel %vm1412, %v1393, %v1395
  %1422 = vst [vmem:[#allocation2 + $0xd8] sm:$0xff] %v1421
  %1423 = vst [vmem:[#allocation2 + $0xe0] sm:$0xff] %v1420
  %1424 = vst [vmem:[#allocation2 + $0xe8] sm:$0xff] %v1419
  %1425 = vst [vmem:[#allocation2 + $0xf0] sm:$0xff] %v1418
  %1426 = vst [vmem:[#allocation2 + $0xf8] sm:$0xff] %v1417
  %1427 = vst [vmem:[#allocation2 + $0x100] sm:$0xff] %v1416
  %1428 = vst [vmem:[#allocation2 + $0x108] sm:$0xff] %v1415
  %1429 = vst [vmem:[#allocation2 + $0x110] sm:$0xff] %v1414
  %1430 = vst [vmem:[#allocation2 + $0x118] sm:$0xff] %v1413
  %1431 = vrot.lane.b32.xlu0 %v1289, 102
  %v1432 = vpop.permute.xlu0 %1431
  %1433 = vrot.lane.b32.xlu0 %v1290, 102
  %v1434 = vpop.permute.xlu0 %1433
  %1435 = vrot.lane.b32.xlu0 %v1291, 102
  %v1436 = vpop.permute.xlu0 %1435
  %1437 = vrot.lane.b32.xlu0 %v1292, 102
  %v1438 = vpop.permute.xlu0 %1437
  %1439 = vrot.lane.b32.xlu0 %v1293, 102
  %v1440 = vpop.permute.xlu0 %1439
  %1441 = vrot.lane.b32.xlu0 %v1294, 102
  %v1442 = vpop.permute.xlu0 %1441
  %1443 = vrot.lane.b32.xlu0 %v1295, 102
  %v1444 = vpop.permute.xlu0 %1443
  %1445 = vrot.lane.b32.xlu0 %v1296, 102
  %v1446 = vpop.permute.xlu0 %1445
  %1447 = vrot.lane.b32.xlu0 %v1297, 102
  %v1448 = vpop.permute.xlu0 %1447
  %1449 = vrot.lane.b32.xlu0 %v1298, 102
  %v1450 = vpop.permute.xlu0 %1449
  %vm1451 = vcmp.lt.s32.totalorder %v1333, 102
  %v1452 = vsel %vm1451, %v1448, %v1450
  %v1453 = vsel %vm1451, %v1446, %v1448
  %v1454 = vsel %vm1451, %v1444, %v1446
  %v1455 = vsel %vm1451, %v1442, %v1444
  %v1456 = vsel %vm1451, %v1440, %v1442
  %v1457 = vsel %vm1451, %v1438, %v1440
  %v1458 = vsel %vm1451, %v1436, %v1438
  %v1459 = vsel %vm1451, %v1434, %v1436
  %v1460 = vsel %vm1451, %v1432, %v1434
  %1461 = vst [vmem:[#allocation2 + $0x120] sm:$0xff] %v1460
  %1462 = vst [vmem:[#allocation2 + $0x128] sm:$0xff] %v1459
  %1463 = vst [vmem:[#allocation2 + $0x130] sm:$0xff] %v1458
  %1464 = vst [vmem:[#allocation2 + $0x138] sm:$0xff] %v1457
  %1465 = vst [vmem:[#allocation2 + $0x140] sm:$0xff] %v1456
  %1466 = vst [vmem:[#allocation2 + $0x148] sm:$0xff] %v1455
  %1467 = vst [vmem:[#allocation2 + $0x150] sm:$0xff] %v1454
  %1468 = vst [vmem:[#allocation2 + $0x158] sm:$0xff] %v1453
  %1469 = vst [vmem:[#allocation2 + $0x160] sm:$0xff] %v1452
  %1470 = vrot.lane.b32.xlu0 %v1289, 100
  %v1471 = vpop.permute.xlu0 %1470
  %1472 = vrot.lane.b32.xlu0 %v1290, 100
  %v1473 = vpop.permute.xlu0 %1472
  %1474 = vrot.lane.b32.xlu0 %v1291, 100
  %v1475 = vpop.permute.xlu0 %1474
  %1476 = vrot.lane.b32.xlu0 %v1292, 100
  %v1477 = vpop.permute.xlu0 %1476
  %1478 = vrot.lane.b32.xlu0 %v1293, 100
  %v1479 = vpop.permute.xlu0 %1478
  %1480 = vrot.lane.b32.xlu0 %v1294, 100
  %v1481 = vpop.permute.xlu0 %1480
  %1482 = vrot.lane.b32.xlu0 %v1295, 100
  %v1483 = vpop.permute.xlu0 %1482
  %1484 = vrot.lane.b32.xlu0 %v1296, 100
  %v1485 = vpop.permute.xlu0 %1484
  %1486 = vrot.lane.b32.xlu0 %v1297, 100
  %v1487 = vpop.permute.xlu0 %1486
  %1488 = vrot.lane.b32.xlu0 %v1298, 100
  %v1489 = vpop.permute.xlu0 %1488
  %vm1490 = vcmp.lt.s32.totalorder %v1333, 100
  %v1491 = vsel %vm1490, %v1487, %v1489
  %v1492 = vsel %vm1490, %v1485, %v1487
  %v1493 = vsel %vm1490, %v1483, %v1485
  %v1494 = vsel %vm1490, %v1481, %v1483
  %v1495 = vsel %vm1490, %v1479, %v1481
  %v1496 = vsel %vm1490, %v1477, %v1479
  %v1497 = vsel %vm1490, %v1475, %v1477
  %v1498 = vsel %vm1490, %v1473, %v1475
  %v1499 = vsel %vm1490, %v1471, %v1473
  %1500 = vst [vmem:[#allocation2 + $0x168] sm:$0xff] %v1499
  %1501 = vst [vmem:[#allocation2 + $0x170] sm:$0xff] %v1498
  %1502 = vst [vmem:[#allocation2 + $0x178] sm:$0xff] %v1497
  %1503 = vst [vmem:[#allocation2 + $0x180] sm:$0xff] %v1496
  %1504 = vst [vmem:[#allocation2 + $0x188] sm:$0xff] %v1495
  %1505 = vst [vmem:[#allocation2 + $0x190] sm:$0xff] %v1494
  %1506 = vst [vmem:[#allocation2 + $0x198] sm:$0xff] %v1493
  %1507 = vst [vmem:[#allocation2 + $0x1a0] sm:$0xff] %v1492
  %1508 = vst [vmem:[#allocation2 + $0x1a8] sm:$0xff] %v1491
  %1509 = vrot.lane.b32.xlu0 %v1289, 80
  %v1510 = vpop.permute.xlu0 %1509
  %1511 = vrot.lane.b32.xlu0 %v1290, 80
  %v1512 = vpop.permute.xlu0 %1511
  %1513 = vrot.lane.b32.xlu0 %v1291, 80
  %v1514 = vpop.permute.xlu0 %1513
  %1515 = vrot.lane.b32.xlu0 %v1292, 80
  %v1516 = vpop.permute.xlu0 %1515
  %1517 = vrot.lane.b32.xlu0 %v1293, 80
  %v1518 = vpop.permute.xlu0 %1517
  %1519 = vrot.lane.b32.xlu0 %v1294, 80
  %v1520 = vpop.permute.xlu0 %1519
  %1521 = vrot.lane.b32.xlu0 %v1295, 80
  %v1522 = vpop.permute.xlu0 %1521
  %1523 = vrot.lane.b32.xlu0 %v1296, 80
  %v1524 = vpop.permute.xlu0 %1523
  %1525 = vrot.lane.b32.xlu0 %v1297, 80
  %v1526 = vpop.permute.xlu0 %1525
  %1527 = vrot.lane.b32.xlu0 %v1298, 80
  %v1528 = vpop.permute.xlu0 %1527
  %vm1529 = vcmp.lt.s32.totalorder %v1333, 80
  %v1530 = vsel %vm1529, %v1526, %v1528
  %v1531 = vsel %vm1529, %v1524, %v1526
  %v1532 = vsel %vm1529, %v1522, %v1524
  %v1533 = vsel %vm1529, %v1520, %v1522
  %v1534 = vsel %vm1529, %v1518, %v1520
  %v1535 = vsel %vm1529, %v1516, %v1518
  %v1536 = vsel %vm1529, %v1514, %v1516
  %v1537 = vsel %vm1529, %v1512, %v1514
  %v1538 = vsel %vm1529, %v1510, %v1512
  %1539 = vst [vmem:[#allocation2 + $0x1b0] sm:$0xff] %v1538
  %1540 = vst [vmem:[#allocation2 + $0x1b8] sm:$0xff] %v1537
  %1541 = vst [vmem:[#allocation2 + $0x1c0] sm:$0xff] %v1536
  %1542 = vst [vmem:[#allocation2 + $0x1c8] sm:$0xff] %v1535
  %1543 = vst [vmem:[#allocation2 + $0x1d0] sm:$0xff] %v1534
  %1544 = vst [vmem:[#allocation2 + $0x1d8] sm:$0xff] %v1533
  %1545 = vst [vmem:[#allocation2 + $0x1e0] sm:$0xff] %v1532
  %1546 = vst [vmem:[#allocation2 + $0x1e8] sm:$0xff] %v1531
  %1547 = vst [vmem:[#allocation2 + $0x1f0] sm:$0xff] %v1530
  %1548 = vrot.lane.b32.xlu0 %v1289, 78
  %v1549 = vpop.permute.xlu0 %1548
  %1550 = vrot.lane.b32.xlu0 %v1290, 78
  %v1551 = vpop.permute.xlu0 %1550
  %1552 = vrot.lane.b32.xlu0 %v1291, 78
  %v1553 = vpop.permute.xlu0 %1552
  %1554 = vrot.lane.b32.xlu0 %v1292, 78
  %v1555 = vpop.permute.xlu0 %1554
  %1556 = vrot.lane.b32.xlu0 %v1293, 78
  %v1557 = vpop.permute.xlu0 %1556
  %1558 = vrot.lane.b32.xlu0 %v1294, 78
  %v1559 = vpop.permute.xlu0 %1558
  %1560 = vrot.lane.b32.xlu0 %v1295, 78
  %v1561 = vpop.permute.xlu0 %1560
  %1562 = vrot.lane.b32.xlu0 %v1296, 78
  %v1563 = vpop.permute.xlu0 %1562
  %1564 = vrot.lane.b32.xlu0 %v1297, 78
  %v1565 = vpop.permute.xlu0 %1564
  %1566 = vrot.lane.b32.xlu0 %v1298, 78
  %v1567 = vpop.permute.xlu0 %1566
  %vm1568 = vcmp.lt.s32.totalorder %v1333, 78
  %v1569 = vsel %vm1568, %v1565, %v1567
  %v1570 = vsel %vm1568, %v1563, %v1565
  %v1571 = vsel %vm1568, %v1561, %v1563
  %v1572 = vsel %vm1568, %v1559, %v1561
  %v1573 = vsel %vm1568, %v1557, %v1559
  %v1574 = vsel %vm1568, %v1555, %v1557
  %v1575 = vsel %vm1568, %v1553, %v1555
  %v1576 = vsel %vm1568, %v1551, %v1553
  %v1577 = vsel %vm1568, %v1549, %v1551
  %1578 = vst [vmem:[#allocation2 + $0x1f8] sm:$0xff] %v1577
  %1579 = vst [vmem:[#allocation2 + $0x200] sm:$0xff] %v1576
  %1580 = vst [vmem:[#allocation2 + $0x208] sm:$0xff] %v1575
  %1581 = vst [vmem:[#allocation2 + $0x210] sm:$0xff] %v1574
  %1582 = vst [vmem:[#allocation2 + $0x218] sm:$0xff] %v1573
  %1583 = vst [vmem:[#allocation2 + $0x220] sm:$0xff] %v1572
  %1584 = vst [vmem:[#allocation2 + $0x228] sm:$0xff] %v1571
  %1585 = vst [vmem:[#allocation2 + $0x230] sm:$0xff] %v1570
  %1586 = vst [vmem:[#allocation2 + $0x238] sm:$0xff] %v1569
  %1587 = vrot.lane.b32.xlu0 %v1289, 76
  %v1588 = vpop.permute.xlu0 %1587
  %1589 = vrot.lane.b32.xlu0 %v1290, 76
  %v1590 = vpop.permute.xlu0 %1589
  %1591 = vrot.lane.b32.xlu0 %v1291, 76
  %v1592 = vpop.permute.xlu0 %1591
  %1593 = vrot.lane.b32.xlu0 %v1292, 76
  %v1594 = vpop.permute.xlu0 %1593
  %1595 = vrot.lane.b32.xlu0 %v1293, 76
  %v1596 = vpop.permute.xlu0 %1595
  %1597 = vrot.lane.b32.xlu0 %v1294, 76
  %v1598 = vpop.permute.xlu0 %1597
  %1599 = vrot.lane.b32.xlu0 %v1295, 76
  %v1600 = vpop.permute.xlu0 %1599
  %1601 = vrot.lane.b32.xlu0 %v1296, 76
  %v1602 = vpop.permute.xlu0 %1601
  %1603 = vrot.lane.b32.xlu0 %v1297, 76
  %v1604 = vpop.permute.xlu0 %1603
  %1605 = vrot.lane.b32.xlu0 %v1298, 76
  %v1606 = vpop.permute.xlu0 %1605
  %vm1607 = vcmp.lt.s32.totalorder %v1333, 76
  %v1608 = vsel %vm1607, %v1604, %v1606
  %v1609 = vsel %vm1607, %v1602, %v1604
  %v1610 = vsel %vm1607, %v1600, %v1602
  %v1611 = vsel %vm1607, %v1598, %v1600
  %v1612 = vsel %vm1607, %v1596, %v1598
  %v1613 = vsel %vm1607, %v1594, %v1596
  %v1614 = vsel %vm1607, %v1592, %v1594
  %v1615 = vsel %vm1607, %v1590, %v1592
  %v1616 = vsel %vm1607, %v1588, %v1590
  %1617 = vst [vmem:[#allocation2 + $0x240] sm:$0xff] %v1616
  %1618 = vst [vmem:[#allocation2 + $0x248] sm:$0xff] %v1615
  %1619 = vst [vmem:[#allocation2 + $0x250] sm:$0xff] %v1614
  %1620 = vst [vmem:[#allocation2 + $0x258] sm:$0xff] %v1613
  %1621 = vst [vmem:[#allocation2 + $0x260] sm:$0xff] %v1612
  %1622 = vst [vmem:[#allocation2 + $0x268] sm:$0xff] %v1611
  %1623 = vst [vmem:[#allocation2 + $0x270] sm:$0xff] %v1610
  %1624 = vst [vmem:[#allocation2 + $0x278] sm:$0xff] %v1609
  %1625 = vst [vmem:[#allocation2 + $0x280] sm:$0xff] %v1608
  %1626 = vrot.lane.b32.xlu0 %v1291, 96
  %v1627 = vpop.permute.xlu0 %1626
  %1628 = vrot.lane.b32.xlu0 %v1292, 96
  %v1629 = vpop.permute.xlu0 %1628
  %1630 = vrot.lane.b32.xlu0 %v1293, 96
  %v1631 = vpop.permute.xlu0 %1630
  %1632 = vrot.lane.b32.xlu0 %v1294, 96
  %v1633 = vpop.permute.xlu0 %1632
  %1634 = vrot.lane.b32.xlu0 %v1295, 96
  %v1635 = vpop.permute.xlu0 %1634
  %1636 = vrot.lane.b32.xlu0 %v1296, 96
  %v1637 = vpop.permute.xlu0 %1636
  %1638 = vrot.lane.b32.xlu0 %v1297, 96
  %v1639 = vpop.permute.xlu0 %1638
  %1640 = vrot.lane.b32.xlu0 %v1298, 96
  %v1641 = vpop.permute.xlu0 %1640
  %1642 = vrot.lane.b32.xlu0 %v1299, 96
  %v1643 = vpop.permute.xlu0 %1642
  %1644 = vrot.lane.b32.xlu0 %v1300, 96
  %v1645 = vpop.permute.xlu0 %1644
  %vm1646 = vcmp.lt.s32.totalorder %v1333, 96
  %v1647 = vsel %vm1646, %v1643, %v1645
  %v1648 = vsel %vm1646, %v1641, %v1643
  %v1649 = vsel %vm1646, %v1639, %v1641
  %v1650 = vsel %vm1646, %v1637, %v1639
  %v1651 = vsel %vm1646, %v1635, %v1637
  %v1652 = vsel %vm1646, %v1633, %v1635
  %v1653 = vsel %vm1646, %v1631, %v1633
  %v1654 = vsel %vm1646, %v1629, %v1631
  %v1655 = vsel %vm1646, %v1627, %v1629
  %1656 = vst [vmem:[#allocation2 + $0x288] sm:$0xff] %v1655
  %1657 = vst [vmem:[#allocation2 + $0x290] sm:$0xff] %v1654
  %1658 = vst [vmem:[#allocation2 + $0x298] sm:$0xff] %v1653
  %1659 = vst [vmem:[#allocation2 + $0x2a0] sm:$0xff] %v1652
  %1660 = vst [vmem:[#allocation2 + $0x2a8] sm:$0xff] %v1651
  %1661 = vst [vmem:[#allocation2 + $0x2b0] sm:$0xff] %v1650
  %1662 = vst [vmem:[#allocation2 + $0x2b8] sm:$0xff] %v1649
  %1663 = vst [vmem:[#allocation2 + $0x2c0] sm:$0xff] %v1648
  %1664 = vst [vmem:[#allocation2 + $0x2c8] sm:$0xff] %v1647
  %1665 = vrot.lane.b32.xlu0 %v1291, 94
  %v1666 = vpop.permute.xlu0 %1665
  %1667 = vrot.lane.b32.xlu0 %v1292, 94
  %v1668 = vpop.permute.xlu0 %1667
  %1669 = vrot.lane.b32.xlu0 %v1293, 94
  %v1670 = vpop.permute.xlu0 %1669
  %1671 = vrot.lane.b32.xlu0 %v1294, 94
  %v1672 = vpop.permute.xlu0 %1671
  %1673 = vrot.lane.b32.xlu0 %v1295, 94
  %v1674 = vpop.permute.xlu0 %1673
  %1675 = vrot.lane.b32.xlu0 %v1296, 94
  %v1676 = vpop.permute.xlu0 %1675
  %1677 = vrot.lane.b32.xlu0 %v1297, 94
  %v1678 = vpop.permute.xlu0 %1677
  %1679 = vrot.lane.b32.xlu0 %v1298, 94
  %v1680 = vpop.permute.xlu0 %1679
  %1681 = vrot.lane.b32.xlu0 %v1299, 94
  %v1682 = vpop.permute.xlu0 %1681
  %1683 = vrot.lane.b32.xlu0 %v1300, 94
  %v1684 = vpop.permute.xlu0 %1683
  %vm1685 = vcmp.lt.s32.totalorder %v1333, 94
  %v1686 = vsel %vm1685, %v1682, %v1684
  %v1687 = vsel %vm1685, %v1680, %v1682
  %v1688 = vsel %vm1685, %v1678, %v1680
  %v1689 = vsel %vm1685, %v1676, %v1678
  %v1690 = vsel %vm1685, %v1674, %v1676
  %v1691 = vsel %vm1685, %v1672, %v1674
  %v1692 = vsel %vm1685, %v1670, %v1672
  %v1693 = vsel %vm1685, %v1668, %v1670
  %v1694 = vsel %vm1685, %v1666, %v1668
  %1695 = vst [vmem:[#allocation2 + $0x2d0] sm:$0xff] %v1694
  %1696 = vst [vmem:[#allocation2 + $0x2d8] sm:$0xff] %v1693
  %1697 = vst [vmem:[#allocation2 + $0x2e0] sm:$0xff] %v1692
  %1698 = vst [vmem:[#allocation2 + $0x2e8] sm:$0xff] %v1691
  %1699 = vst [vmem:[#allocation2 + $0x2f0] sm:$0xff] %v1690
  %1700 = vst [vmem:[#allocation2 + $0x2f8] sm:$0xff] %v1689
  %1701 = vst [vmem:[#allocation2 + $0x300] sm:$0xff] %v1688
  %1702 = vst [vmem:[#allocation2 + $0x308] sm:$0xff] %v1687
  %1703 = vst [vmem:[#allocation2 + $0x310] sm:$0xff] %v1686
  %1704 = vrot.lane.b32.xlu0 %v1291, 92
  %v1705 = vpop.permute.xlu0 %1704
  %1706 = vrot.lane.b32.xlu0 %v1292, 92
  %v1707 = vpop.permute.xlu0 %1706
  %1708 = vrot.lane.b32.xlu0 %v1293, 92
  %v1709 = vpop.permute.xlu0 %1708
  %1710 = vrot.lane.b32.xlu0 %v1294, 92
  %v1711 = vpop.permute.xlu0 %1710
  %1712 = vrot.lane.b32.xlu0 %v1295, 92
  %v1713 = vpop.permute.xlu0 %1712
  %1714 = vrot.lane.b32.xlu0 %v1296, 92
  %v1715 = vpop.permute.xlu0 %1714
  %1716 = vrot.lane.b32.xlu0 %v1297, 92
  %v1717 = vpop.permute.xlu0 %1716
  %1718 = vrot.lane.b32.xlu0 %v1298, 92
  %v1719 = vpop.permute.xlu0 %1718
  %1720 = vrot.lane.b32.xlu0 %v1299, 92
  %v1721 = vpop.permute.xlu0 %1720
  %1722 = vrot.lane.b32.xlu0 %v1300, 92
  %v1723 = vpop.permute.xlu0 %1722
  %vm1724 = vcmp.lt.s32.totalorder %v1333, 92
  %v1725 = vsel %vm1724, %v1721, %v1723
  %v1726 = vsel %vm1724, %v1719, %v1721
  %v1727 = vsel %vm1724, %v1717, %v1719
  %v1728 = vsel %vm1724, %v1715, %v1717
  %v1729 = vsel %vm1724, %v1713, %v1715
  %v1730 = vsel %vm1724, %v1711, %v1713
  %v1731 = vsel %vm1724, %v1709, %v1711
  %v1732 = vsel %vm1724, %v1707, %v1709
  %v1733 = vsel %vm1724, %v1705, %v1707
  %1734 = vst [vmem:[#allocation2 + $0x318] sm:$0xff] %v1733
  %1735 = vst [vmem:[#allocation2 + $0x320] sm:$0xff] %v1732
  %1736 = vst [vmem:[#allocation2 + $0x328] sm:$0xff] %v1731
  %1737 = vst [vmem:[#allocation2 + $0x330] sm:$0xff] %v1730
  %1738 = vst [vmem:[#allocation2 + $0x338] sm:$0xff] %v1729
  %1739 = vst [vmem:[#allocation2 + $0x340] sm:$0xff] %v1728
  %1740 = vst [vmem:[#allocation2 + $0x348] sm:$0xff] %v1727
  %1741 = vst [vmem:[#allocation2 + $0x350] sm:$0xff] %v1726
  %1742 = vst [vmem:[#allocation2 + $0x358] sm:$0xff] %v1725
  %1743 = vrot.lane.b32.xlu0 %v1291, 72
  %v1744 = vpop.permute.xlu0 %1743
  %1745 = vrot.lane.b32.xlu0 %v1292, 72
  %v1746 = vpop.permute.xlu0 %1745
  %1747 = vrot.lane.b32.xlu0 %v1293, 72
  %v1748 = vpop.permute.xlu0 %1747
  %1749 = vrot.lane.b32.xlu0 %v1294, 72
  %v1750 = vpop.permute.xlu0 %1749
  %1751 = vrot.lane.b32.xlu0 %v1295, 72
  %v1752 = vpop.permute.xlu0 %1751
  %1753 = vrot.lane.b32.xlu0 %v1296, 72
  %v1754 = vpop.permute.xlu0 %1753
  %1755 = vrot.lane.b32.xlu0 %v1297, 72
  %v1756 = vpop.permute.xlu0 %1755
  %1757 = vrot.lane.b32.xlu0 %v1298, 72
  %v1758 = vpop.permute.xlu0 %1757
  %1759 = vrot.lane.b32.xlu0 %v1299, 72
  %v1760 = vpop.permute.xlu0 %1759
  %1761 = vrot.lane.b32.xlu0 %v1300, 72
  %v1762 = vpop.permute.xlu0 %1761
  %vm1763 = vcmp.lt.s32.totalorder %v1333, 72
  %v1764 = vsel %vm1763, %v1760, %v1762
  %v1765 = vsel %vm1763, %v1758, %v1760
  %v1766 = vsel %vm1763, %v1756, %v1758
  %v1767 = vsel %vm1763, %v1754, %v1756
  %v1768 = vsel %vm1763, %v1752, %v1754
  %v1769 = vsel %vm1763, %v1750, %v1752
  %v1770 = vsel %vm1763, %v1748, %v1750
  %v1771 = vsel %vm1763, %v1746, %v1748
  %v1772 = vsel %vm1763, %v1744, %v1746
  %1773 = vst [vmem:[#allocation2 + $0x360] sm:$0xff] %v1772
  %1774 = vst [vmem:[#allocation2 + $0x368] sm:$0xff] %v1771
  %1775 = vst [vmem:[#allocation2 + $0x370] sm:$0xff] %v1770
  %1776 = vst [vmem:[#allocation2 + $0x378] sm:$0xff] %v1769
  %1777 = vst [vmem:[#allocation2 + $0x380] sm:$0xff] %v1768
  %1778 = vst [vmem:[#allocation2 + $0x388] sm:$0xff] %v1767
  %1779 = vst [vmem:[#allocation2 + $0x390] sm:$0xff] %v1766
  %1780 = vst [vmem:[#allocation2 + $0x398] sm:$0xff] %v1765
  %1781 = vst [vmem:[#allocation2 + $0x3a0] sm:$0xff] %v1764
  %1782 = vrot.lane.b32.xlu0 %v1291, 70
  %v1783 = vpop.permute.xlu0 %1782
  %1784 = vrot.lane.b32.xlu0 %v1292, 70
  %v1785 = vpop.permute.xlu0 %1784
  %1786 = vrot.lane.b32.xlu0 %v1293, 70
  %v1787 = vpop.permute.xlu0 %1786
  %1788 = vrot.lane.b32.xlu0 %v1294, 70
  %v1789 = vpop.permute.xlu0 %1788
  %1790 = vrot.lane.b32.xlu0 %v1295, 70
  %v1791 = vpop.permute.xlu0 %1790
  %1792 = vrot.lane.b32.xlu0 %v1296, 70
  %v1793 = vpop.permute.xlu0 %1792
  %1794 = vrot.lane.b32.xlu0 %v1297, 70
  %v1795 = vpop.permute.xlu0 %1794
  %1796 = vrot.lane.b32.xlu0 %v1298, 70
  %v1797 = vpop.permute.xlu0 %1796
  %1798 = vrot.lane.b32.xlu0 %v1299, 70
  %v1799 = vpop.permute.xlu0 %1798
  %1800 = vrot.lane.b32.xlu0 %v1300, 70
  %v1801 = vpop.permute.xlu0 %1800
  %vm1802 = vcmp.lt.s32.totalorder %v1333, 70
  %v1803 = vsel %vm1802, %v1799, %v1801
  %v1804 = vsel %vm1802, %v1797, %v1799
  %v1805 = vsel %vm1802, %v1795, %v1797
  %v1806 = vsel %vm1802, %v1793, %v1795
  %v1807 = vsel %vm1802, %v1791, %v1793
  %v1808 = vsel %vm1802, %v1789, %v1791
  %v1809 = vsel %vm1802, %v1787, %v1789
  %v1810 = vsel %vm1802, %v1785, %v1787
  %v1811 = vsel %vm1802, %v1783, %v1785
  %1812 = vst [vmem:[#allocation2 + $0x3a8] sm:$0xff] %v1811
  %1813 = vst [vmem:[#allocation2 + $0x3b0] sm:$0xff] %v1810
  %1814 = vst [vmem:[#allocation2 + $0x3b8] sm:$0xff] %v1809
  %1815 = vst [vmem:[#allocation2 + $0x3c0] sm:$0xff] %v1808
  %1816 = vst [vmem:[#allocation2 + $0x3c8] sm:$0xff] %v1807
  %1817 = vst [vmem:[#allocation2 + $0x3d0] sm:$0xff] %v1806
  %1818 = vst [vmem:[#allocation2 + $0x3d8] sm:$0xff] %v1805
  %1819 = vst [vmem:[#allocation2 + $0x3e0] sm:$0xff] %v1804
  %1820 = vst [vmem:[#allocation2 + $0x3e8] sm:$0xff] %v1803
  %1821 = vrot.lane.b32.xlu0 %v1291, 68
  %v1822 = vpop.permute.xlu0 %1821
  %1823 = vrot.lane.b32.xlu0 %v1292, 68
  %v1824 = vpop.permute.xlu0 %1823
  %1825 = vrot.lane.b32.xlu0 %v1293, 68
  %v1826 = vpop.permute.xlu0 %1825
  %1827 = vrot.lane.b32.xlu0 %v1294, 68
  %v1828 = vpop.permute.xlu0 %1827
  %1829 = vrot.lane.b32.xlu0 %v1295, 68
  %v1830 = vpop.permute.xlu0 %1829
  %1831 = vrot.lane.b32.xlu0 %v1296, 68
  %v1832 = vpop.permute.xlu0 %1831
  %1833 = vrot.lane.b32.xlu0 %v1297, 68
  %v1834 = vpop.permute.xlu0 %1833
  %1835 = vrot.lane.b32.xlu0 %v1298, 68
  %v1836 = vpop.permute.xlu0 %1835
  %1837 = vrot.lane.b32.xlu0 %v1299, 68
  %v1838 = vpop.permute.xlu0 %1837
  %1839 = vrot.lane.b32.xlu0 %v1300, 68
  %v1840 = vpop.permute.xlu0 %1839
  %vm1841 = vcmp.lt.s32.totalorder %v1333, 68
  %v1842 = vsel %vm1841, %v1838, %v1840
  %v1843 = vsel %vm1841, %v1836, %v1838
  %v1844 = vsel %vm1841, %v1834, %v1836
  %v1845 = vsel %vm1841, %v1832, %v1834
  %v1846 = vsel %vm1841, %v1830, %v1832
  %v1847 = vsel %vm1841, %v1828, %v1830
  %v1848 = vsel %vm1841, %v1826, %v1828
  %v1849 = vsel %vm1841, %v1824, %v1826
  %v1850 = vsel %vm1841, %v1822, %v1824
  %1851 = vst [vmem:[#allocation2 + $0x3f0] sm:$0xff] %v1850
  %1852 = vst [vmem:[#allocation2 + $0x3f8] sm:$0xff] %v1849
  %1853 = vst [vmem:[#allocation2 + $0x400] sm:$0xff] %v1848
  %1854 = vst [vmem:[#allocation2 + $0x408] sm:$0xff] %v1847
  %1855 = vst [vmem:[#allocation2 + $0x410] sm:$0xff] %v1846
  %1856 = vst [vmem:[#allocation2 + $0x418] sm:$0xff] %v1845
  %1857 = vst [vmem:[#allocation2 + $0x420] sm:$0xff] %v1844
  %1858 = vst [vmem:[#allocation2 + $0x428] sm:$0xff] %v1843
  %1859 = vst [vmem:[#allocation2 + $0x430] sm:$0xff] %v1842
  %1860 = vrot.lane.b32.xlu0 %v1291, 48
  %v1861 = vpop.permute.xlu0 %1860
  %1862 = vrot.lane.b32.xlu0 %v1292, 48
  %v1863 = vpop.permute.xlu0 %1862
  %1864 = vrot.lane.b32.xlu0 %v1293, 48
  %v1865 = vpop.permute.xlu0 %1864
  %1866 = vrot.lane.b32.xlu0 %v1294, 48
  %v1867 = vpop.permute.xlu0 %1866
  %1868 = vrot.lane.b32.xlu0 %v1295, 48
  %v1869 = vpop.permute.xlu0 %1868
  %1870 = vrot.lane.b32.xlu0 %v1296, 48
  %v1871 = vpop.permute.xlu0 %1870
  %1872 = vrot.lane.b32.xlu0 %v1297, 48
  %v1873 = vpop.permute.xlu0 %1872
  %1874 = vrot.lane.b32.xlu0 %v1298, 48
  %v1875 = vpop.permute.xlu0 %1874
  %1876 = vrot.lane.b32.xlu0 %v1299, 48
  %v1877 = vpop.permute.xlu0 %1876
  %1878 = vrot.lane.b32.xlu0 %v1300, 48
  %v1879 = vpop.permute.xlu0 %1878
  %vm1880 = vcmp.lt.s32.totalorder %v1333, 48
  %v1881 = vsel %vm1880, %v1877, %v1879
  %v1882 = vsel %vm1880, %v1875, %v1877
  %v1883 = vsel %vm1880, %v1873, %v1875
  %v1884 = vsel %vm1880, %v1871, %v1873
  %v1885 = vsel %vm1880, %v1869, %v1871
  %v1886 = vsel %vm1880, %v1867, %v1869
  %v1887 = vsel %vm1880, %v1865, %v1867
  %v1888 = vsel %vm1880, %v1863, %v1865
  %v1889 = vsel %vm1880, %v1861, %v1863
  %1890 = vst [vmem:[#allocation2 + $0x438] sm:$0xff] %v1889
  %1891 = vst [vmem:[#allocation2 + $0x440] sm:$0xff] %v1888
  %1892 = vst [vmem:[#allocation2 + $0x448] sm:$0xff] %v1887
  %1893 = vst [vmem:[#allocation2 + $0x450] sm:$0xff] %v1886
  %1894 = vst [vmem:[#allocation2 + $0x458] sm:$0xff] %v1885
  %1895 = vst [vmem:[#allocation2 + $0x460] sm:$0xff] %v1884
  %1896 = vst [vmem:[#allocation2 + $0x468] sm:$0xff] %v1883
  %1897 = vst [vmem:[#allocation2 + $0x470] sm:$0xff] %v1882
  %1898 = vst [vmem:[#allocation2 + $0x478] sm:$0xff] %v1881
  %1899 = vrot.lane.b32.xlu0 %v1291, 46
  %v1900 = vpop.permute.xlu0 %1899
  %1901 = vrot.lane.b32.xlu0 %v1292, 46
  %v1902 = vpop.permute.xlu0 %1901
  %1903 = vrot.lane.b32.xlu0 %v1293, 46
  %v1904 = vpop.permute.xlu0 %1903
  %1905 = vrot.lane.b32.xlu0 %v1294, 46
  %v1906 = vpop.permute.xlu0 %1905
  %1907 = vrot.lane.b32.xlu0 %v1295, 46
  %v1908 = vpop.permute.xlu0 %1907
  %1909 = vrot.lane.b32.xlu0 %v1296, 46
  %v1910 = vpop.permute.xlu0 %1909
  %1911 = vrot.lane.b32.xlu0 %v1297, 46
  %v1912 = vpop.permute.xlu0 %1911
  %1913 = vrot.lane.b32.xlu0 %v1298, 46
  %v1914 = vpop.permute.xlu0 %1913
  %1915 = vrot.lane.b32.xlu0 %v1299, 46
  %v1916 = vpop.permute.xlu0 %1915
  %1917 = vrot.lane.b32.xlu0 %v1300, 46
  %v1918 = vpop.permute.xlu0 %1917
  %vm1919 = vcmp.lt.s32.totalorder %v1333, 46
  %v1920 = vsel %vm1919, %v1916, %v1918
  %v1921 = vsel %vm1919, %v1914, %v1916
  %v1922 = vsel %vm1919, %v1912, %v1914
  %v1923 = vsel %vm1919, %v1910, %v1912
  %v1924 = vsel %vm1919, %v1908, %v1910
  %v1925 = vsel %vm1919, %v1906, %v1908
  %v1926 = vsel %vm1919, %v1904, %v1906
  %v1927 = vsel %vm1919, %v1902, %v1904
  %v1928 = vsel %vm1919, %v1900, %v1902
  %1929 = vst [vmem:[#allocation2 + $0x480] sm:$0xff] %v1928
  %1930 = vst [vmem:[#allocation2 + $0x488] sm:$0xff] %v1927
  %1931 = vst [vmem:[#allocation2 + $0x490] sm:$0xff] %v1926
  %1932 = vst [vmem:[#allocation2 + $0x498] sm:$0xff] %v1925
  %1933 = vst [vmem:[#allocation2 + $0x4a0] sm:$0xff] %v1924
  %1934 = vst [vmem:[#allocation2 + $0x4a8] sm:$0xff] %v1923
  %1935 = vst [vmem:[#allocation2 + $0x4b0] sm:$0xff] %v1922
  %1936 = vst [vmem:[#allocation2 + $0x4b8] sm:$0xff] %v1921
  %1937 = vst [vmem:[#allocation2 + $0x4c0] sm:$0xff] %v1920
  %1938 = vrot.lane.b32.xlu0 %v1291, 44
  %v1939 = vpop.permute.xlu0 %1938
  %1940 = vrot.lane.b32.xlu0 %v1292, 44
  %v1941 = vpop.permute.xlu0 %1940
  %1942 = vrot.lane.b32.xlu0 %v1293, 44
  %v1943 = vpop.permute.xlu0 %1942
  %1944 = vrot.lane.b32.xlu0 %v1294, 44
  %v1945 = vpop.permute.xlu0 %1944
  %1946 = vrot.lane.b32.xlu0 %v1295, 44
  %v1947 = vpop.permute.xlu0 %1946
  %1948 = vrot.lane.b32.xlu0 %v1296, 44
  %v1949 = vpop.permute.xlu0 %1948
  %1950 = vrot.lane.b32.xlu0 %v1297, 44
  %v1951 = vpop.permute.xlu0 %1950
  %1952 = vrot.lane.b32.xlu0 %v1298, 44
  %v1953 = vpop.permute.xlu0 %1952
  %1954 = vrot.lane.b32.xlu0 %v1299, 44
  %v1955 = vpop.permute.xlu0 %1954
  %1956 = vrot.lane.b32.xlu0 %v1300, 44
  %v1957 = vpop.permute.xlu0 %1956
  %vm1958 = vcmp.lt.s32.totalorder %v1333, 44
  %v1959 = vsel %vm1958, %v1955, %v1957
  %v1960 = vsel %vm1958, %v1953, %v1955
  %v1961 = vsel %vm1958, %v1951, %v1953
  %v1962 = vsel %vm1958, %v1949, %v1951
  %v1963 = vsel %vm1958, %v1947, %v1949
  %v1964 = vsel %vm1958, %v1945, %v1947
  %v1965 = vsel %vm1958, %v1943, %v1945
  %v1966 = vsel %vm1958, %v1941, %v1943
  %v1967 = vsel %vm1958, %v1939, %v1941
  %1968 = vst [vmem:[#allocation2 + $0x4c8] sm:$0xff] %v1967
  %1969 = vst [vmem:[#allocation2 + $0x4d0] sm:$0xff] %v1966
  %1970 = vst [vmem:[#allocation2 + $0x4d8] sm:$0xff] %v1965
  %1971 = vst [vmem:[#allocation2 + $0x4e0] sm:$0xff] %v1964
  %1972 = vst [vmem:[#allocation2 + $0x4e8] sm:$0xff] %v1963
  %1973 = vst [vmem:[#allocation2 + $0x4f0] sm:$0xff] %v1962
  %1974 = vst [vmem:[#allocation2 + $0x4f8] sm:$0xff] %v1961
  %1975 = vst [vmem:[#allocation2 + $0x500] sm:$0xff] %v1960
  %1976 = vst [vmem:[#allocation2 + $0x508] sm:$0xff] %v1959
  %1977 = vrot.lane.b32.xlu0 %v1293, 64
  %v1978 = vpop.permute.xlu0 %1977
  %1979 = vrot.lane.b32.xlu0 %v1294, 64
  %v1980 = vpop.permute.xlu0 %1979
  %1981 = vrot.lane.b32.xlu0 %v1295, 64
  %v1982 = vpop.permute.xlu0 %1981
  %1983 = vrot.lane.b32.xlu0 %v1296, 64
  %v1984 = vpop.permute.xlu0 %1983
  %1985 = vrot.lane.b32.xlu0 %v1297, 64
  %v1986 = vpop.permute.xlu0 %1985
  %1987 = vrot.lane.b32.xlu0 %v1298, 64
  %v1988 = vpop.permute.xlu0 %1987
  %1989 = vrot.lane.b32.xlu0 %v1299, 64
  %v1990 = vpop.permute.xlu0 %1989
  %1991 = vrot.lane.b32.xlu0 %v1300, 64
  %v1992 = vpop.permute.xlu0 %1991
  %1993 = vrot.lane.b32.xlu0 %v1301, 64
  %v1994 = vpop.permute.xlu0 %1993
  %1995 = vrot.lane.b32.xlu0 %v1302, 64
  %v1996 = vpop.permute.xlu0 %1995
  %vm1997 = vcmp.lt.s32.totalorder %v1333, 64
  %v1998 = vsel %vm1997, %v1994, %v1996
  %v1999 = vsel %vm1997, %v1992, %v1994
  %v2000 = vsel %vm1997, %v1990, %v1992
  %v2001 = vsel %vm1997, %v1988, %v1990
  %v2002 = vsel %vm1997, %v1986, %v1988
  %v2003 = vsel %vm1997, %v1984, %v1986
  %v2004 = vsel %vm1997, %v1982, %v1984
  %v2005 = vsel %vm1997, %v1980, %v1982
  %v2006 = vsel %vm1997, %v1978, %v1980
  %2007 = vst [vmem:[#allocation2 + $0x510] sm:$0xff] %v2006
  %2008 = vst [vmem:[#allocation2 + $0x518] sm:$0xff] %v2005
  %2009 = vst [vmem:[#allocation2 + $0x520] sm:$0xff] %v2004
  %2010 = vst [vmem:[#allocation2 + $0x528] sm:$0xff] %v2003
  %2011 = vst [vmem:[#allocation2 + $0x530] sm:$0xff] %v2002
  %2012 = vst [vmem:[#allocation2 + $0x538] sm:$0xff] %v2001
  %2013 = vst [vmem:[#allocation2 + $0x540] sm:$0xff] %v2000
  %2014 = vst [vmem:[#allocation2 + $0x548] sm:$0xff] %v1999
  %2015 = vst [vmem:[#allocation2 + $0x550] sm:$0xff] %v1998
  %2016 = vrot.lane.b32.xlu0 %v1293, 62
  %v2017 = vpop.permute.xlu0 %2016
  %2018 = vrot.lane.b32.xlu0 %v1294, 62
  %v2019 = vpop.permute.xlu0 %2018
  %2020 = vrot.lane.b32.xlu0 %v1295, 62
  %v2021 = vpop.permute.xlu0 %2020
  %2022 = vrot.lane.b32.xlu0 %v1296, 62
  %v2023 = vpop.permute.xlu0 %2022
  %2024 = vrot.lane.b32.xlu0 %v1297, 62
  %v2025 = vpop.permute.xlu0 %2024
  %2026 = vrot.lane.b32.xlu0 %v1298, 62
  %v2027 = vpop.permute.xlu0 %2026
  %2028 = vrot.lane.b32.xlu0 %v1299, 62
  %v2029 = vpop.permute.xlu0 %2028
  %2030 = vrot.lane.b32.xlu0 %v1300, 62
  %v2031 = vpop.permute.xlu0 %2030
  %2032 = vrot.lane.b32.xlu0 %v1301, 62
  %v2033 = vpop.permute.xlu0 %2032
  %2034 = vrot.lane.b32.xlu0 %v1302, 62
  %v2035 = vpop.permute.xlu0 %2034
  %vm2036 = vcmp.lt.s32.totalorder %v1333, 62
  %v2037 = vsel %vm2036, %v2033, %v2035
  %v2038 = vsel %vm2036, %v2031, %v2033
  %v2039 = vsel %vm2036, %v2029, %v2031
  %v2040 = vsel %vm2036, %v2027, %v2029
  %v2041 = vsel %vm2036, %v2025, %v2027
  %v2042 = vsel %vm2036, %v2023, %v2025
  %v2043 = vsel %vm2036, %v2021, %v2023
  %v2044 = vsel %vm2036, %v2019, %v2021
  %v2045 = vsel %vm2036, %v2017, %v2019
  %2046 = vst [vmem:[#allocation2 + $0x558] sm:$0xff] %v2045
  %2047 = vst [vmem:[#allocation2 + $0x560] sm:$0xff] %v2044
  %2048 = vst [vmem:[#allocation2 + $0x568] sm:$0xff] %v2043
  %2049 = vst [vmem:[#allocation2 + $0x570] sm:$0xff] %v2042
  %2050 = vst [vmem:[#allocation2 + $0x578] sm:$0xff] %v2041
  %2051 = vst [vmem:[#allocation2 + $0x580] sm:$0xff] %v2040
  %2052 = vst [vmem:[#allocation2 + $0x588] sm:$0xff] %v2039
  %2053 = vst [vmem:[#allocation2 + $0x590] sm:$0xff] %v2038
  %2054 = vst [vmem:[#allocation2 + $0x598] sm:$0xff] %v2037
  %2055 = vrot.lane.b32.xlu0 %v1293, 60
  %v2056 = vpop.permute.xlu0 %2055
  %2057 = vrot.lane.b32.xlu0 %v1294, 60
  %v2058 = vpop.permute.xlu0 %2057
  %2059 = vrot.lane.b32.xlu0 %v1295, 60
  %v2060 = vpop.permute.xlu0 %2059
  %2061 = vrot.lane.b32.xlu0 %v1296, 60
  %v2062 = vpop.permute.xlu0 %2061
  %2063 = vrot.lane.b32.xlu0 %v1297, 60
  %v2064 = vpop.permute.xlu0 %2063
  %2065 = vrot.lane.b32.xlu0 %v1298, 60
  %v2066 = vpop.permute.xlu0 %2065
  %2067 = vrot.lane.b32.xlu0 %v1299, 60
  %v2068 = vpop.permute.xlu0 %2067
  %2069 = vrot.lane.b32.xlu0 %v1300, 60
  %v2070 = vpop.permute.xlu0 %2069
  %2071 = vrot.lane.b32.xlu0 %v1301, 60
  %v2072 = vpop.permute.xlu0 %2071
  %2073 = vrot.lane.b32.xlu0 %v1302, 60
  %v2074 = vpop.permute.xlu0 %2073
  %vm2075 = vcmp.lt.s32.totalorder %v1333, 60
  %v2076 = vsel %vm2075, %v2072, %v2074
  %v2077 = vsel %vm2075, %v2070, %v2072
  %v2078 = vsel %vm2075, %v2068, %v2070
  %v2079 = vsel %vm2075, %v2066, %v2068
  %v2080 = vsel %vm2075, %v2064, %v2066
  %v2081 = vsel %vm2075, %v2062, %v2064
  %v2082 = vsel %vm2075, %v2060, %v2062
  %v2083 = vsel %vm2075, %v2058, %v2060
  %v2084 = vsel %vm2075, %v2056, %v2058
  %2085 = vst [vmem:[#allocation2 + $0x5a0] sm:$0xff] %v2084
  %2086 = vst [vmem:[#allocation2 + $0x5a8] sm:$0xff] %v2083
  %2087 = vst [vmem:[#allocation2 + $0x5b0] sm:$0xff] %v2082
  %2088 = vst [vmem:[#allocation2 + $0x5b8] sm:$0xff] %v2081
  %2089 = vst [vmem:[#allocation2 + $0x5c0] sm:$0xff] %v2080
  %2090 = vst [vmem:[#allocation2 + $0x5c8] sm:$0xff] %v2079
  %2091 = vst [vmem:[#allocation2 + $0x5d0] sm:$0xff] %v2078
  %2092 = vst [vmem:[#allocation2 + $0x5d8] sm:$0xff] %v2077
  %2093 = vst [vmem:[#allocation2 + $0x5e0] sm:$0xff] %v2076
  %2094 = vrot.lane.b32.xlu0 %v1293, 40
  %v2095 = vpop.permute.xlu0 %2094
  %2096 = vrot.lane.b32.xlu0 %v1294, 40
  %v2097 = vpop.permute.xlu0 %2096
  %2098 = vrot.lane.b32.xlu0 %v1295, 40
  %v2099 = vpop.permute.xlu0 %2098
  %2100 = vrot.lane.b32.xlu0 %v1296, 40
  %v2101 = vpop.permute.xlu0 %2100
  %2102 = vrot.lane.b32.xlu0 %v1297, 40
  %v2103 = vpop.permute.xlu0 %2102
  %2104 = vrot.lane.b32.xlu0 %v1298, 40
  %v2105 = vpop.permute.xlu0 %2104
  %2106 = vrot.lane.b32.xlu0 %v1299, 40
  %v2107 = vpop.permute.xlu0 %2106
  %2108 = vrot.lane.b32.xlu0 %v1300, 40
  %v2109 = vpop.permute.xlu0 %2108
  %2110 = vrot.lane.b32.xlu0 %v1301, 40
  %v2111 = vpop.permute.xlu0 %2110
  %2112 = vrot.lane.b32.xlu0 %v1302, 40
  %v2113 = vpop.permute.xlu0 %2112
  %vm2114 = vcmp.lt.s32.totalorder %v1333, 40
  %v2115 = vsel %vm2114, %v2111, %v2113
  %v2116 = vsel %vm2114, %v2109, %v2111
  %v2117 = vsel %vm2114, %v2107, %v2109
  %v2118 = vsel %vm2114, %v2105, %v2107
  %v2119 = vsel %vm2114, %v2103, %v2105
  %v2120 = vsel %vm2114, %v2101, %v2103
  %v2121 = vsel %vm2114, %v2099, %v2101
  %v2122 = vsel %vm2114, %v2097, %v2099
  %v2123 = vsel %vm2114, %v2095, %v2097
  %2124 = vst [vmem:[#allocation2 + $0x5e8] sm:$0xff] %v2123
  %2125 = vst [vmem:[#allocation2 + $0x5f0] sm:$0xff] %v2122
  %2126 = vst [vmem:[#allocation2 + $0x5f8] sm:$0xff] %v2121
  %2127 = vst [vmem:[#allocation2 + $0x600] sm:$0xff] %v2120
  %2128 = vst [vmem:[#allocation2 + $0x608] sm:$0xff] %v2119
  %2129 = vst [vmem:[#allocation2 + $0x610] sm:$0xff] %v2118
  %2130 = vst [vmem:[#allocation2 + $0x618] sm:$0xff] %v2117
  %2131 = vst [vmem:[#allocation2 + $0x620] sm:$0xff] %v2116
  %2132 = vst [vmem:[#allocation2 + $0x628] sm:$0xff] %v2115
  %2133 = vrot.lane.b32.xlu0 %v1293, 38
  %v2134 = vpop.permute.xlu0 %2133
  %2135 = vrot.lane.b32.xlu0 %v1294, 38
  %v2136 = vpop.permute.xlu0 %2135
  %2137 = vrot.lane.b32.xlu0 %v1295, 38
  %v2138 = vpop.permute.xlu0 %2137
  %2139 = vrot.lane.b32.xlu0 %v1296, 38
  %v2140 = vpop.permute.xlu0 %2139
  %2141 = vrot.lane.b32.xlu0 %v1297, 38
  %v2142 = vpop.permute.xlu0 %2141
  %2143 = vrot.lane.b32.xlu0 %v1298, 38
  %v2144 = vpop.permute.xlu0 %2143
  %2145 = vrot.lane.b32.xlu0 %v1299, 38
  %v2146 = vpop.permute.xlu0 %2145
  %2147 = vrot.lane.b32.xlu0 %v1300, 38
  %v2148 = vpop.permute.xlu0 %2147
  %2149 = vrot.lane.b32.xlu0 %v1301, 38
  %v2150 = vpop.permute.xlu0 %2149
  %2151 = vrot.lane.b32.xlu0 %v1302, 38
  %v2152 = vpop.permute.xlu0 %2151
  %vm2153 = vcmp.lt.s32.totalorder %v1333, 38
  %v2154 = vsel %vm2153, %v2150, %v2152
  %v2155 = vsel %vm2153, %v2148, %v2150
  %v2156 = vsel %vm2153, %v2146, %v2148
  %v2157 = vsel %vm2153, %v2144, %v2146
  %v2158 = vsel %vm2153, %v2142, %v2144
  %v2159 = vsel %vm2153, %v2140, %v2142
  %v2160 = vsel %vm2153, %v2138, %v2140
  %v2161 = vsel %vm2153, %v2136, %v2138
  %v2162 = vsel %vm2153, %v2134, %v2136
  %2163 = vst [vmem:[#allocation2 + $0x630] sm:$0xff] %v2162
  %2164 = vst [vmem:[#allocation2 + $0x638] sm:$0xff] %v2161
  %2165 = vst [vmem:[#allocation2 + $0x640] sm:$0xff] %v2160
  %2166 = vst [vmem:[#allocation2 + $0x648] sm:$0xff] %v2159
  %2167 = vst [vmem:[#allocation2 + $0x650] sm:$0xff] %v2158
  %2168 = vst [vmem:[#allocation2 + $0x658] sm:$0xff] %v2157
  %2169 = vst [vmem:[#allocation2 + $0x660] sm:$0xff] %v2156
  %2170 = vst [vmem:[#allocation2 + $0x668] sm:$0xff] %v2155
  %2171 = vst [vmem:[#allocation2 + $0x670] sm:$0xff] %v2154
  %2172 = vrot.lane.b32.xlu0 %v1293, 36
  %v2173 = vpop.permute.xlu0 %2172
  %2174 = vrot.lane.b32.xlu0 %v1294, 36
  %v2175 = vpop.permute.xlu0 %2174
  %2176 = vrot.lane.b32.xlu0 %v1295, 36
  %v2177 = vpop.permute.xlu0 %2176
  %2178 = vrot.lane.b32.xlu0 %v1296, 36
  %v2179 = vpop.permute.xlu0 %2178
  %2180 = vrot.lane.b32.xlu0 %v1297, 36
  %v2181 = vpop.permute.xlu0 %2180
  %2182 = vrot.lane.b32.xlu0 %v1298, 36
  %v2183 = vpop.permute.xlu0 %2182
  %2184 = vrot.lane.b32.xlu0 %v1299, 36
  %v2185 = vpop.permute.xlu0 %2184
  %2186 = vrot.lane.b32.xlu0 %v1300, 36
  %v2187 = vpop.permute.xlu0 %2186
  %2188 = vrot.lane.b32.xlu0 %v1301, 36
  %v2189 = vpop.permute.xlu0 %2188
  %2190 = vrot.lane.b32.xlu0 %v1302, 36
  %v2191 = vpop.permute.xlu0 %2190
  %vm2192 = vcmp.lt.s32.totalorder %v1333, 36
  %v2193 = vsel %vm2192, %v2189, %v2191
  %v2194 = vsel %vm2192, %v2187, %v2189
  %v2195 = vsel %vm2192, %v2185, %v2187
  %v2196 = vsel %vm2192, %v2183, %v2185
  %v2197 = vsel %vm2192, %v2181, %v2183
  %v2198 = vsel %vm2192, %v2179, %v2181
  %v2199 = vsel %vm2192, %v2177, %v2179
  %v2200 = vsel %vm2192, %v2175, %v2177
  %v2201 = vsel %vm2192, %v2173, %v2175
  %2202 = vst [vmem:[#allocation2 + $0x678] sm:$0xff] %v2201
  %2203 = vst [vmem:[#allocation2 + $0x680] sm:$0xff] %v2200
  %2204 = vst [vmem:[#allocation2 + $0x688] sm:$0xff] %v2199
  %2205 = vst [vmem:[#allocation2 + $0x690] sm:$0xff] %v2198
  %2206 = vst [vmem:[#allocation2 + $0x698] sm:$0xff] %v2197
  %2207 = vst [vmem:[#allocation2 + $0x6a0] sm:$0xff] %v2196
  %2208 = vst [vmem:[#allocation2 + $0x6a8] sm:$0xff] %v2195
  %2209 = vst [vmem:[#allocation2 + $0x6b0] sm:$0xff] %v2194
  %2210 = vst [vmem:[#allocation2 + $0x6b8] sm:$0xff] %v2193
  %2211 = vrot.lane.b32.xlu0 %v1293, 16
  %v2212 = vpop.permute.xlu0 %2211
  %2213 = vrot.lane.b32.xlu0 %v1294, 16
  %v2214 = vpop.permute.xlu0 %2213
  %2215 = vrot.lane.b32.xlu0 %v1295, 16
  %v2216 = vpop.permute.xlu0 %2215
  %2217 = vrot.lane.b32.xlu0 %v1296, 16
  %v2218 = vpop.permute.xlu0 %2217
  %2219 = vrot.lane.b32.xlu0 %v1297, 16
  %v2220 = vpop.permute.xlu0 %2219
  %2221 = vrot.lane.b32.xlu0 %v1298, 16
  %v2222 = vpop.permute.xlu0 %2221
  %2223 = vrot.lane.b32.xlu0 %v1299, 16
  %v2224 = vpop.permute.xlu0 %2223
  %2225 = vrot.lane.b32.xlu0 %v1300, 16
  %v2226 = vpop.permute.xlu0 %2225
  %2227 = vrot.lane.b32.xlu0 %v1301, 16
  %v2228 = vpop.permute.xlu0 %2227
  %2229 = vrot.lane.b32.xlu0 %v1302, 16
  %v2230 = vpop.permute.xlu0 %2229
  %vm2231 = vcmp.lt.s32.totalorder %v1333, 16
  %v2232 = vsel %vm2231, %v2228, %v2230
  %v2233 = vsel %vm2231, %v2226, %v2228
  %v2234 = vsel %vm2231, %v2224, %v2226
  %v2235 = vsel %vm2231, %v2222, %v2224
  %v2236 = vsel %vm2231, %v2220, %v2222
  %v2237 = vsel %vm2231, %v2218, %v2220
  %v2238 = vsel %vm2231, %v2216, %v2218
  %v2239 = vsel %vm2231, %v2214, %v2216
  %v2240 = vsel %vm2231, %v2212, %v2214
  %2241 = vst [vmem:[#allocation2 + $0x6c0] sm:$0xff] %v2240
  %2242 = vst [vmem:[#allocation2 + $0x6c8] sm:$0xff] %v2239
  %2243 = vst [vmem:[#allocation2 + $0x6d0] sm:$0xff] %v2238
  %2244 = vst [vmem:[#allocation2 + $0x6d8] sm:$0xff] %v2237
  %2245 = vst [vmem:[#allocation2 + $0x6e0] sm:$0xff] %v2236
  %2246 = vst [vmem:[#allocation2 + $0x6e8] sm:$0xff] %v2235
  %2247 = vst [vmem:[#allocation2 + $0x6f0] sm:$0xff] %v2234
  %2248 = vst [vmem:[#allocation2 + $0x6f8] sm:$0xff] %v2233
  %2249 = vst [vmem:[#allocation2 + $0x700] sm:$0xff] %v2232
  %2250 = vrot.lane.b32.xlu0 %v1293, 14
  %v2251 = vpop.permute.xlu0 %2250
  %2252 = vrot.lane.b32.xlu0 %v1294, 14
  %v2253 = vpop.permute.xlu0 %2252
  %2254 = vrot.lane.b32.xlu0 %v1295, 14
  %v2255 = vpop.permute.xlu0 %2254
  %2256 = vrot.lane.b32.xlu0 %v1296, 14
  %v2257 = vpop.permute.xlu0 %2256
  %2258 = vrot.lane.b32.xlu0 %v1297, 14
  %v2259 = vpop.permute.xlu0 %2258
  %2260 = vrot.lane.b32.xlu0 %v1298, 14
  %v2261 = vpop.permute.xlu0 %2260
  %2262 = vrot.lane.b32.xlu0 %v1299, 14
  %v2263 = vpop.permute.xlu0 %2262
  %2264 = vrot.lane.b32.xlu0 %v1300, 14
  %v2265 = vpop.permute.xlu0 %2264
  %2266 = vrot.lane.b32.xlu0 %v1301, 14
  %v2267 = vpop.permute.xlu0 %2266
  %2268 = vrot.lane.b32.xlu0 %v1302, 14
  %v2269 = vpop.permute.xlu0 %2268
  %vm2270 = vcmp.lt.s32.totalorder %v1333, 14
  %v2271 = vsel %vm2270, %v2267, %v2269
  %v2272 = vsel %vm2270, %v2265, %v2267
  %v2273 = vsel %vm2270, %v2263, %v2265
  %v2274 = vsel %vm2270, %v2261, %v2263
  %v2275 = vsel %vm2270, %v2259, %v2261
  %v2276 = vsel %vm2270, %v2257, %v2259
  %v2277 = vsel %vm2270, %v2255, %v2257
  %v2278 = vsel %vm2270, %v2253, %v2255
  %v2279 = vsel %vm2270, %v2251, %v2253
  %2280 = vst [vmem:[#allocation2 + $0x708] sm:$0xff] %v2279
  %2281 = vst [vmem:[#allocation2 + $0x710] sm:$0xff] %v2278
  %2282 = vst [vmem:[#allocation2 + $0x718] sm:$0xff] %v2277
  %2283 = vst [vmem:[#allocation2 + $0x720] sm:$0xff] %v2276
  %2284 = vst [vmem:[#allocation2 + $0x728] sm:$0xff] %v2275
  %2285 = vst [vmem:[#allocation2 + $0x730] sm:$0xff] %v2274
  %2286 = vst [vmem:[#allocation2 + $0x738] sm:$0xff] %v2273
  %2287 = vst [vmem:[#allocation2 + $0x740] sm:$0xff] %v2272
  %2288 = vst [vmem:[#allocation2 + $0x748] sm:$0xff] %v2271
  %2289 = vrot.lane.b32.xlu0 %v1293, 12
  %v2290 = vpop.permute.xlu0 %2289
  %2291 = vrot.lane.b32.xlu0 %v1294, 12
  %v2292 = vpop.permute.xlu0 %2291
  %2293 = vrot.lane.b32.xlu0 %v1295, 12
  %v2294 = vpop.permute.xlu0 %2293
  %2295 = vrot.lane.b32.xlu0 %v1296, 12
  %v2296 = vpop.permute.xlu0 %2295
  %2297 = vrot.lane.b32.xlu0 %v1297, 12
  %v2298 = vpop.permute.xlu0 %2297
  %2299 = vrot.lane.b32.xlu0 %v1298, 12
  %v2300 = vpop.permute.xlu0 %2299
  %2301 = vrot.lane.b32.xlu0 %v1299, 12
  %v2302 = vpop.permute.xlu0 %2301
  %2303 = vrot.lane.b32.xlu0 %v1300, 12
  %v2304 = vpop.permute.xlu0 %2303
  %2305 = vrot.lane.b32.xlu0 %v1301, 12
  %v2306 = vpop.permute.xlu0 %2305
  %2307 = vrot.lane.b32.xlu0 %v1302, 12
  %v2308 = vpop.permute.xlu0 %2307
  %vm2309 = vcmp.lt.s32.totalorder %v1333, 12
  %v2310 = vsel %vm2309, %v2306, %v2308
  %v2311 = vsel %vm2309, %v2304, %v2306
  %v2312 = vsel %vm2309, %v2302, %v2304
  %v2313 = vsel %vm2309, %v2300, %v2302
  %v2314 = vsel %vm2309, %v2298, %v2300
  %v2315 = vsel %vm2309, %v2296, %v2298
  %v2316 = vsel %vm2309, %v2294, %v2296
  %v2317 = vsel %vm2309, %v2292, %v2294
  %v2318 = vsel %vm2309, %v2290, %v2292
  %2319 = vst [vmem:[#allocation2 + $0x750] sm:$0xff] %v2318
  %2320 = vst [vmem:[#allocation2 + $0x758] sm:$0xff] %v2317
  %2321 = vst [vmem:[#allocation2 + $0x760] sm:$0xff] %v2316
  %2322 = vst [vmem:[#allocation2 + $0x768] sm:$0xff] %v2315
  %2323 = vst [vmem:[#allocation2 + $0x770] sm:$0xff] %v2314
  %2324 = vst [vmem:[#allocation2 + $0x778] sm:$0xff] %v2313
  %2325 = vst [vmem:[#allocation2 + $0x780] sm:$0xff] %v2312
  %2326 = vst [vmem:[#allocation2 + $0x788] sm:$0xff] %v2311
  %2327 = vst [vmem:[#allocation2 + $0x790] sm:$0xff] %v2310
  %v2328 = vld [vmem:[%s6] sm:$0xff]
  %v2329 = vld [vmem:[%s6 + $0x8] sm:$0xff]
  %v2330 = vld [vmem:[#allocation2] sm:$0xff]
  %v2331 = vld [vmem:[#allocation2 + $0x8] sm:$0xff]
  %v2332 = vld [vmem:[#allocation2 + $0x10] sm:$0xff]
  %v2333 = vld [vmem:[#allocation2 + $0x18] sm:$0xff]
  %v2334 = vld [vmem:[#allocation2 + $0x20] sm:$0xff]
  %v2335 = vld [vmem:[#allocation2 + $0x28] sm:$0xff]
  %v2336 = vld [vmem:[#allocation2 + $0x30] sm:$0xff]
  %v2337 = vld [vmem:[#allocation2 + $0x38] sm:$0xff]
  %v2338 = vld [vmem:[#allocation2 + $0x40] sm:$0xff]
  %v2339 = vld [vmem:[#allocation2 + $0x48] sm:$0xff]
  %v2340 = vld [vmem:[#allocation2 + $0x50] sm:$0xff]
  %v2341 = vld [vmem:[#allocation2 + $0x58] sm:$0xff]
  %v2342 = vld [vmem:[#allocation2 + $0x60] sm:$0xff]
  %v2343 = vld [vmem:[#allocation2 + $0x68] sm:$0xff]
  %v2344 = vld [vmem:[#allocation2 + $0x70] sm:$0xff]
  %v2345 = vld [vmem:[#allocation2 + $0x78] sm:$0xff]
  %v2346 = vld [vmem:[#allocation2 + $0x80] sm:$0xff]
  %v2347 = vld [vmem:[#allocation2 + $0x88] sm:$0xff]
  %v2348 = vld [vmem:[#allocation2 + $0x90] sm:$0xff]
  %v2349 = vld [vmem:[#allocation2 + $0x98] sm:$0xff]
  %v2350 = vld [vmem:[#allocation2 + $0xa0] sm:$0xff]
  %v2351 = vld [vmem:[#allocation2 + $0xa8] sm:$0xff]
  %v2352 = vld [vmem:[#allocation2 + $0xb0] sm:$0xff]
  %v2353 = vld [vmem:[#allocation2 + $0xb8] sm:$0xff]
  %v2354 = vld [vmem:[#allocation2 + $0xc0] sm:$0xff]
  %v2355 = vld [vmem:[#allocation2 + $0xc8] sm:$0xff]
  %v2356 = vld [vmem:[#allocation2 + $0xd0] sm:$0xff]
  %v2357 = vld [vmem:[#allocation2 + $0xd8] sm:$0xff]
  %v2358 = vld [vmem:[#allocation2 + $0xe0] sm:$0xff]
  %v2359 = vld [vmem:[#allocation2 + $0xe8] sm:$0xff]
  %v2360 = vld [vmem:[#allocation2 + $0xf0] sm:$0xff]
  %v2361 = vld [vmem:[#allocation2 + $0xf8] sm:$0xff]
  %v2362 = vld [vmem:[#allocation2 + $0x100] sm:$0xff]
  %v2363 = vld [vmem:[#allocation2 + $0x108] sm:$0xff]
  %v2364 = vld [vmem:[#allocation2 + $0x110] sm:$0xff]
  %v2365 = vld [vmem:[#allocation2 + $0x118] sm:$0xff]
  %v2366 = vld [vmem:[#allocation2 + $0x120] sm:$0xff]
  %v2367 = vld [vmem:[#allocation2 + $0x128] sm:$0xff]
  %v2368 = vld [vmem:[#allocation2 + $0x130] sm:$0xff]
  %v2369 = vld [vmem:[#allocation2 + $0x138] sm:$0xff]
  %v2370 = vld [vmem:[#allocation2 + $0x140] sm:$0xff]
  %v2371 = vld [vmem:[#allocation2 + $0x148] sm:$0xff]
  %v2372 = vld [vmem:[#allocation2 + $0x150] sm:$0xff]
  %v2373 = vld [vmem:[#allocation2 + $0x158] sm:$0xff]
  %v2374 = vld [vmem:[#allocation2 + $0x160] sm:$0xff]
  %v2375 = vld [vmem:[#allocation2 + $0x168] sm:$0xff]
  %v2376 = vld [vmem:[#allocation2 + $0x170] sm:$0xff]
  %v2377 = vld [vmem:[#allocation2 + $0x178] sm:$0xff]
  %v2378 = vld [vmem:[#allocation2 + $0x180] sm:$0xff]
  %v2379 = vld [vmem:[#allocation2 + $0x188] sm:$0xff]
  %v2380 = vld [vmem:[#allocation2 + $0x190] sm:$0xff]
  %v2381 = vld [vmem:[#allocation2 + $0x198] sm:$0xff]
  %v2382 = vld [vmem:[#allocation2 + $0x1a0] sm:$0xff]
  %v2383 = vld [vmem:[#allocation2 + $0x1a8] sm:$0xff]
  %v2384 = vld [vmem:[#allocation2 + $0x1b0] sm:$0xff]
  %v2385 = vld [vmem:[#allocation2 + $0x1b8] sm:$0xff]
  %v2386 = vld [vmem:[#allocation2 + $0x1c0] sm:$0xff]
  %v2387 = vld [vmem:[#allocation2 + $0x1c8] sm:$0xff]
  %v2388 = vld [vmem:[#allocation2 + $0x1d0] sm:$0xff]
  %v2389 = vld [vmem:[#allocation2 + $0x1d8] sm:$0xff]
  %v2390 = vld [vmem:[#allocation2 + $0x1e0] sm:$0xff]
  %v2391 = vld [vmem:[#allocation2 + $0x1e8] sm:$0xff]
  %v2392 = vld [vmem:[#allocation2 + $0x1f0] sm:$0xff]
  %v2393 = vld [vmem:[#allocation2 + $0x1f8] sm:$0xff]
  %v2394 = vld [vmem:[#allocation2 + $0x200] sm:$0xff]
  %v2395 = vld [vmem:[#allocation2 + $0x208] sm:$0xff]
  %v2396 = vld [vmem:[#allocation2 + $0x210] sm:$0xff]
  %v2397 = vld [vmem:[#allocation2 + $0x218] sm:$0xff]
  %v2398 = vld [vmem:[#allocation2 + $0x220] sm:$0xff]
  %v2399 = vld [vmem:[#allocation2 + $0x228] sm:$0xff]
  %v2400 = vld [vmem:[#allocation2 + $0x230] sm:$0xff]
  %v2401 = vld [vmem:[#allocation2 + $0x238] sm:$0xff]
  %v2402 = vld [vmem:[#allocation2 + $0x240] sm:$0xff]
  %v2403 = vld [vmem:[#allocation2 + $0x248] sm:$0xff]
  %v2404 = vld [vmem:[#allocation2 + $0x250] sm:$0xff]
  %v2405 = vld [vmem:[#allocation2 + $0x258] sm:$0xff]
  %v2406 = vld [vmem:[#allocation2 + $0x260] sm:$0xff]
  %v2407 = vld [vmem:[#allocation2 + $0x268] sm:$0xff]
  %v2408 = vld [vmem:[#allocation2 + $0x270] sm:$0xff]
  %v2409 = vld [vmem:[#allocation2 + $0x278] sm:$0xff]
  %v2410 = vld [vmem:[#allocation2 + $0x280] sm:$0xff]
  %v2411 = vld [vmem:[#allocation2 + $0x288] sm:$0xff]
  %v2412 = vld [vmem:[#allocation2 + $0x290] sm:$0xff]
  %v2413 = vld [vmem:[#allocation2 + $0x298] sm:$0xff]
  %v2414 = vld [vmem:[#allocation2 + $0x2a0] sm:$0xff]
  %v2415 = vld [vmem:[#allocation2 + $0x2a8] sm:$0xff]
  %v2416 = vld [vmem:[#allocation2 + $0x2b0] sm:$0xff]
  %v2417 = vld [vmem:[#allocation2 + $0x2b8] sm:$0xff]
  %v2418 = vld [vmem:[#allocation2 + $0x2c0] sm:$0xff]
  %v2419 = vld [vmem:[#allocation2 + $0x2c8] sm:$0xff]
  %v2420 = vld [vmem:[#allocation2 + $0x2d0] sm:$0xff]
  %v2421 = vld [vmem:[#allocation2 + $0x2d8] sm:$0xff]
  %v2422 = vld [vmem:[#allocation2 + $0x2e0] sm:$0xff]
  %v2423 = vld [vmem:[#allocation2 + $0x2e8] sm:$0xff]
  %v2424 = vld [vmem:[#allocation2 + $0x2f0] sm:$0xff]
  %v2425 = vld [vmem:[#allocation2 + $0x2f8] sm:$0xff]
  %v2426 = vld [vmem:[#allocation2 + $0x300] sm:$0xff]
  %v2427 = vld [vmem:[#allocation2 + $0x308] sm:$0xff]
  %v2428 = vld [vmem:[#allocation2 + $0x310] sm:$0xff]
  %v2429 = vld [vmem:[#allocation2 + $0x318] sm:$0xff]
  %v2430 = vld [vmem:[#allocation2 + $0x320] sm:$0xff]
  %v2431 = vld [vmem:[#allocation2 + $0x328] sm:$0xff]
  %v2432 = vld [vmem:[#allocation2 + $0x330] sm:$0xff]
  %v2433 = vld [vmem:[#allocation2 + $0x338] sm:$0xff]
  %v2434 = vld [vmem:[#allocation2 + $0x340] sm:$0xff]
  %v2435 = vld [vmem:[#allocation2 + $0x348] sm:$0xff]
  %v2436 = vld [vmem:[#allocation2 + $0x350] sm:$0xff]
  %v2437 = vld [vmem:[#allocation2 + $0x358] sm:$0xff]
  %v2438 = vld [vmem:[#allocation2 + $0x360] sm:$0xff]
  %v2439 = vld [vmem:[#allocation2 + $0x368] sm:$0xff]
  %v2440 = vld [vmem:[#allocation2 + $0x370] sm:$0xff]
  %v2441 = vld [vmem:[#allocation2 + $0x378] sm:$0xff]
  %v2442 = vld [vmem:[#allocation2 + $0x380] sm:$0xff]
  %v2443 = vld [vmem:[#allocation2 + $0x388] sm:$0xff]
  %v2444 = vld [vmem:[#allocation2 + $0x390] sm:$0xff]
  %v2445 = vld [vmem:[#allocation2 + $0x398] sm:$0xff]
  %v2446 = vld [vmem:[#allocation2 + $0x3a0] sm:$0xff]
  %v2447 = vld [vmem:[#allocation2 + $0x3a8] sm:$0xff]
  %v2448 = vld [vmem:[#allocation2 + $0x3b0] sm:$0xff]
  %v2449 = vld [vmem:[#allocation2 + $0x3b8] sm:$0xff]
  %v2450 = vld [vmem:[#allocation2 + $0x3c0] sm:$0xff]
  %v2451 = vld [vmem:[#allocation2 + $0x3c8] sm:$0xff]
  %v2452 = vld [vmem:[#allocation2 + $0x3d0] sm:$0xff]
  %v2453 = vld [vmem:[#allocation2 + $0x3d8] sm:$0xff]
  %v2454 = vld [vmem:[#allocation2 + $0x3e0] sm:$0xff]
  %v2455 = vld [vmem:[#allocation2 + $0x3e8] sm:$0xff]
  %v2456 = vld [vmem:[#allocation2 + $0x3f0] sm:$0xff]
  %v2457 = vld [vmem:[#allocation2 + $0x3f8] sm:$0xff]
  %v2458 = vld [vmem:[#allocation2 + $0x400] sm:$0xff]
  %v2459 = vld [vmem:[#allocation2 + $0x408] sm:$0xff]
  %v2460 = vld [vmem:[#allocation2 + $0x410] sm:$0xff]
  %v2461 = vld [vmem:[#allocation2 + $0x418] sm:$0xff]
  %v2462 = vld [vmem:[#allocation2 + $0x420] sm:$0xff]
  %v2463 = vld [vmem:[#allocation2 + $0x428] sm:$0xff]
  %v2464 = vld [vmem:[#allocation2 + $0x430] sm:$0xff]
  %v2465 = vld [vmem:[#allocation2 + $0x438] sm:$0xff]
  %v2466 = vld [vmem:[#allocation2 + $0x440] sm:$0xff]
  %v2467 = vld [vmem:[#allocation2 + $0x448] sm:$0xff]
  %v2468 = vld [vmem:[#allocation2 + $0x450] sm:$0xff]
  %v2469 = vld [vmem:[#allocation2 + $0x458] sm:$0xff]
  %v2470 = vld [vmem:[#allocation2 + $0x460] sm:$0xff]
  %v2471 = vld [vmem:[#allocation2 + $0x468] sm:$0xff]
  %v2472 = vld [vmem:[#allocation2 + $0x470] sm:$0xff]
  %v2473 = vld [vmem:[#allocation2 + $0x478] sm:$0xff]
  %v2474 = vld [vmem:[#allocation2 + $0x480] sm:$0xff]
  %v2475 = vld [vmem:[#allocation2 + $0x488] sm:$0xff]
  %v2476 = vld [vmem:[#allocation2 + $0x490] sm:$0xff]
  %v2477 = vld [vmem:[#allocation2 + $0x498] sm:$0xff]
  %v2478 = vld [vmem:[#allocation2 + $0x4a0] sm:$0xff]
  %v2479 = vld [vmem:[#allocation2 + $0x4a8] sm:$0xff]
  %v2480 = vld [vmem:[#allocation2 + $0x4b0] sm:$0xff]
  %v2481 = vld [vmem:[#allocation2 + $0x4b8] sm:$0xff]
  %v2482 = vld [vmem:[#allocation2 + $0x4c0] sm:$0xff]
  %v2483 = vld [vmem:[#allocation2 + $0x4c8] sm:$0xff]
  %v2484 = vld [vmem:[#allocation2 + $0x4d0] sm:$0xff]
  %v2485 = vld [vmem:[#allocation2 + $0x4d8] sm:$0xff]
  %v2486 = vld [vmem:[#allocation2 + $0x4e0] sm:$0xff]
  %v2487 = vld [vmem:[#allocation2 + $0x4e8] sm:$0xff]
  %v2488 = vld [vmem:[#allocation2 + $0x4f0] sm:$0xff]
  %v2489 = vld [vmem:[#allocation2 + $0x4f8] sm:$0xff]
  %v2490 = vld [vmem:[#allocation2 + $0x500] sm:$0xff]
  %v2491 = vld [vmem:[#allocation2 + $0x508] sm:$0xff]
  %v2492 = vld [vmem:[#allocation2 + $0x510] sm:$0xff]
  %v2493 = vld [vmem:[#allocation2 + $0x518] sm:$0xff]
  %v2494 = vld [vmem:[#allocation2 + $0x520] sm:$0xff]
  %v2495 = vld [vmem:[#allocation2 + $0x528] sm:$0xff]
  %v2496 = vld [vmem:[#allocation2 + $0x530] sm:$0xff]
  %v2497 = vld [vmem:[#allocation2 + $0x538] sm:$0xff]
  %v2498 = vld [vmem:[#allocation2 + $0x540] sm:$0xff]
  %v2499 = vld [vmem:[#allocation2 + $0x548] sm:$0xff]
  %v2500 = vld [vmem:[#allocation2 + $0x550] sm:$0xff]
  %v2501 = vld [vmem:[#allocation2 + $0x558] sm:$0xff]
  %v2502 = vld [vmem:[#allocation2 + $0x560] sm:$0xff]
  %v2503 = vld [vmem:[#allocation2 + $0x568] sm:$0xff]
  %v2504 = vld [vmem:[#allocation2 + $0x570] sm:$0xff]
  %v2505 = vld [vmem:[#allocation2 + $0x578] sm:$0xff]
  %v2506 = vld [vmem:[#allocation2 + $0x580] sm:$0xff]
  %v2507 = vld [vmem:[#allocation2 + $0x588] sm:$0xff]
  %v2508 = vld [vmem:[#allocation2 + $0x590] sm:$0xff]
  %v2509 = vld [vmem:[#allocation2 + $0x598] sm:$0xff]
  %v2510 = vld [vmem:[#allocation2 + $0x5a0] sm:$0xff]
  %v2511 = vld [vmem:[#allocation2 + $0x5a8] sm:$0xff]
  %v2512 = vld [vmem:[#allocation2 + $0x5b0] sm:$0xff]
  %v2513 = vld [vmem:[#allocation2 + $0x5b8] sm:$0xff]
  %v2514 = vld [vmem:[#allocation2 + $0x5c0] sm:$0xff]
  %v2515 = vld [vmem:[#allocation2 + $0x5c8] sm:$0xff]
  %v2516 = vld [vmem:[#allocation2 + $0x5d0] sm:$0xff]
  %v2517 = vld [vmem:[#allocation2 + $0x5d8] sm:$0xff]
  %v2518 = vld [vmem:[#allocation2 + $0x5e0] sm:$0xff]
  %v2519 = vld [vmem:[#allocation2 + $0x5e8] sm:$0xff]
  %v2520 = vld [vmem:[#allocation2 + $0x5f0] sm:$0xff]
  %v2521 = vld [vmem:[#allocation2 + $0x5f8] sm:$0xff]
  %v2522 = vld [vmem:[#allocation2 + $0x600] sm:$0xff]
  %v2523 = vld [vmem:[#allocation2 + $0x608] sm:$0xff]
  %v2524 = vld [vmem:[#allocation2 + $0x610] sm:$0xff]
  %v2525 = vld [vmem:[#allocation2 + $0x618] sm:$0xff]
  %v2526 = vld [vmem:[#allocation2 + $0x620] sm:$0xff]
  %v2527 = vld [vmem:[#allocation2 + $0x628] sm:$0xff]
  %v2528 = vld [vmem:[#allocation2 + $0x630] sm:$0xff]
  %v2529 = vld [vmem:[#allocation2 + $0x638] sm:$0xff]
  %v2530 = vld [vmem:[#allocation2 + $0x640] sm:$0xff]
  %v2531 = vld [vmem:[#allocation2 + $0x648] sm:$0xff]
  %v2532 = vld [vmem:[#allocation2 + $0x650] sm:$0xff]
  %v2533 = vld [vmem:[#allocation2 + $0x658] sm:$0xff]
  %v2534 = vld [vmem:[#allocation2 + $0x660] sm:$0xff]
  %v2535 = vld [vmem:[#allocation2 + $0x668] sm:$0xff]
  %v2536 = vld [vmem:[#allocation2 + $0x670] sm:$0xff]
  %v2537 = vld [vmem:[#allocation2 + $0x678] sm:$0xff]
  %v2538 = vld [vmem:[#allocation2 + $0x680] sm:$0xff]
  %v2539 = vld [vmem:[#allocation2 + $0x688] sm:$0xff]
  %v2540 = vld [vmem:[#allocation2 + $0x690] sm:$0xff]
  %v2541 = vld [vmem:[#allocation2 + $0x698] sm:$0xff]
  %v2542 = vld [vmem:[#allocation2 + $0x6a0] sm:$0xff]
  %v2543 = vld [vmem:[#allocation2 + $0x6a8] sm:$0xff]
  %v2544 = vld [vmem:[#allocation2 + $0x6b0] sm:$0xff]
  %v2545 = vld [vmem:[#allocation2 + $0x6b8] sm:$0xff]
  %v2546 = vld [vmem:[#allocation2 + $0x6c0] sm:$0xff]
  %v2547 = vld [vmem:[#allocation2 + $0x6c8] sm:$0xff]
  %v2548 = vld [vmem:[#allocation2 + $0x6d0] sm:$0xff]
  %v2549 = vld [vmem:[#allocation2 + $0x6d8] sm:$0xff]
  %v2550 = vld [vmem:[#allocation2 + $0x6e0] sm:$0xff]
  %v2551 = vld [vmem:[#allocation2 + $0x6e8] sm:$0xff]
  %v2552 = vld [vmem:[#allocation2 + $0x6f0] sm:$0xff]
  %v2553 = vld [vmem:[#allocation2 + $0x6f8] sm:$0xff]
  %v2554 = vld [vmem:[#allocation2 + $0x700] sm:$0xff]
  %v2555 = vld [vmem:[#allocation2 + $0x708] sm:$0xff]
  %v2556 = vld [vmem:[#allocation2 + $0x710] sm:$0xff]
  %v2557 = vld [vmem:[#allocation2 + $0x718] sm:$0xff]
  %v2558 = vld [vmem:[#allocation2 + $0x720] sm:$0xff]
  %v2559 = vld [vmem:[#allocation2 + $0x728] sm:$0xff]
  %v2560 = vld [vmem:[#allocation2 + $0x730] sm:$0xff]
  %v2561 = vld [vmem:[#allocation2 + $0x738] sm:$0xff]
  %v2562 = vld [vmem:[#allocation2 + $0x740] sm:$0xff]
  %v2563 = vld [vmem:[#allocation2 + $0x748] sm:$0xff]
  %v2564 = vld [vmem:[#allocation2 + $0x750] sm:$0xff]
  %v2565 = vld [vmem:[#allocation2 + $0x758] sm:$0xff]
  %v2566 = vld [vmem:[#allocation2 + $0x760] sm:$0xff]
  %v2567 = vld [vmem:[#allocation2 + $0x768] sm:$0xff]
  %v2568 = vld [vmem:[#allocation2 + $0x770] sm:$0xff]
  %v2569 = vld [vmem:[#allocation2 + $0x778] sm:$0xff]
  %v2570 = vld [vmem:[#allocation2 + $0x780] sm:$0xff]
  %v2571 = vld [vmem:[#allocation2 + $0x788] sm:$0xff]
  %v2572 = vld [vmem:[#allocation2 + $0x790] sm:$0xff]
  %v2573 = vld [vmem:[%s7] sm:$0xff]
  %2575 = vset.pattern.permute.xlu0 0
  %2576 = vperm.xlu0 %2575, %v2573
  %v2577 = vpop.permute.xlu0 %2576
  %vm2579 = vcmask 719872
  %v2581 = vsel %vm2579, %v2329, 0
  %2583 = vmatprep.subr.mxu0 %v2331
  %2584 = vmatpush1.msra.mxu0 %v2330
  %2585 = vmatprep.subr.mxu0 %v2340
  %2586 = vmatpush1.msra.mxu0 %v2339
  %2587 = vmatprep.subr.mxu0 %v2349
  %2588 = vmatpush1.msra.mxu0 %v2348
  %2589 = vmatprep.subr.mxu0 %v2358
  %2590 = vmatpush1.msra.mxu0 %v2357
  %2591 = vmatprep.subr.mxu0 %v2367
  %2592 = vmatpush1.msra.mxu0 %v2366
  %2593 = vmatprep.subr.mxu0 %v2376
  %2594 = vmatpush1.msra.mxu0 %v2375
  %2595 = vmatprep.subr.mxu0 %v2385
  %2596 = vmatpush1.msra.mxu0 %v2384
  %2597 = vmatprep.subr.mxu0 %v2394
  %2598 = vmatpush1.msra.mxu0 %v2393
  %2599 = vmatprep.subr.mxu0 %v2403
  %2600 = vmatpush1.msra.mxu0 %v2402
  %2601 = vmatprep.subr.mxu0 %v2412
  %2602 = vmatpush1.msra.mxu0 %v2411
  %2603 = vmatprep.subr.mxu0 %v2421
  %2604 = vmatpush1.msra.mxu0 %v2420
  %2605 = vmatprep.subr.mxu0 %v2430
  %2606 = vmatpush1.msra.mxu0 %v2429
  %2607 = vmatprep.subr.mxu0 %v2439
  %2608 = vmatpush1.msra.mxu0 %v2438
  %2609 = vmatprep.subr.mxu0 %v2448
  %2610 = vmatpush1.msra.mxu0 %v2447
  %2611 = vmatprep.subr.mxu0 %v2457
  %2612 = vmatpush1.msra.mxu0 %v2456
  %2613 = vmatprep.subr.mxu0 %v2466
  %2614 = vmatpush1.msra.mxu0 %v2465
  %2615 = vmatprep.subr.mxu0 %v2475
  %2616 = vmatpush1.msra.mxu0 %v2474
  %2617 = vmatprep.subr.mxu0 %v2484
  %2618 = vmatpush1.msra.mxu0 %v2483
  %2619 = vmatprep.subr.mxu0 %v2493
  %2620 = vmatpush1.msra.mxu0 %v2492
  %2621 = vmatprep.subr.mxu0 %v2502
  %2622 = vmatpush1.msra.mxu0 %v2501
  %2623 = vmatprep.subr.mxu0 %v2511
  %2624 = vmatpush1.msra.mxu0 %v2510
  %2625 = vmatprep.subr.mxu0 %v2520
  %2626 = vmatpush1.msra.mxu0 %v2519
  %2627 = vmatprep.subr.mxu0 %v2529
  %2628 = vmatpush1.msra.mxu0 %v2528
  %2629 = vmatprep.subr.mxu0 %v2538
  %2630 = vmatpush1.msra.mxu0 %v2537
  %2631 = vmatprep.subr.mxu0 %v2547
  %2632 = vmatpush1.msra.mxu0 %v2546
  %2633 = vmatprep.subr.mxu0 %v2556
  %2634 = vmatpush1.msra.mxu0 %v2555
  %2635 = vmatprep.subr.mxu0 %v2565
  %2636 = vmatpush1.msra.mxu0 %v2564
  %2637 = vmatprep.subr.mxu0 0.0
  %2638 = vmatpush1.msra.mxu0 0.0
  %2639 = vmatprep.subr.mxu0 0.0
  %2640 = vmatpush1.msra.mxu0 0.0
  %2641 = vmatprep.subr.mxu0 0.0
  %2642 = vmatpush1.msra.mxu0 0.0
  %2643 = vmatprep.subr.mxu0 0.0
  %2644 = vmatpush1.msra.mxu0 0.0
  %2645 = vmatprep.subr.mxu0 0.0
  %2646 = vmatpush1.msra.mxu0 0.0
  %2647 = vmatprep.mubr.f32.mxu0 %v2581
  %2648 = vmatmul.mubr.f32.gmra.mrb[0].mxu0 %v2328
  %v2649 = vpop.f32.mrb[0].mxu0
  %v2650 = vadd.f32 %v2577, %v2649
  %v2651 = vpop.f32.mrb[0].mxu0
  %v2652 = vadd.f32 %v2577, %v2651
  %2653 = vdwg.mxu0
  %2654 = vmatprep.subr.mxu0 %v2333
  %2655 = vmatpush1.msra.mxu0 %v2332
  %2656 = vmatprep.subr.mxu0 %v2342
  %2657 = vmatpush1.msra.mxu0 %v2341
  %2658 = vmatprep.subr.mxu0 %v2351
  %2659 = vmatpush1.msra.mxu0 %v2350
  %2660 = vmatprep.subr.mxu0 %v2360
  %2661 = vmatpush1.msra.mxu0 %v2359
  %2662 = vmatprep.subr.mxu0 %v2369
  %2663 = vmatpush1.msra.mxu0 %v2368
  %2664 = vmatprep.subr.mxu0 %v2378
  %2665 = vmatpush1.msra.mxu0 %v2377
  %2666 = vmatprep.subr.mxu0 %v2387
  %2667 = vmatpush1.msra.mxu0 %v2386
  %2668 = vmatprep.subr.mxu0 %v2396
  %2669 = vmatpush1.msra.mxu0 %v2395
  %2670 = vmatprep.subr.mxu0 %v2405
  %2671 = vmatpush1.msra.mxu0 %v2404
  %2672 = vmatprep.subr.mxu0 %v2414
  %2673 = vmatpush1.msra.mxu0 %v2413
  %2674 = vmatprep.subr.mxu0 %v2423
  %2675 = vmatpush1.msra.mxu0 %v2422
  %2676 = vmatprep.subr.mxu0 %v2432
  %2677 = vmatpush1.msra.mxu0 %v2431
  %2678 = vmatprep.subr.mxu0 %v2441
  %2679 = vmatpush1.msra.mxu0 %v2440
  %2680 = vmatprep.subr.mxu0 %v2450
  %2681 = vmatpush1.msra.mxu0 %v2449
  %2682 = vmatprep.subr.mxu0 %v2459
  %2683 = vmatpush1.msra.mxu0 %v2458
  %2684 = vmatprep.subr.mxu0 %v2468
  %2685 = vmatpush1.msra.mxu0 %v2467
  %2686 = vmatprep.subr.mxu0 %v2477
  %2687 = vmatpush1.msra.mxu0 %v2476
  %2688 = vmatprep.subr.mxu0 %v2486
  %2689 = vmatpush1.msra.mxu0 %v2485
  %2690 = vmatprep.subr.mxu0 %v2495
  %2691 = vmatpush1.msra.mxu0 %v2494
  %2692 = vmatprep.subr.mxu0 %v2504
  %2693 = vmatpush1.msra.mxu0 %v2503
  %2694 = vmatprep.subr.mxu0 %v2513
  %2695 = vmatpush1.msra.mxu0 %v2512
  %2696 = vmatprep.subr.mxu0 %v2522
  %2697 = vmatpush1.msra.mxu0 %v2521
  %2698 = vmatprep.subr.mxu0 %v2531
  %2699 = vmatpush1.msra.mxu0 %v2530
  %2700 = vmatprep.subr.mxu0 %v2540
  %2701 = vmatpush1.msra.mxu0 %v2539
  %2702 = vmatprep.subr.mxu0 %v2549
  %2703 = vmatpush1.msra.mxu0 %v2548
  %2704 = vmatprep.subr.mxu0 %v2558
  %2705 = vmatpush1.msra.mxu0 %v2557
  %2706 = vmatprep.subr.mxu0 %v2567
  %2707 = vmatpush1.msra.mxu0 %v2566
  %2708 = vmatprep.subr.mxu0 0.0
  %2709 = vmatpush1.msra.mxu0 0.0
  %2710 = vmatprep.subr.mxu0 0.0
  %2711 = vmatpush1.msra.mxu0 0.0
  %2712 = vmatprep.subr.mxu0 0.0
  %2713 = vmatpush1.msra.mxu0 0.0
  %2714 = vmatprep.subr.mxu0 0.0
  %2715 = vmatpush1.msra.mxu0 0.0
  %2716 = vmatprep.subr.mxu0 0.0
  %2717 = vmatpush1.msra.mxu0 0.0
  %2718 = vmatprep.mubr.f32.mxu0 %v2581
  %2719 = vmatmul.mubr.f32.gmra.mrb[0].mxu0 %v2328
  %v2720 = vpop.f32.mrb[0].mxu0
  %v2721 = vadd.f32 %v2577, %v2720
  %v2722 = vpop.f32.mrb[0].mxu0
  %v2723 = vadd.f32 %v2577, %v2722
  %2724 = vdwg.mxu0
  %2725 = vmatprep.subr.mxu0 %v2335
  %2726 = vmatpush1.msra.mxu0 %v2334
  %2727 = vmatprep.subr.mxu0 %v2344
  %2728 = vmatpush1.msra.mxu0 %v2343
  %2729 = vmatprep.subr.mxu0 %v2353
  %2730 = vmatpush1.msra.mxu0 %v2352
  %2731 = vmatprep.subr.mxu0 %v2362
  %2732 = vmatpush1.msra.mxu0 %v2361
  %2733 = vmatprep.subr.mxu0 %v2371
  %2734 = vmatpush1.msra.mxu0 %v2370
  %2735 = vmatprep.subr.mxu0 %v2380
  %2736 = vmatpush1.msra.mxu0 %v2379
  %2737 = vmatprep.subr.mxu0 %v2389
  %2738 = vmatpush1.msra.mxu0 %v2388
  %2739 = vmatprep.subr.mxu0 %v2398
  %2740 = vmatpush1.msra.mxu0 %v2397
  %2741 = vmatprep.subr.mxu0 %v2407
  %2742 = vmatpush1.msra.mxu0 %v2406
  %2743 = vmatprep.subr.mxu0 %v2416
  %2744 = vmatpush1.msra.mxu0 %v2415
  %2745 = vmatprep.subr.mxu0 %v2425
  %2746 = vmatpush1.msra.mxu0 %v2424
  %2747 = vmatprep.subr.mxu0 %v2434
  %2748 = vmatpush1.msra.mxu0 %v2433
  %2749 = vmatprep.subr.mxu0 %v2443
  %2750 = vmatpush1.msra.mxu0 %v2442
  %2751 = vmatprep.subr.mxu0 %v2452
  %2752 = vmatpush1.msra.mxu0 %v2451
  %2753 = vmatprep.subr.mxu0 %v2461
  %2754 = vmatpush1.msra.mxu0 %v2460
  %2755 = vmatprep.subr.mxu0 %v2470
  %2756 = vmatpush1.msra.mxu0 %v2469
  %2757 = vmatprep.subr.mxu0 %v2479
  %2758 = vmatpush1.msra.mxu0 %v2478
  %2759 = vmatprep.subr.mxu0 %v2488
  %2760 = vmatpush1.msra.mxu0 %v2487
  %2761 = vmatprep.subr.mxu0 %v2497
  %2762 = vmatpush1.msra.mxu0 %v2496
  %2763 = vmatprep.subr.mxu0 %v2506
  %2764 = vmatpush1.msra.mxu0 %v2505
  %2765 = vmatprep.subr.mxu0 %v2515
  %2766 = vmatpush1.msra.mxu0 %v2514
  %2767 = vmatprep.subr.mxu0 %v2524
  %2768 = vmatpush1.msra.mxu0 %v2523
  %2769 = vmatprep.subr.mxu0 %v2533
  %2770 = vmatpush1.msra.mxu0 %v2532
  %2771 = vmatprep.subr.mxu0 %v2542
  %2772 = vmatpush1.msra.mxu0 %v2541
  %2773 = vmatprep.subr.mxu0 %v2551
  %2774 = vmatpush1.msra.mxu0 %v2550
  %2775 = vmatprep.subr.mxu0 %v2560
  %2776 = vmatpush1.msra.mxu0 %v2559
  %2777 = vmatprep.subr.mxu0 %v2569
  %2778 = vmatpush1.msra.mxu0 %v2568
  %2779 = vmatprep.subr.mxu0 0.0
  %2780 = vmatpush1.msra.mxu0 0.0
  %2781 = vmatprep.subr.mxu0 0.0
  %2782 = vmatpush1.msra.mxu0 0.0
  %2783 = vmatprep.subr.mxu0 0.0
  %2784 = vmatpush1.msra.mxu0 0.0
  %2785 = vmatprep.subr.mxu0 0.0
  %2786 = vmatpush1.msra.mxu0 0.0
  %2787 = vmatprep.subr.mxu0 0.0
  %2788 = vmatpush1.msra.mxu0 0.0
  %2789 = vmatprep.mubr.f32.mxu0 %v2581
  %2790 = vmatmul.mubr.f32.gmra.mrb[0].mxu0 %v2328
  %v2791 = vpop.f32.mrb[0].mxu0
  %v2792 = vadd.f32 %v2577, %v2791
  %v2793 = vpop.f32.mrb[0].mxu0
  %v2794 = vadd.f32 %v2577, %v2793
  %2795 = vdwg.mxu0
  %2796 = vmatprep.subr.mxu0 %v2337
  %2797 = vmatpush1.msra.mxu0 %v2336
  %2798 = vmatprep.subr.mxu0 %v2346
  %2799 = vmatpush1.msra.mxu0 %v2345
  %2800 = vmatprep.subr.mxu0 %v2355
  %2801 = vmatpush1.msra.mxu0 %v2354
  %2802 = vmatprep.subr.mxu0 %v2364
  %2803 = vmatpush1.msra.mxu0 %v2363
  %2804 = vmatprep.subr.mxu0 %v2373
  %2805 = vmatpush1.msra.mxu0 %v2372
  %2806 = vmatprep.subr.mxu0 %v2382
  %2807 = vmatpush1.msra.mxu0 %v2381
  %2808 = vmatprep.subr.mxu0 %v2391
  %2809 = vmatpush1.msra.mxu0 %v2390
  %2810 = vmatprep.subr.mxu0 %v2400
  %2811 = vmatpush1.msra.mxu0 %v2399
  %2812 = vmatprep.subr.mxu0 %v2409
  %2813 = vmatpush1.msra.mxu0 %v2408
  %2814 = vmatprep.subr.mxu0 %v2418
  %2815 = vmatpush1.msra.mxu0 %v2417
  %2816 = vmatprep.subr.mxu0 %v2427
  %2817 = vmatpush1.msra.mxu0 %v2426
  %2818 = vmatprep.subr.mxu0 %v2436
  %2819 = vmatpush1.msra.mxu0 %v2435
  %2820 = vmatprep.subr.mxu0 %v2445
  %2821 = vmatpush1.msra.mxu0 %v2444
  %2822 = vmatprep.subr.mxu0 %v2454
  %2823 = vmatpush1.msra.mxu0 %v2453
  %2824 = vmatprep.subr.mxu0 %v2463
  %2825 = vmatpush1.msra.mxu0 %v2462
  %2826 = vmatprep.subr.mxu0 %v2472
  %2827 = vmatpush1.msra.mxu0 %v2471
  %2828 = vmatprep.subr.mxu0 %v2481
  %2829 = vmatpush1.msra.mxu0 %v2480
  %2830 = vmatprep.subr.mxu0 %v2490
  %2831 = vmatpush1.msra.mxu0 %v2489
  %2832 = vmatprep.subr.mxu0 %v2499
  %2833 = vmatpush1.msra.mxu0 %v2498
  %2834 = vmatprep.subr.mxu0 %v2508
  %2835 = vmatpush1.msra.mxu0 %v2507
  %2836 = vmatprep.subr.mxu0 %v2517
  %2837 = vmatpush1.msra.mxu0 %v2516
  %2838 = vmatprep.subr.mxu0 %v2526
  %2839 = vmatpush1.msra.mxu0 %v2525
  %2840 = vmatprep.subr.mxu0 %v2535
  %2841 = vmatpush1.msra.mxu0 %v2534
  %2842 = vmatprep.subr.mxu0 %v2544
  %2843 = vmatpush1.msra.mxu0 %v2543
  %2844 = vmatprep.subr.mxu0 %v2553
  %2845 = vmatpush1.msra.mxu0 %v2552
  %2846 = vmatprep.subr.mxu0 %v2562
  %2847 = vmatpush1.msra.mxu0 %v2561
  %2848 = vmatprep.subr.mxu0 %v2571
  %2849 = vmatpush1.msra.mxu0 %v2570
  %2850 = vmatprep.subr.mxu0 0.0
  %2851 = vmatpush1.msra.mxu0 0.0
  %2852 = vmatprep.subr.mxu0 0.0
  %2853 = vmatpush1.msra.mxu0 0.0
  %2854 = vmatprep.subr.mxu0 0.0
  %2855 = vmatpush1.msra.mxu0 0.0
  %2856 = vmatprep.subr.mxu0 0.0
  %2857 = vmatpush1.msra.mxu0 0.0
  %2858 = vmatprep.subr.mxu0 0.0
  %2859 = vmatpush1.msra.mxu0 0.0
  %2860 = vmatprep.mubr.f32.mxu0 %v2581
  %2861 = vmatmul.mubr.f32.gmra.mrb[0].mxu0 %v2328
  %v2862 = vpop.f32.mrb[0].mxu0
  %v2863 = vadd.f32 %v2577, %v2862
  %v2864 = vpop.f32.mrb[0].mxu0
  %v2865 = vadd.f32 %v2577, %v2864
  %2866 = vdwg.mxu0
  %2867 = vmatprep.subr.mxu0 0.0
  %2868 = vmatpush1.msra.mxu0 %v2338
  %2869 = vmatprep.subr.mxu0 0.0
  %2870 = vmatpush1.msra.mxu0 %v2347
  %2871 = vmatprep.subr.mxu0 0.0
  %2872 = vmatpush1.msra.mxu0 %v2356
  %2873 = vmatprep.subr.mxu0 0.0
  %2874 = vmatpush1.msra.mxu0 %v2365
  %2875 = vmatprep.subr.mxu0 0.0
  %2876 = vmatpush1.msra.mxu0 %v2374
  %2877 = vmatprep.subr.mxu0 0.0
  %2878 = vmatpush1.msra.mxu0 %v2383
  %2879 = vmatprep.subr.mxu0 0.0
  %2880 = vmatpush1.msra.mxu0 %v2392
  %2881 = vmatprep.subr.mxu0 0.0
  %2882 = vmatpush1.msra.mxu0 %v2401
  %2883 = vmatprep.subr.mxu0 0.0
  %2884 = vmatpush1.msra.mxu0 %v2410
  %2885 = vmatprep.subr.mxu0 0.0
  %2886 = vmatpush1.msra.mxu0 %v2419
  %2887 = vmatprep.subr.mxu0 0.0
  %2888 = vmatpush1.msra.mxu0 %v2428
  %2889 = vmatprep.subr.mxu0 0.0
  %2890 = vmatpush1.msra.mxu0 %v2437
  %2891 = vmatprep.subr.mxu0 0.0
  %2892 = vmatpush1.msra.mxu0 %v2446
  %2893 = vmatprep.subr.mxu0 0.0
  %2894 = vmatpush1.msra.mxu0 %v2455
  %2895 = vmatprep.subr.mxu0 0.0
  %2896 = vmatpush1.msra.mxu0 %v2464
  %2897 = vmatprep.subr.mxu0 0.0
  %2898 = vmatpush1.msra.mxu0 %v2473
  %2899 = vmatprep.subr.mxu0 0.0
  %2900 = vmatpush1.msra.mxu0 %v2482
  %2901 = vmatprep.subr.mxu0 0.0
  %2902 = vmatpush1.msra.mxu0 %v2491
  %2903 = vmatprep.subr.mxu0 0.0
  %2904 = vmatpush1.msra.mxu0 %v2500
  %2905 = vmatprep.subr.mxu0 0.0
  %2906 = vmatpush1.msra.mxu0 %v2509
  %2907 = vmatprep.subr.mxu0 0.0
  %2908 = vmatpush1.msra.mxu0 %v2518
  %2909 = vmatprep.subr.mxu0 0.0
  %2910 = vmatpush1.msra.mxu0 %v2527
  %2911 = vmatprep.subr.mxu0 0.0
  %2912 = vmatpush1.msra.mxu0 %v2536
  %2913 = vmatprep.subr.mxu0 0.0
  %2914 = vmatpush1.msra.mxu0 %v2545
  %2915 = vmatprep.subr.mxu0 0.0
  %2916 = vmatpush1.msra.mxu0 %v2554
  %2917 = vmatprep.subr.mxu0 0.0
  %2918 = vmatpush1.msra.mxu0 %v2563
  %2919 = vmatprep.subr.mxu0 0.0
  %2920 = vmatpush1.msra.mxu0 %v2572
  %2921 = vmatprep.subr.mxu0 0.0
  %2922 = vmatpush1.msra.mxu0 0.0
  %2923 = vmatprep.subr.mxu0 0.0
  %2924 = vmatpush1.msra.mxu0 0.0
  %2925 = vmatprep.subr.mxu0 0.0
  %2926 = vmatpush1.msra.mxu0 0.0
  %2927 = vmatprep.subr.mxu0 0.0
  %2928 = vmatpush1.msra.mxu0 0.0
  %2929 = vmatprep.subr.mxu0 0.0
  %2930 = vmatpush1.msra.mxu0 0.0
  %2931 = vmatprep.mubr.f32.mxu0 %v2581
  %2932 = vmatmul.mubr.f32.gmra.mrb[0].mxu0 %v2328
  %v2933 = vpop.f32.mrb[0].mxu0
  %v2934 = vadd.f32 %v2577, %v2933
  %v2935 = vpop.f32.mrb[0].mxu0
  %2936 = vdwg.mxu0
  %v2939 = vlaneseq
  %v2940 = vshrl.u32 %v2939, 7
  %v2941 = vsub.s32 0, %v2940
  %v2942 = vrot.slane %v57, %v2941
  %v2943 = vlaneseq
  %v2944 = vshrl.u32 %v2943, 7
  %v2945 = vsub.s32 1, %v2944
  %v2946 = vrot.slane %v57, %v2945
  %v2947 = vlaneseq
  %v2948 = vshrl.u32 %v2947, 7
  %v2949 = vsub.s32 2, %v2948
  %v2950 = vrot.slane %v57, %v2949
  %v2951 = vlaneseq
  %v2952 = vshrl.u32 %v2951, 7
  %v2953 = vsub.s32 3, %v2952
  %v2954 = vrot.slane %v57, %v2953
  %v2955 = vlaneseq
  %v2956 = vshrl.u32 %v2955, 7
  %v2957 = vsub.s32 4, %v2956
  %v2958 = vrot.slane %v57, %v2957
  %v2959 = vlaneseq
  %v2960 = vshrl.u32 %v2959, 7
  %v2961 = vsub.s32 5, %v2960
  %v2962 = vrot.slane %v57, %v2961
  %v2963 = vlaneseq
  %v2964 = vshrl.u32 %v2963, 7
  %v2965 = vsub.s32 6, %v2964
  %v2966 = vrot.slane %v57, %v2965
  %v2967 = vlaneseq
  %v2968 = vshrl.u32 %v2967, 7
  %v2969 = vsub.s32 7, %v2968
  %v2970 = vrot.slane %v57, %v2969
  %v2971 = vlaneseq
  %v2972 = vshrl.u32 %v2971, 7
  %v2973 = vsub.s32 0, %v2972
  %v2974 = vrot.slane %v58, %v2973
  %v2984 = vmul.f32 %v2650, %v2942
  %v2985 = vmul.f32 %v2652, %v2946
  %v2986 = vmul.f32 %v2721, %v2950
  %v2987 = vmul.f32 %v2723, %v2954
  %v2988 = vmul.f32 %v2792, %v2958
  %v2989 = vmul.f32 %v2794, %v2962
  %v2990 = vmul.f32 %v2863, %v2966
  %v2991 = vmul.f32 %v2865, %v2970
  %v2992 = vmul.f32 %v2934, %v2974
  %2993 = vmatprep.subr.mxu0 %v2985
  %2994 = vmatpush1.msra.mxu0 %v2984
  %2995 = vmatprep.subr.mxu0 0.0
  %2996 = vmatpush1.msra.mxu0 0.0
  %2997 = vmatprep.subr.mxu0 0.0
  %2998 = vmatpush1.msra.mxu0 0.0
  %2999 = vmatprep.subr.mxu0 0.0
  %3000 = vmatpush1.msra.mxu0 0.0
  %3001 = vmatprep.subr.mxu0 0.0
  %3002 = vmatpush1.msra.mxu0 0.0
  %3003 = vmatprep.subr.mxu0 0.0
  %3004 = vmatpush1.msra.mxu0 0.0
  %3005 = vmatprep.subr.mxu0 0.0
  %3006 = vmatpush1.msra.mxu0 0.0
  %3007 = vmatprep.subr.mxu0 0.0
  %3008 = vmatpush1.msra.mxu0 0.0
  %3009 = vmatprep.subr.mxu0 0.0
  %3010 = vmatpush1.msra.mxu0 0.0
  %3011 = vmatprep.subr.mxu0 0.0
  %3012 = vmatpush1.msra.mxu0 0.0
  %3013 = vmatprep.subr.mxu0 0.0
  %3014 = vmatpush1.msra.mxu0 0.0
  %3015 = vmatprep.subr.mxu0 0.0
  %3016 = vmatpush1.msra.mxu0 0.0
  %3017 = vmatprep.subr.mxu0 0.0
  %3018 = vmatpush1.msra.mxu0 0.0
  %3019 = vmatprep.subr.mxu0 0.0
  %3020 = vmatpush1.msra.mxu0 0.0
  %3021 = vmatprep.subr.mxu0 0.0
  %3022 = vmatpush1.msra.mxu0 0.0
  %3023 = vmatprep.subr.mxu0 0.0
  %3024 = vmatpush1.msra.mxu0 0.0
  %3025 = vmatprep.subr.mxu0 0.0
  %3026 = vmatpush1.msra.mxu0 0.0
  %3027 = vmatprep.subr.mxu0 0.0
  %3028 = vmatpush1.msra.mxu0 0.0
  %3029 = vmatprep.subr.mxu0 0.0
  %3030 = vmatpush1.msra.mxu0 0.0
  %3031 = vmatprep.subr.mxu0 0.0
  %3032 = vmatpush1.msra.mxu0 0.0
  %3033 = vmatprep.subr.mxu0 0.0
  %3034 = vmatpush1.msra.mxu0 0.0
  %3035 = vmatprep.subr.mxu0 0.0
  %3036 = vmatpush1.msra.mxu0 0.0
  %3037 = vmatprep.subr.mxu0 0.0
  %3038 = vmatpush1.msra.mxu0 0.0
  %3039 = vmatprep.subr.mxu0 0.0
  %3040 = vmatpush1.msra.mxu0 0.0
  %3041 = vmatprep.subr.mxu0 0.0
  %3042 = vmatpush1.msra.mxu0 0.0
  %3043 = vmatprep.subr.mxu0 0.0
  %3044 = vmatpush1.msra.mxu0 0.0
  %3045 = vmatprep.subr.mxu0 0.0
  %3046 = vmatpush1.msra.mxu0 0.0
  %3047 = vmatprep.subr.mxu0 0.0
  %3048 = vmatpush1.msra.mxu0 0.0
  %3049 = vmatprep.subr.mxu0 0.0
  %3050 = vmatpush1.msra.mxu0 0.0
  %3051 = vmatprep.subr.mxu0 0.0
  %3052 = vmatpush1.msra.mxu0 0.0
  %3053 = vmatprep.subr.mxu0 0.0
  %3054 = vmatpush1.msra.mxu0 0.0
  %3055 = vmatprep.subr.mxu0 0.0
  %3056 = vmatpush1.msra.mxu0 0.0
  %3057 = vmatprep.mubr.f32.mxu0 0.0
  %3058 = vmatmul.mubr.f32.gmra.mrb[0].mxu0 %v62
  %v3059 = vpop.f32.mrb[0].mxu0
  %v3060 = vadd.f32 0.0, %v3059
  %v3061 = vpop.f32.mrb[0].mxu0
  %v3062 = vadd.f32 0.0, %v3061
  %3063 = vdwg.mxu0
  %3064 = vmatprep.subr.mxu0 %v2987
  %3065 = vmatpush1.msra.mxu0 %v2986
  %3066 = vmatprep.subr.mxu0 0.0
  %3067 = vmatpush1.msra.mxu0 0.0
  %3068 = vmatprep.subr.mxu0 0.0
  %3069 = vmatpush1.msra.mxu0 0.0
  %3070 = vmatprep.subr.mxu0 0.0
  %3071 = vmatpush1.msra.mxu0 0.0
  %3072 = vmatprep.subr.mxu0 0.0
  %3073 = vmatpush1.msra.mxu0 0.0
  %3074 = vmatprep.subr.mxu0 0.0
  %3075 = vmatpush1.msra.mxu0 0.0
  %3076 = vmatprep.subr.mxu0 0.0
  %3077 = vmatpush1.msra.mxu0 0.0
  %3078 = vmatprep.subr.mxu0 0.0
  %3079 = vmatpush1.msra.mxu0 0.0
  %3080 = vmatprep.subr.mxu0 0.0
  %3081 = vmatpush1.msra.mxu0 0.0
  %3082 = vmatprep.subr.mxu0 0.0
  %3083 = vmatpush1.msra.mxu0 0.0
  %3084 = vmatprep.subr.mxu0 0.0
  %3085 = vmatpush1.msra.mxu0 0.0
  %3086 = vmatprep.subr.mxu0 0.0
  %3087 = vmatpush1.msra.mxu0 0.0
  %3088 = vmatprep.subr.mxu0 0.0
  %3089 = vmatpush1.msra.mxu0 0.0
  %3090 = vmatprep.subr.mxu0 0.0
  %3091 = vmatpush1.msra.mxu0 0.0
  %3092 = vmatprep.subr.mxu0 0.0
  %3093 = vmatpush1.msra.mxu0 0.0
  %3094 = vmatprep.subr.mxu0 0.0
  %3095 = vmatpush1.msra.mxu0 0.0
  %3096 = vmatprep.subr.mxu0 0.0
  %3097 = vmatpush1.msra.mxu0 0.0
  %3098 = vmatprep.subr.mxu0 0.0
  %3099 = vmatpush1.msra.mxu0 0.0
  %3100 = vmatprep.subr.mxu0 0.0
  %3101 = vmatpush1.msra.mxu0 0.0
  %3102 = vmatprep.subr.mxu0 0.0
  %3103 = vmatpush1.msra.mxu0 0.0
  %3104 = vmatprep.subr.mxu0 0.0
  %3105 = vmatpush1.msra.mxu0 0.0
  %3106 = vmatprep.subr.mxu0 0.0
  %3107 = vmatpush1.msra.mxu0 0.0
  %3108 = vmatprep.subr.mxu0 0.0
  %3109 = vmatpush1.msra.mxu0 0.0
  %3110 = vmatprep.subr.mxu0 0.0
  %3111 = vmatpush1.msra.mxu0 0.0
  %3112 = vmatprep.subr.mxu0 0.0
  %3113 = vmatpush1.msra.mxu0 0.0
  %3114 = vmatprep.subr.mxu0 0.0
  %3115 = vmatpush1.msra.mxu0 0.0
  %3116 = vmatprep.subr.mxu0 0.0
  %3117 = vmatpush1.msra.mxu0 0.0
  %3118 = vmatprep.subr.mxu0 0.0
  %3119 = vmatpush1.msra.mxu0 0.0
  %3120 = vmatprep.subr.mxu0 0.0
  %3121 = vmatpush1.msra.mxu0 0.0
  %3122 = vmatprep.subr.mxu0 0.0
  %3123 = vmatpush1.msra.mxu0 0.0
  %3124 = vmatprep.subr.mxu0 0.0
  %3125 = vmatpush1.msra.mxu0 0.0
  %3126 = vmatprep.subr.mxu0 0.0
  %3127 = vmatpush1.msra.mxu0 0.0
  %3128 = vmatprep.mubr.f32.mxu0 0.0
  %3129 = vmatmul.mubr.f32.gmra.mrb[0].mxu0 %v62
  %v3130 = vpop.f32.mrb[0].mxu0
  %v3131 = vadd.f32 0.0, %v3130
  %v3132 = vpop.f32.mrb[0].mxu0
  %v3133 = vadd.f32 0.0, %v3132
  %3134 = vdwg.mxu0
  %3135 = vmatprep.subr.mxu0 %v2989
  %3136 = vmatpush1.msra.mxu0 %v2988
  %3137 = vmatprep.subr.mxu0 0.0
  %3138 = vmatpush1.msra.mxu0 0.0
  %3139 = vmatprep.subr.mxu0 0.0
  %3140 = vmatpush1.msra.mxu0 0.0
  %3141 = vmatprep.subr.mxu0 0.0
  %3142 = vmatpush1.msra.mxu0 0.0
  %3143 = vmatprep.subr.mxu0 0.0
  %3144 = vmatpush1.msra.mxu0 0.0
  %3145 = vmatprep.subr.mxu0 0.0
  %3146 = vmatpush1.msra.mxu0 0.0
  %3147 = vmatprep.subr.mxu0 0.0
  %3148 = vmatpush1.msra.mxu0 0.0
  %3149 = vmatprep.subr.mxu0 0.0
  %3150 = vmatpush1.msra.mxu0 0.0
  %3151 = vmatprep.subr.mxu0 0.0
  %3152 = vmatpush1.msra.mxu0 0.0
  %3153 = vmatprep.subr.mxu0 0.0
  %3154 = vmatpush1.msra.mxu0 0.0
  %3155 = vmatprep.subr.mxu0 0.0
  %3156 = vmatpush1.msra.mxu0 0.0
  %3157 = vmatprep.subr.mxu0 0.0
  %3158 = vmatpush1.msra.mxu0 0.0
  %3159 = vmatprep.subr.mxu0 0.0
  %3160 = vmatpush1.msra.mxu0 0.0
  %3161 = vmatprep.subr.mxu0 0.0
  %3162 = vmatpush1.msra.mxu0 0.0
  %3163 = vmatprep.subr.mxu0 0.0
  %3164 = vmatpush1.msra.mxu0 0.0
  %3165 = vmatprep.subr.mxu0 0.0
  %3166 = vmatpush1.msra.mxu0 0.0
  %3167 = vmatprep.subr.mxu0 0.0
  %3168 = vmatpush1.msra.mxu0 0.0
  %3169 = vmatprep.subr.mxu0 0.0
  %3170 = vmatpush1.msra.mxu0 0.0
  %3171 = vmatprep.subr.mxu0 0.0
  %3172 = vmatpush1.msra.mxu0 0.0
  %3173 = vmatprep.subr.mxu0 0.0
  %3174 = vmatpush1.msra.mxu0 0.0
  %3175 = vmatprep.subr.mxu0 0.0
  %3176 = vmatpush1.msra.mxu0 0.0
  %3177 = vmatprep.subr.mxu0 0.0
  %3178 = vmatpush1.msra.mxu0 0.0
  %3179 = vmatprep.subr.mxu0 0.0
  %3180 = vmatpush1.msra.mxu0 0.0
  %3181 = vmatprep.subr.mxu0 0.0
  %3182 = vmatpush1.msra.mxu0 0.0
  %3183 = vmatprep.subr.mxu0 0.0
  %3184 = vmatpush1.msra.mxu0 0.0
  %3185 = vmatprep.subr.mxu0 0.0
  %3186 = vmatpush1.msra.mxu0 0.0
  %3187 = vmatprep.subr.mxu0 0.0
  %3188 = vmatpush1.msra.mxu0 0.0
  %3189 = vmatprep.subr.mxu0 0.0
  %3190 = vmatpush1.msra.mxu0 0.0
  %3191 = vmatprep.subr.mxu0 0.0
  %3192 = vmatpush1.msra.mxu0 0.0
  %3193 = vmatprep.subr.mxu0 0.0
  %3194 = vmatpush1.msra.mxu0 0.0
  %3195 = vmatprep.subr.mxu0 0.0
  %3196 = vmatpush1.msra.mxu0 0.0
  %3197 = vmatprep.subr.mxu0 0.0
  %3198 = vmatpush1.msra.mxu0 0.0
  %3199 = vmatprep.mubr.f32.mxu0 0.0
  %3200 = vmatmul.mubr.f32.gmra.mrb[0].mxu0 %v62
  %v3201 = vpop.f32.mrb[0].mxu0
  %v3202 = vadd.f32 0.0, %v3201
  %v3203 = vpop.f32.mrb[0].mxu0
  %v3204 = vadd.f32 0.0, %v3203
  %3205 = vdwg.mxu0
  %3206 = vmatprep.subr.mxu0 %v2991
  %3207 = vmatpush1.msra.mxu0 %v2990
  %3208 = vmatprep.subr.mxu0 0.0
  %3209 = vmatpush1.msra.mxu0 0.0
  %3210 = vmatprep.subr.mxu0 0.0
  %3211 = vmatpush1.msra.mxu0 0.0
  %3212 = vmatprep.subr.mxu0 0.0
  %3213 = vmatpush1.msra.mxu0 0.0
  %3214 = vmatprep.subr.mxu0 0.0
  %3215 = vmatpush1.msra.mxu0 0.0
  %3216 = vmatprep.subr.mxu0 0.0
  %3217 = vmatpush1.msra.mxu0 0.0
  %3218 = vmatprep.subr.mxu0 0.0
  %3219 = vmatpush1.msra.mxu0 0.0
  %3220 = vmatprep.subr.mxu0 0.0
  %3221 = vmatpush1.msra.mxu0 0.0
  %3222 = vmatprep.subr.mxu0 0.0
  %3223 = vmatpush1.msra.mxu0 0.0
  %3224 = vmatprep.subr.mxu0 0.0
  %3225 = vmatpush1.msra.mxu0 0.0
  %3226 = vmatprep.subr.mxu0 0.0
  %3227 = vmatpush1.msra.mxu0 0.0
  %3228 = vmatprep.subr.mxu0 0.0
  %3229 = vmatpush1.msra.mxu0 0.0
  %3230 = vmatprep.subr.mxu0 0.0
  %3231 = vmatpush1.msra.mxu0 0.0
  %3232 = vmatprep.subr.mxu0 0.0
  %3233 = vmatpush1.msra.mxu0 0.0
  %3234 = vmatprep.subr.mxu0 0.0
  %3235 = vmatpush1.msra.mxu0 0.0
  %3236 = vmatprep.subr.mxu0 0.0
  %3237 = vmatpush1.msra.mxu0 0.0
  %3238 = vmatprep.subr.mxu0 0.0
  %3239 = vmatpush1.msra.mxu0 0.0
  %3240 = vmatprep.subr.mxu0 0.0
  %3241 = vmatpush1.msra.mxu0 0.0
  %3242 = vmatprep.subr.mxu0 0.0
  %3243 = vmatpush1.msra.mxu0 0.0
  %3244 = vmatprep.subr.mxu0 0.0
  %3245 = vmatpush1.msra.mxu0 0.0
  %3246 = vmatprep.subr.mxu0 0.0
  %3247 = vmatpush1.msra.mxu0 0.0
  %3248 = vmatprep.subr.mxu0 0.0
  %3249 = vmatpush1.msra.mxu0 0.0
  %3250 = vmatprep.subr.mxu0 0.0
  %3251 = vmatpush1.msra.mxu0 0.0
  %3252 = vmatprep.subr.mxu0 0.0
  %3253 = vmatpush1.msra.mxu0 0.0
  %3254 = vmatprep.subr.mxu0 0.0
  %3255 = vmatpush1.msra.mxu0 0.0
  %3256 = vmatprep.subr.mxu0 0.0
  %3257 = vmatpush1.msra.mxu0 0.0
  %3258 = vmatprep.subr.mxu0 0.0
  %3259 = vmatpush1.msra.mxu0 0.0
  %3260 = vmatprep.subr.mxu0 0.0
  %3261 = vmatpush1.msra.mxu0 0.0
  %3262 = vmatprep.subr.mxu0 0.0
  %3263 = vmatpush1.msra.mxu0 0.0
  %3264 = vmatprep.subr.mxu0 0.0
  %3265 = vmatpush1.msra.mxu0 0.0
  %3266 = vmatprep.subr.mxu0 0.0
  %3267 = vmatpush1.msra.mxu0 0.0
  %3268 = vmatprep.subr.mxu0 0.0
  %3269 = vmatpush1.msra.mxu0 0.0
  %3270 = vmatprep.mubr.f32.mxu0 0.0
  %3271 = vmatmul.mubr.f32.gmra.mrb[0].mxu0 %v62
  %v3272 = vpop.f32.mrb[0].mxu0
  %v3273 = vadd.f32 0.0, %v3272
  %v3274 = vpop.f32.mrb[0].mxu0
  %v3275 = vadd.f32 0.0, %v3274
  %3276 = vdwg.mxu0
  %3277 = vmatprep.subr.mxu0 0.0
  %3278 = vmatpush1.msra.mxu0 %v2992
  %3279 = vmatprep.subr.mxu0 0.0
  %3280 = vmatpush1.msra.mxu0 0.0
  %3281 = vmatprep.subr.mxu0 0.0
  %3282 = vmatpush1.msra.mxu0 0.0
  %3283 = vmatprep.subr.mxu0 0.0
  %3284 = vmatpush1.msra.mxu0 0.0
  %3285 = vmatprep.subr.mxu0 0.0
  %3286 = vmatpush1.msra.mxu0 0.0
  %3287 = vmatprep.subr.mxu0 0.0
  %3288 = vmatpush1.msra.mxu0 0.0
  %3289 = vmatprep.subr.mxu0 0.0
  %3290 = vmatpush1.msra.mxu0 0.0
  %3291 = vmatprep.subr.mxu0 0.0
  %3292 = vmatpush1.msra.mxu0 0.0
  %3293 = vmatprep.subr.mxu0 0.0
  %3294 = vmatpush1.msra.mxu0 0.0
  %3295 = vmatprep.subr.mxu0 0.0
  %3296 = vmatpush1.msra.mxu0 0.0
  %3297 = vmatprep.subr.mxu0 0.0
  %3298 = vmatpush1.msra.mxu0 0.0
  %3299 = vmatprep.subr.mxu0 0.0
  %3300 = vmatpush1.msra.mxu0 0.0
  %3301 = vmatprep.subr.mxu0 0.0
  %3302 = vmatpush1.msra.mxu0 0.0
  %3303 = vmatprep.subr.mxu0 0.0
  %3304 = vmatpush1.msra.mxu0 0.0
  %3305 = vmatprep.subr.mxu0 0.0
  %3306 = vmatpush1.msra.mxu0 0.0
  %3307 = vmatprep.subr.mxu0 0.0
  %3308 = vmatpush1.msra.mxu0 0.0
  %3309 = vmatprep.subr.mxu0 0.0
  %3310 = vmatpush1.msra.mxu0 0.0
  %3311 = vmatprep.subr.mxu0 0.0
  %3312 = vmatpush1.msra.mxu0 0.0
  %3313 = vmatprep.subr.mxu0 0.0
  %3314 = vmatpush1.msra.mxu0 0.0
  %3315 = vmatprep.subr.mxu0 0.0
  %3316 = vmatpush1.msra.mxu0 0.0
  %3317 = vmatprep.subr.mxu0 0.0
  %3318 = vmatpush1.msra.mxu0 0.0
  %3319 = vmatprep.subr.mxu0 0.0
  %3320 = vmatpush1.msra.mxu0 0.0
  %3321 = vmatprep.subr.mxu0 0.0
  %3322 = vmatpush1.msra.mxu0 0.0
  %3323 = vmatprep.subr.mxu0 0.0
  %3324 = vmatpush1.msra.mxu0 0.0
  %3325 = vmatprep.subr.mxu0 0.0
  %3326 = vmatpush1.msra.mxu0 0.0
  %3327 = vmatprep.subr.mxu0 0.0
  %3328 = vmatpush1.msra.mxu0 0.0
  %3329 = vmatprep.subr.mxu0 0.0
  %3330 = vmatpush1.msra.mxu0 0.0
  %3331 = vmatprep.subr.mxu0 0.0
  %3332 = vmatpush1.msra.mxu0 0.0
  %3333 = vmatprep.subr.mxu0 0.0
  %3334 = vmatpush1.msra.mxu0 0.0
  %3335 = vmatprep.subr.mxu0 0.0
  %3336 = vmatpush1.msra.mxu0 0.0
  %3337 = vmatprep.subr.mxu0 0.0
  %3338 = vmatpush1.msra.mxu0 0.0
  %3339 = vmatprep.subr.mxu0 0.0
  %3340 = vmatpush1.msra.mxu0 0.0
  %3341 = vmatprep.mubr.f32.mxu0 0.0
  %3342 = vmatmul.mubr.f32.gmra.mrb[0].mxu0 %v62
  %v3343 = vpop.f32.mrb[0].mxu0
  %v3344 = vadd.f32 0.0, %v3343
  %v3345 = vpop.f32.mrb[0].mxu0
  %3346 = vdwg.mxu0
  %v3347 = vadd.f32 %v3060, %v3062
  %v3348 = vadd.f32 %v3347, %v3131
  %v3349 = vadd.f32 %v3348, %v3133
  %v3350 = vadd.f32 %v3349, %v3202
  %v3351 = vadd.f32 %v3350, %v3204
  %v3352 = vadd.f32 %v3351, %v3273
  %v3353 = vadd.f32 %v3352, %v3275
  %v3354 = vadd.f32 %v3353, %v3344
  %3355 = vadd.xlane.f32.xlu0 %v3354
  %v3356 = vpop.xlane.xlu0 %3355
  %v3357 = vmul.f32 %v3356, 0.0009765625
  %v3358 = vsub.f32 %v2650, %v3357
  %v3359 = vsub.f32 %v2652, %v3357
  %v3360 = vsub.f32 %v2721, %v3357
  %v3361 = vsub.f32 %v2723, %v3357
  %v3362 = vsub.f32 %v2792, %v3357
  %v3363 = vsub.f32 %v2794, %v3357
  %v3364 = vsub.f32 %v2863, %v3357
  %v3365 = vsub.f32 %v2865, %v3357
  %v3366 = vsub.f32 %v2934, %v3357
  %v3367 = vmul.f32 %v3358, %v2942
  %v3368 = vmul.f32 %v3359, %v2946
  %v3369 = vmul.f32 %v3360, %v2950
  %v3370 = vmul.f32 %v3361, %v2954
  %v3371 = vmul.f32 %v3362, %v2958
  %v3372 = vmul.f32 %v3363, %v2962
  %v3373 = vmul.f32 %v3364, %v2966
  %v3374 = vmul.f32 %v3365, %v2970
  %v3375 = vmul.f32 %v3366, %v2974
  %v3376 = vmul.f32 %v3367, %v3367
  %v3377 = vmul.f32 %v3368, %v3368
  %v3378 = vmul.f32 %v3369, %v3369
  %v3379 = vmul.f32 %v3370, %v3370
  %v3380 = vmul.f32 %v3371, %v3371
  %v3381 = vmul.f32 %v3372, %v3372
  %v3382 = vmul.f32 %v3373, %v3373
  %v3383 = vmul.f32 %v3374, %v3374
  %v3384 = vmul.f32 %v3375, %v3375
  %3385 = vmatprep.subr.mxu0 %v3377
  %3386 = vmatpush1.msra.mxu0 %v3376
  %3387 = vmatprep.subr.mxu0 0.0
  %3388 = vmatpush1.msra.mxu0 0.0
  %3389 = vmatprep.subr.mxu0 0.0
  %3390 = vmatpush1.msra.mxu0 0.0
  %3391 = vmatprep.subr.mxu0 0.0
  %3392 = vmatpush1.msra.mxu0 0.0
  %3393 = vmatprep.subr.mxu0 0.0
  %3394 = vmatpush1.msra.mxu0 0.0
  %3395 = vmatprep.subr.mxu0 0.0
  %3396 = vmatpush1.msra.mxu0 0.0
  %3397 = vmatprep.subr.mxu0 0.0
  %3398 = vmatpush1.msra.mxu0 0.0
  %3399 = vmatprep.subr.mxu0 0.0
  %3400 = vmatpush1.msra.mxu0 0.0
  %3401 = vmatprep.subr.mxu0 0.0
  %3402 = vmatpush1.msra.mxu0 0.0
  %3403 = vmatprep.subr.mxu0 0.0
  %3404 = vmatpush1.msra.mxu0 0.0
  %3405 = vmatprep.subr.mxu0 0.0
  %3406 = vmatpush1.msra.mxu0 0.0
  %3407 = vmatprep.subr.mxu0 0.0
  %3408 = vmatpush1.msra.mxu0 0.0
  %3409 = vmatprep.subr.mxu0 0.0
  %3410 = vmatpush1.msra.mxu0 0.0
  %3411 = vmatprep.subr.mxu0 0.0
  %3412 = vmatpush1.msra.mxu0 0.0
  %3413 = vmatprep.subr.mxu0 0.0
  %3414 = vmatpush1.msra.mxu0 0.0
  %3415 = vmatprep.subr.mxu0 0.0
  %3416 = vmatpush1.msra.mxu0 0.0
  %3417 = vmatprep.subr.mxu0 0.0
  %3418 = vmatpush1.msra.mxu0 0.0
  %3419 = vmatprep.subr.mxu0 0.0
  %3420 = vmatpush1.msra.mxu0 0.0
  %3421 = vmatprep.subr.mxu0 0.0
  %3422 = vmatpush1.msra.mxu0 0.0
  %3423 = vmatprep.subr.mxu0 0.0
  %3424 = vmatpush1.msra.mxu0 0.0
  %3425 = vmatprep.subr.mxu0 0.0
  %3426 = vmatpush1.msra.mxu0 0.0
  %3427 = vmatprep.subr.mxu0 0.0
  %3428 = vmatpush1.msra.mxu0 0.0
  %3429 = vmatprep.subr.mxu0 0.0
  %3430 = vmatpush1.msra.mxu0 0.0
  %3431 = vmatprep.subr.mxu0 0.0
  %3432 = vmatpush1.msra.mxu0 0.0
  %3433 = vmatprep.subr.mxu0 0.0
  %3434 = vmatpush1.msra.mxu0 0.0
  %3435 = vmatprep.subr.mxu0 0.0
  %3436 = vmatpush1.msra.mxu0 0.0
  %3437 = vmatprep.subr.mxu0 0.0
  %3438 = vmatpush1.msra.mxu0 0.0
  %3439 = vmatprep.subr.mxu0 0.0
  %3440 = vmatpush1.msra.mxu0 0.0
  %3441 = vmatprep.subr.mxu0 0.0
  %3442 = vmatpush1.msra.mxu0 0.0
  %3443 = vmatprep.subr.mxu0 0.0
  %3444 = vmatpush1.msra.mxu0 0.0
  %3445 = vmatprep.subr.mxu0 0.0
  %3446 = vmatpush1.msra.mxu0 0.0
  %3447 = vmatprep.subr.mxu0 0.0
  %3448 = vmatpush1.msra.mxu0 0.0
  %3449 = vmatprep.mubr.f32.mxu0 0.0
  %3450 = vmatmul.mubr.f32.gmra.mrb[0].mxu0 %v62
  %v3451 = vpop.f32.mrb[0].mxu0
  %v3452 = vadd.f32 0.0, %v3451
  %v3453 = vpop.f32.mrb[0].mxu0
  %v3454 = vadd.f32 0.0, %v3453
  %3455 = vdwg.mxu0
  %3456 = vmatprep.subr.mxu0 %v3379
  %3457 = vmatpush1.msra.mxu0 %v3378
  %3458 = vmatprep.subr.mxu0 0.0
  %3459 = vmatpush1.msra.mxu0 0.0
  %3460 = vmatprep.subr.mxu0 0.0
  %3461 = vmatpush1.msra.mxu0 0.0
  %3462 = vmatprep.subr.mxu0 0.0
  %3463 = vmatpush1.msra.mxu0 0.0
  %3464 = vmatprep.subr.mxu0 0.0
  %3465 = vmatpush1.msra.mxu0 0.0
  %3466 = vmatprep.subr.mxu0 0.0
  %3467 = vmatpush1.msra.mxu0 0.0
  %3468 = vmatprep.subr.mxu0 0.0
  %3469 = vmatpush1.msra.mxu0 0.0
  %3470 = vmatprep.subr.mxu0 0.0
  %3471 = vmatpush1.msra.mxu0 0.0
  %3472 = vmatprep.subr.mxu0 0.0
  %3473 = vmatpush1.msra.mxu0 0.0
  %3474 = vmatprep.subr.mxu0 0.0
  %3475 = vmatpush1.msra.mxu0 0.0
  %3476 = vmatprep.subr.mxu0 0.0
  %3477 = vmatpush1.msra.mxu0 0.0
  %3478 = vmatprep.subr.mxu0 0.0
  %3479 = vmatpush1.msra.mxu0 0.0
  %3480 = vmatprep.subr.mxu0 0.0
  %3481 = vmatpush1.msra.mxu0 0.0
  %3482 = vmatprep.subr.mxu0 0.0
  %3483 = vmatpush1.msra.mxu0 0.0
  %3484 = vmatprep.subr.mxu0 0.0
  %3485 = vmatpush1.msra.mxu0 0.0
  %3486 = vmatprep.subr.mxu0 0.0
  %3487 = vmatpush1.msra.mxu0 0.0
  %3488 = vmatprep.subr.mxu0 0.0
  %3489 = vmatpush1.msra.mxu0 0.0
  %3490 = vmatprep.subr.mxu0 0.0
  %3491 = vmatpush1.msra.mxu0 0.0
  %3492 = vmatprep.subr.mxu0 0.0
  %3493 = vmatpush1.msra.mxu0 0.0
  %3494 = vmatprep.subr.mxu0 0.0
  %3495 = vmatpush1.msra.mxu0 0.0
  %3496 = vmatprep.subr.mxu0 0.0
  %3497 = vmatpush1.msra.mxu0 0.0
  %3498 = vmatprep.subr.mxu0 0.0
  %3499 = vmatpush1.msra.mxu0 0.0
  %3500 = vmatprep.subr.mxu0 0.0
  %3501 = vmatpush1.msra.mxu0 0.0
  %3502 = vmatprep.subr.mxu0 0.0
  %3503 = vmatpush1.msra.mxu0 0.0
  %3504 = vmatprep.subr.mxu0 0.0
  %3505 = vmatpush1.msra.mxu0 0.0
  %3506 = vmatprep.subr.mxu0 0.0
  %3507 = vmatpush1.msra.mxu0 0.0
  %3508 = vmatprep.subr.mxu0 0.0
  %3509 = vmatpush1.msra.mxu0 0.0
  %3510 = vmatprep.subr.mxu0 0.0
  %3511 = vmatpush1.msra.mxu0 0.0
  %3512 = vmatprep.subr.mxu0 0.0
  %3513 = vmatpush1.msra.mxu0 0.0
  %3514 = vmatprep.subr.mxu0 0.0
  %3515 = vmatpush1.msra.mxu0 0.0
  %3516 = vmatprep.subr.mxu0 0.0
  %3517 = vmatpush1.msra.mxu0 0.0
  %3518 = vmatprep.subr.mxu0 0.0
  %3519 = vmatpush1.msra.mxu0 0.0
  %3520 = vmatprep.mubr.f32.mxu0 0.0
  %3521 = vmatmul.mubr.f32.gmra.mrb[0].mxu0 %v62
  %v3522 = vpop.f32.mrb[0].mxu0
  %v3523 = vadd.f32 0.0, %v3522
  %v3524 = vpop.f32.mrb[0].mxu0
  %v3525 = vadd.f32 0.0, %v3524
  %3526 = vdwg.mxu0
  %3527 = vmatprep.subr.mxu0 %v3381
  %3528 = vmatpush1.msra.mxu0 %v3380
  %3529 = vmatprep.subr.mxu0 0.0
  %3530 = vmatpush1.msra.mxu0 0.0
  %3531 = vmatprep.subr.mxu0 0.0
  %3532 = vmatpush1.msra.mxu0 0.0
  %3533 = vmatprep.subr.mxu0 0.0
  %3534 = vmatpush1.msra.mxu0 0.0
  %3535 = vmatprep.subr.mxu0 0.0
  %3536 = vmatpush1.msra.mxu0 0.0
  %3537 = vmatprep.subr.mxu0 0.0
  %3538 = vmatpush1.msra.mxu0 0.0
  %3539 = vmatprep.subr.mxu0 0.0
  %3540 = vmatpush1.msra.mxu0 0.0
  %3541 = vmatprep.subr.mxu0 0.0
  %3542 = vmatpush1.msra.mxu0 0.0
  %3543 = vmatprep.subr.mxu0 0.0
  %3544 = vmatpush1.msra.mxu0 0.0
  %3545 = vmatprep.subr.mxu0 0.0
  %3546 = vmatpush1.msra.mxu0 0.0
  %3547 = vmatprep.subr.mxu0 0.0
  %3548 = vmatpush1.msra.mxu0 0.0
  %3549 = vmatprep.subr.mxu0 0.0
  %3550 = vmatpush1.msra.mxu0 0.0
  %3551 = vmatprep.subr.mxu0 0.0
  %3552 = vmatpush1.msra.mxu0 0.0
  %3553 = vmatprep.subr.mxu0 0.0
  %3554 = vmatpush1.msra.mxu0 0.0
  %3555 = vmatprep.subr.mxu0 0.0
  %3556 = vmatpush1.msra.mxu0 0.0
  %3557 = vmatprep.subr.mxu0 0.0
  %3558 = vmatpush1.msra.mxu0 0.0
  %3559 = vmatprep.subr.mxu0 0.0
  %3560 = vmatpush1.msra.mxu0 0.0
  %3561 = vmatprep.subr.mxu0 0.0
  %3562 = vmatpush1.msra.mxu0 0.0
  %3563 = vmatprep.subr.mxu0 0.0
  %3564 = vmatpush1.msra.mxu0 0.0
  %3565 = vmatprep.subr.mxu0 0.0
  %3566 = vmatpush1.msra.mxu0 0.0
  %3567 = vmatprep.subr.mxu0 0.0
  %3568 = vmatpush1.msra.mxu0 0.0
  %3569 = vmatprep.subr.mxu0 0.0
  %3570 = vmatpush1.msra.mxu0 0.0
  %3571 = vmatprep.subr.mxu0 0.0
  %3572 = vmatpush1.msra.mxu0 0.0
  %3573 = vmatprep.subr.mxu0 0.0
  %3574 = vmatpush1.msra.mxu0 0.0
  %3575 = vmatprep.subr.mxu0 0.0
  %3576 = vmatpush1.msra.mxu0 0.0
  %3577 = vmatprep.subr.mxu0 0.0
  %3578 = vmatpush1.msra.mxu0 0.0
  %3579 = vmatprep.subr.mxu0 0.0
  %3580 = vmatpush1.msra.mxu0 0.0
  %3581 = vmatprep.subr.mxu0 0.0
  %3582 = vmatpush1.msra.mxu0 0.0
  %3583 = vmatprep.subr.mxu0 0.0
  %3584 = vmatpush1.msra.mxu0 0.0
  %3585 = vmatprep.subr.mxu0 0.0
  %3586 = vmatpush1.msra.mxu0 0.0
  %3587 = vmatprep.subr.mxu0 0.0
  %3588 = vmatpush1.msra.mxu0 0.0
  %3589 = vmatprep.subr.mxu0 0.0
  %3590 = vmatpush1.msra.mxu0 0.0
  %3591 = vmatprep.mubr.f32.mxu0 0.0
  %3592 = vmatmul.mubr.f32.gmra.mrb[0].mxu0 %v62
  %v3593 = vpop.f32.mrb[0].mxu0
  %v3594 = vadd.f32 0.0, %v3593
  %v3595 = vpop.f32.mrb[0].mxu0
  %v3596 = vadd.f32 0.0, %v3595
  %3597 = vdwg.mxu0
  %3598 = vmatprep.subr.mxu0 %v3383
  %3599 = vmatpush1.msra.mxu0 %v3382
  %3600 = vmatprep.subr.mxu0 0.0
  %3601 = vmatpush1.msra.mxu0 0.0
  %3602 = vmatprep.subr.mxu0 0.0
  %3603 = vmatpush1.msra.mxu0 0.0
  %3604 = vmatprep.subr.mxu0 0.0
  %3605 = vmatpush1.msra.mxu0 0.0
  %3606 = vmatprep.subr.mxu0 0.0
  %3607 = vmatpush1.msra.mxu0 0.0
  %3608 = vmatprep.subr.mxu0 0.0
  %3609 = vmatpush1.msra.mxu0 0.0
  %3610 = vmatprep.subr.mxu0 0.0
  %3611 = vmatpush1.msra.mxu0 0.0
  %3612 = vmatprep.subr.mxu0 0.0
  %3613 = vmatpush1.msra.mxu0 0.0
  %3614 = vmatprep.subr.mxu0 0.0
  %3615 = vmatpush1.msra.mxu0 0.0
  %3616 = vmatprep.subr.mxu0 0.0
  %3617 = vmatpush1.msra.mxu0 0.0
  %3618 = vmatprep.subr.mxu0 0.0
  %3619 = vmatpush1.msra.mxu0 0.0
  %3620 = vmatprep.subr.mxu0 0.0
  %3621 = vmatpush1.msra.mxu0 0.0
  %3622 = vmatprep.subr.mxu0 0.0
  %3623 = vmatpush1.msra.mxu0 0.0
  %3624 = vmatprep.subr.mxu0 0.0
  %3625 = vmatpush1.msra.mxu0 0.0
  %3626 = vmatprep.subr.mxu0 0.0
  %3627 = vmatpush1.msra.mxu0 0.0
  %3628 = vmatprep.subr.mxu0 0.0
  %3629 = vmatpush1.msra.mxu0 0.0
  %3630 = vmatprep.subr.mxu0 0.0
  %3631 = vmatpush1.msra.mxu0 0.0
  %3632 = vmatprep.subr.mxu0 0.0
  %3633 = vmatpush1.msra.mxu0 0.0
  %3634 = vmatprep.subr.mxu0 0.0
  %3635 = vmatpush1.msra.mxu0 0.0
  %3636 = vmatprep.subr.mxu0 0.0
  %3637 = vmatpush1.msra.mxu0 0.0
  %3638 = vmatprep.subr.mxu0 0.0
  %3639 = vmatpush1.msra.mxu0 0.0
  %3640 = vmatprep.subr.mxu0 0.0
  %3641 = vmatpush1.msra.mxu0 0.0
  %3642 = vmatprep.subr.mxu0 0.0
  %3643 = vmatpush1.msra.mxu0 0.0
  %3644 = vmatprep.subr.mxu0 0.0
  %3645 = vmatpush1.msra.mxu0 0.0
  %3646 = vmatprep.subr.mxu0 0.0
  %3647 = vmatpush1.msra.mxu0 0.0
  %3648 = vmatprep.subr.mxu0 0.0
  %3649 = vmatpush1.msra.mxu0 0.0
  %3650 = vmatprep.subr.mxu0 0.0
  %3651 = vmatpush1.msra.mxu0 0.0
  %3652 = vmatprep.subr.mxu0 0.0
  %3653 = vmatpush1.msra.mxu0 0.0
  %3654 = vmatprep.subr.mxu0 0.0
  %3655 = vmatpush1.msra.mxu0 0.0
  %3656 = vmatprep.subr.mxu0 0.0
  %3657 = vmatpush1.msra.mxu0 0.0
  %3658 = vmatprep.subr.mxu0 0.0
  %3659 = vmatpush1.msra.mxu0 0.0
  %3660 = vmatprep.subr.mxu0 0.0
  %3661 = vmatpush1.msra.mxu0 0.0
  %3662 = vmatprep.mubr.f32.mxu0 0.0
  %3663 = vmatmul.mubr.f32.gmra.mrb[0].mxu0 %v62
  %v3664 = vpop.f32.mrb[0].mxu0
  %v3665 = vadd.f32 0.0, %v3664
  %v3666 = vpop.f32.mrb[0].mxu0
  %v3667 = vadd.f32 0.0, %v3666
  %3668 = vdwg.mxu0
  %3669 = vmatprep.subr.mxu0 0.0
  %3670 = vmatpush1.msra.mxu0 %v3384
  %3671 = vmatprep.subr.mxu0 0.0
  %3672 = vmatpush1.msra.mxu0 0.0
  %3673 = vmatprep.subr.mxu0 0.0
  %3674 = vmatpush1.msra.mxu0 0.0
  %3675 = vmatprep.subr.mxu0 0.0
  %3676 = vmatpush1.msra.mxu0 0.0
  %3677 = vmatprep.subr.mxu0 0.0
  %3678 = vmatpush1.msra.mxu0 0.0
  %3679 = vmatprep.subr.mxu0 0.0
  %3680 = vmatpush1.msra.mxu0 0.0
  %3681 = vmatprep.subr.mxu0 0.0
  %3682 = vmatpush1.msra.mxu0 0.0
  %3683 = vmatprep.subr.mxu0 0.0
  %3684 = vmatpush1.msra.mxu0 0.0
  %3685 = vmatprep.subr.mxu0 0.0
  %3686 = vmatpush1.msra.mxu0 0.0
  %3687 = vmatprep.subr.mxu0 0.0
  %3688 = vmatpush1.msra.mxu0 0.0
  %3689 = vmatprep.subr.mxu0 0.0
  %3690 = vmatpush1.msra.mxu0 0.0
  %3691 = vmatprep.subr.mxu0 0.0
  %3692 = vmatpush1.msra.mxu0 0.0
  %3693 = vmatprep.subr.mxu0 0.0
  %3694 = vmatpush1.msra.mxu0 0.0
  %3695 = vmatprep.subr.mxu0 0.0
  %3696 = vmatpush1.msra.mxu0 0.0
  %3697 = vmatprep.subr.mxu0 0.0
  %3698 = vmatpush1.msra.mxu0 0.0
  %3699 = vmatprep.subr.mxu0 0.0
  %3700 = vmatpush1.msra.mxu0 0.0
  %3701 = vmatprep.subr.mxu0 0.0
  %3702 = vmatpush1.msra.mxu0 0.0
  %3703 = vmatprep.subr.mxu0 0.0
  %3704 = vmatpush1.msra.mxu0 0.0
  %3705 = vmatprep.subr.mxu0 0.0
  %3706 = vmatpush1.msra.mxu0 0.0
  %3707 = vmatprep.subr.mxu0 0.0
  %3708 = vmatpush1.msra.mxu0 0.0
  %3709 = vmatprep.subr.mxu0 0.0
  %3710 = vmatpush1.msra.mxu0 0.0
  %3711 = vmatprep.subr.mxu0 0.0
  %3712 = vmatpush1.msra.mxu0 0.0
  %3713 = vmatprep.subr.mxu0 0.0
  %3714 = vmatpush1.msra.mxu0 0.0
  %3715 = vmatprep.subr.mxu0 0.0
  %3716 = vmatpush1.msra.mxu0 0.0
  %3717 = vmatprep.subr.mxu0 0.0
  %3718 = vmatpush1.msra.mxu0 0.0
  %3719 = vmatprep.subr.mxu0 0.0
  %3720 = vmatpush1.msra.mxu0 0.0
  %3721 = vmatprep.subr.mxu0 0.0
  %3722 = vmatpush1.msra.mxu0 0.0
  %3723 = vmatprep.subr.mxu0 0.0
  %3724 = vmatpush1.msra.mxu0 0.0
  %3725 = vmatprep.subr.mxu0 0.0
  %3726 = vmatpush1.msra.mxu0 0.0
  %3727 = vmatprep.subr.mxu0 0.0
  %3728 = vmatpush1.msra.mxu0 0.0
  %3729 = vmatprep.subr.mxu0 0.0
  %3730 = vmatpush1.msra.mxu0 0.0
  %3731 = vmatprep.subr.mxu0 0.0
  %3732 = vmatpush1.msra.mxu0 0.0
  %3733 = vmatprep.mubr.f32.mxu0 0.0
  %3734 = vmatmul.mubr.f32.gmra.mrb[0].mxu0 %v62
  %v3735 = vpop.f32.mrb[0].mxu0
  %v3736 = vadd.f32 0.0, %v3735
  %v3737 = vpop.f32.mrb[0].mxu0
  %3738 = vdwg.mxu0
  %v3739 = vadd.f32 %v3452, %v3454
  %v3740 = vadd.f32 %v3739, %v3523
  %v3741 = vadd.f32 %v3740, %v3525
  %v3742 = vadd.f32 %v3741, %v3594
  %v3743 = vadd.f32 %v3742, %v3596
  %v3744 = vadd.f32 %v3743, %v3665
  %v3745 = vadd.f32 %v3744, %v3667
  %v3746 = vadd.f32 %v3745, %v3736
  %3747 = vadd.xlane.f32.xlu0 %v3746
  %v3748 = vpop.xlane.xlu0 %3747
  %v3749 = vmul.f32 %v3748, 0.0009765625
  %v3750 = vld [vmem:[%s8] sm:$0xff]
  %v3751 = vadd.f32 %v3749, 1e-05
  %v3752 = vrsqrt.pop %v3751
  %v3753 = vmul.f32 %v3750, %v3752
  %3755 = vset.pattern.permute.xlu0 0
  %3756 = vperm.xlu0 %3755, %v3753
  %v3757 = vpop.permute.xlu0 %3756
  %v3759 = vmul.f32 %v3367, %v3757
  %v3760 = vmul.f32 %v3368, %v3757
  %v3761 = vmul.f32 %v3369, %v3757
  %v3762 = vmul.f32 %v3370, %v3757
  %v3763 = vmul.f32 %v3371, %v3757
  %v3764 = vmul.f32 %v3372, %v3757
  %v3765 = vmul.f32 %v3373, %v3757
  %v3766 = vmul.f32 %v3374, %v3757
  %v3767 = vmul.f32 %v3375, %v3757
  %v3768 = vld [vmem:[%s9] sm:$0xff]
  %3770 = vset.pattern.permute.xlu0 0
  %3771 = vperm.xlu0 %3770, %v3768
  %v3772 = vpop.permute.xlu0 %3771
  %v3774 = vadd.f32 %v3759, %v3772
  %v3775 = vadd.f32 %v3760, %v3772
  %v3776 = vadd.f32 %v3761, %v3772
  %v3777 = vadd.f32 %v3762, %v3772
  %v3778 = vadd.f32 %v3763, %v3772
  %v3779 = vadd.f32 %v3764, %v3772
  %v3780 = vadd.f32 %v3765, %v3772
  %v3781 = vadd.f32 %v3766, %v3772
  %v3782 = vadd.f32 %v3767, %v3772
  %vm3783 = vcmp.ge.f32.partialorder %v3774, 0.0
  %vm3784 = vcmp.ge.f32.partialorder %v3775, 0.0
  %vm3785 = vcmp.ge.f32.partialorder %v3776, 0.0
  %vm3786 = vcmp.ge.f32.partialorder %v3777, 0.0
  %vm3787 = vcmp.ge.f32.partialorder %v3778, 0.0
  %vm3788 = vcmp.ge.f32.partialorder %v3779, 0.0
  %vm3789 = vcmp.ge.f32.partialorder %v3780, 0.0
  %vm3790 = vcmp.ge.f32.partialorder %v3781, 0.0
  %vm3791 = vcmp.ge.f32.partialorder %v3782, 0.0
  %v3792 = vmul.f32 %v3774, 0.01
  %v3793 = vmul.f32 %v3775, 0.01
  %v3794 = vmul.f32 %v3776, 0.01
  %v3795 = vmul.f32 %v3777, 0.01
  %v3796 = vmul.f32 %v3778, 0.01
  %v3797 = vmul.f32 %v3779, 0.01
  %v3798 = vmul.f32 %v3780, 0.01
  %v3799 = vmul.f32 %v3781, 0.01
  %v3800 = vmul.f32 %v3782, 0.01
  %v3801 = vsel %vm3783, %v3774, %v3792
  %v3802 = vsel %vm3784, %v3775, %v3793
  %v3803 = vsel %vm3785, %v3776, %v3794
  %v3804 = vsel %vm3786, %v3777, %v3795
  %v3805 = vsel %vm3787, %v3778, %v3796
  %v3806 = vsel %vm3788, %v3779, %v3797
  %v3807 = vsel %vm3789, %v3780, %v3798
  %v3808 = vsel %vm3790, %v3781, %v3799
  %v3809 = vsel %vm3791, %v3782, %v3800
  %3810 = vst [vmem:[#allocation3] sm:$0xff] %v3801
  %3811 = vst [vmem:[#allocation3 + $0x8] sm:$0xff] %v3802
  %3812 = vst [vmem:[#allocation3 + $0x10] sm:$0xff] %v3803
  %3813 = vst [vmem:[#allocation3 + $0x18] sm:$0xff] %v3804
  %3814 = vst [vmem:[#allocation3 + $0x20] sm:$0xff] %v3805
  %3815 = vst [vmem:[#allocation3 + $0x28] sm:$0xff] %v3806
  %3816 = vst [vmem:[#allocation3 + $0x30] sm:$0xff] %v3807
  %3817 = vst [vmem:[#allocation3 + $0x38] sm:$0xff] %v3808
  %3818 = vst [vmem:[#allocation3 + $0x40] sm:$0xff] %v3809
  %3819 = vrot.lane.b32.xlu0 %v3801, 127
  %v3820 = vpop.permute.xlu0 %3819
  %3821 = vrot.lane.b32.xlu0 %v3802, 127
  %v3822 = vpop.permute.xlu0 %3821
  %3823 = vrot.lane.b32.xlu0 %v3803, 127
  %v3824 = vpop.permute.xlu0 %3823
  %3825 = vrot.lane.b32.xlu0 %v3804, 127
  %v3826 = vpop.permute.xlu0 %3825
  %3827 = vrot.lane.b32.xlu0 %v3805, 127
  %v3828 = vpop.permute.xlu0 %3827
  %3829 = vrot.lane.b32.xlu0 %v3806, 127
  %v3830 = vpop.permute.xlu0 %3829
  %3831 = vrot.lane.b32.xlu0 %v3807, 127
  %v3832 = vpop.permute.xlu0 %3831
  %3833 = vrot.lane.b32.xlu0 %v3808, 127
  %v3834 = vpop.permute.xlu0 %3833
  %3835 = vrot.lane.b32.xlu0 %v3809, 127
  %v3836 = vpop.permute.xlu0 %3835
  %vm3837 = vcmp.lt.s32.totalorder %v1333, 127
  %v3838 = vsel %vm3837, %v3834, %v3836
  %v3839 = vsel %vm3837, %v3832, %v3834
  %v3840 = vsel %vm3837, %v3830, %v3832
  %v3841 = vsel %vm3837, %v3828, %v3830
  %v3842 = vsel %vm3837, %v3826, %v3828
  %v3843 = vsel %vm3837, %v3824, %v3826
  %v3844 = vsel %vm3837, %v3822, %v3824
  %v3845 = vsel %vm3837, %v3820, %v3822
  %v3846 = vsel %vm3837, %v3836, %v3820
  %3847 = vst [vmem:[#allocation3 + $0x48] sm:$0xff] %v3845
  %3848 = vst [vmem:[#allocation3 + $0x50] sm:$0xff] %v3844
  %3849 = vst [vmem:[#allocation3 + $0x58] sm:$0xff] %v3843
  %3850 = vst [vmem:[#allocation3 + $0x60] sm:$0xff] %v3842
  %3851 = vst [vmem:[#allocation3 + $0x68] sm:$0xff] %v3841
  %3852 = vst [vmem:[#allocation3 + $0x70] sm:$0xff] %v3840
  %3853 = vst [vmem:[#allocation3 + $0x78] sm:$0xff] %v3839
  %3854 = vst [vmem:[#allocation3 + $0x80] sm:$0xff] %v3838
  %3855 = vst [vmem:[#allocation3 + $0x88] sm:$0xff] %v3846
  %3856 = vrot.lane.b32.xlu0 %v3801, 116
  %v3857 = vpop.permute.xlu0 %3856
  %3858 = vrot.lane.b32.xlu0 %v3802, 116
  %v3859 = vpop.permute.xlu0 %3858
  %3860 = vrot.lane.b32.xlu0 %v3803, 116
  %v3861 = vpop.permute.xlu0 %3860
  %3862 = vrot.lane.b32.xlu0 %v3804, 116
  %v3863 = vpop.permute.xlu0 %3862
  %3864 = vrot.lane.b32.xlu0 %v3805, 116
  %v3865 = vpop.permute.xlu0 %3864
  %3866 = vrot.lane.b32.xlu0 %v3806, 116
  %v3867 = vpop.permute.xlu0 %3866
  %3868 = vrot.lane.b32.xlu0 %v3807, 116
  %v3869 = vpop.permute.xlu0 %3868
  %3870 = vrot.lane.b32.xlu0 %v3808, 116
  %v3871 = vpop.permute.xlu0 %3870
  %3872 = vrot.lane.b32.xlu0 %v3809, 116
  %v3873 = vpop.permute.xlu0 %3872
  %vm3874 = vcmp.lt.s32.totalorder %v1333, 116
  %v3875 = vsel %vm3874, %v3871, %v3873
  %v3876 = vsel %vm3874, %v3869, %v3871
  %v3877 = vsel %vm3874, %v3867, %v3869
  %v3878 = vsel %vm3874, %v3865, %v3867
  %v3879 = vsel %vm3874, %v3863, %v3865
  %v3880 = vsel %vm3874, %v3861, %v3863
  %v3881 = vsel %vm3874, %v3859, %v3861
  %v3882 = vsel %vm3874, %v3857, %v3859
  %v3883 = vsel %vm3874, %v3873, %v3857
  %3884 = vst [vmem:[#allocation3 + $0x90] sm:$0xff] %v3882
  %3885 = vst [vmem:[#allocation3 + $0x98] sm:$0xff] %v3881
  %3886 = vst [vmem:[#allocation3 + $0xa0] sm:$0xff] %v3880
  %3887 = vst [vmem:[#allocation3 + $0xa8] sm:$0xff] %v3879
  %3888 = vst [vmem:[#allocation3 + $0xb0] sm:$0xff] %v3878
  %3889 = vst [vmem:[#allocation3 + $0xb8] sm:$0xff] %v3877
  %3890 = vst [vmem:[#allocation3 + $0xc0] sm:$0xff] %v3876
  %3891 = vst [vmem:[#allocation3 + $0xc8] sm:$0xff] %v3875
  %3892 = vst [vmem:[#allocation3 + $0xd0] sm:$0xff] %v3883
  %3893 = vrot.lane.b32.xlu0 %v3801, 115
  %v3894 = vpop.permute.xlu0 %3893
  %3895 = vrot.lane.b32.xlu0 %v3802, 115
  %v3896 = vpop.permute.xlu0 %3895
  %3897 = vrot.lane.b32.xlu0 %v3803, 115
  %v3898 = vpop.permute.xlu0 %3897
  %3899 = vrot.lane.b32.xlu0 %v3804, 115
  %v3900 = vpop.permute.xlu0 %3899
  %3901 = vrot.lane.b32.xlu0 %v3805, 115
  %v3902 = vpop.permute.xlu0 %3901
  %3903 = vrot.lane.b32.xlu0 %v3806, 115
  %v3904 = vpop.permute.xlu0 %3903
  %3905 = vrot.lane.b32.xlu0 %v3807, 115
  %v3906 = vpop.permute.xlu0 %3905
  %3907 = vrot.lane.b32.xlu0 %v3808, 115
  %v3908 = vpop.permute.xlu0 %3907
  %3909 = vrot.lane.b32.xlu0 %v3809, 115
  %v3910 = vpop.permute.xlu0 %3909
  %vm3911 = vcmp.lt.s32.totalorder %v1333, 115
  %v3912 = vsel %vm3911, %v3908, %v3910
  %v3913 = vsel %vm3911, %v3906, %v3908
  %v3914 = vsel %vm3911, %v3904, %v3906
  %v3915 = vsel %vm3911, %v3902, %v3904
  %v3916 = vsel %vm3911, %v3900, %v3902
  %v3917 = vsel %vm3911, %v3898, %v3900
  %v3918 = vsel %vm3911, %v3896, %v3898
  %v3919 = vsel %vm3911, %v3894, %v3896
  %v3920 = vsel %vm3911, %v3910, %v3894
  %3921 = vst [vmem:[#allocation3 + $0xd8] sm:$0xff] %v3919
  %3922 = vst [vmem:[#allocation3 + $0xe0] sm:$0xff] %v3918
  %3923 = vst [vmem:[#allocation3 + $0xe8] sm:$0xff] %v3917
  %3924 = vst [vmem:[#allocation3 + $0xf0] sm:$0xff] %v3916
  %3925 = vst [vmem:[#allocation3 + $0xf8] sm:$0xff] %v3915
  %3926 = vst [vmem:[#allocation3 + $0x100] sm:$0xff] %v3914
  %3927 = vst [vmem:[#allocation3 + $0x108] sm:$0xff] %v3913
  %3928 = vst [vmem:[#allocation3 + $0x110] sm:$0xff] %v3912
  %3929 = vst [vmem:[#allocation3 + $0x118] sm:$0xff] %v3920
  %3930 = vrot.lane.b32.xlu0 %v3801, 112
  %v3931 = vpop.permute.xlu0 %3930
  %3932 = vrot.lane.b32.xlu0 %v3802, 112
  %v3933 = vpop.permute.xlu0 %3932
  %3934 = vrot.lane.b32.xlu0 %v3803, 112
  %v3935 = vpop.permute.xlu0 %3934
  %3936 = vrot.lane.b32.xlu0 %v3804, 112
  %v3937 = vpop.permute.xlu0 %3936
  %3938 = vrot.lane.b32.xlu0 %v3805, 112
  %v3939 = vpop.permute.xlu0 %3938
  %3940 = vrot.lane.b32.xlu0 %v3806, 112
  %v3941 = vpop.permute.xlu0 %3940
  %3942 = vrot.lane.b32.xlu0 %v3807, 112
  %v3943 = vpop.permute.xlu0 %3942
  %3944 = vrot.lane.b32.xlu0 %v3808, 112
  %v3945 = vpop.permute.xlu0 %3944
  %3946 = vrot.lane.b32.xlu0 %v3809, 112
  %v3947 = vpop.permute.xlu0 %3946
  %vm3948 = vcmp.lt.s32.totalorder %v1333, 112
  %v3949 = vsel %vm3948, %v3945, %v3947
  %v3950 = vsel %vm3948, %v3943, %v3945
  %v3951 = vsel %vm3948, %v3941, %v3943
  %v3952 = vsel %vm3948, %v3939, %v3941
  %v3953 = vsel %vm3948, %v3937, %v3939
  %v3954 = vsel %vm3948, %v3935, %v3937
  %v3955 = vsel %vm3948, %v3933, %v3935
  %v3956 = vsel %vm3948, %v3931, %v3933
  %v3957 = vsel %vm3948, %v3947, %v3931
  %3958 = vst [vmem:[#allocation3 + $0x120] sm:$0xff] %v3955
  %3959 = vst [vmem:[#allocation3 + $0x128] sm:$0xff] %v3954
  %3960 = vst [vmem:[#allocation3 + $0x130] sm:$0xff] %v3953
  %3961 = vst [vmem:[#allocation3 + $0x138] sm:$0xff] %v3952
  %3962 = vst [vmem:[#allocation3 + $0x140] sm:$0xff] %v3951
  %3963 = vst [vmem:[#allocation3 + $0x148] sm:$0xff] %v3950
  %3964 = vst [vmem:[#allocation3 + $0x150] sm:$0xff] %v3949
  %3965 = vst [vmem:[#allocation3 + $0x158] sm:$0xff] %v3957
  %3966 = vst [vmem:[#allocation3 + $0x160] sm:$0xff] %v3956
  %3967 = vrot.lane.b32.xlu0 %v3801, 111
  %v3968 = vpop.permute.xlu0 %3967
  %3969 = vrot.lane.b32.xlu0 %v3802, 111
  %v3970 = vpop.permute.xlu0 %3969
  %3971 = vrot.lane.b32.xlu0 %v3803, 111
  %v3972 = vpop.permute.xlu0 %3971
  %3973 = vrot.lane.b32.xlu0 %v3804, 111
  %v3974 = vpop.permute.xlu0 %3973
  %3975 = vrot.lane.b32.xlu0 %v3805, 111
  %v3976 = vpop.permute.xlu0 %3975
  %3977 = vrot.lane.b32.xlu0 %v3806, 111
  %v3978 = vpop.permute.xlu0 %3977
  %3979 = vrot.lane.b32.xlu0 %v3807, 111
  %v3980 = vpop.permute.xlu0 %3979
  %3981 = vrot.lane.b32.xlu0 %v3808, 111
  %v3982 = vpop.permute.xlu0 %3981
  %3983 = vrot.lane.b32.xlu0 %v3809, 111
  %v3984 = vpop.permute.xlu0 %3983
  %vm3985 = vcmp.lt.s32.totalorder %v1333, 111
  %v3986 = vsel %vm3985, %v3982, %v3984
  %v3987 = vsel %vm3985, %v3980, %v3982
  %v3988 = vsel %vm3985, %v3978, %v3980
  %v3989 = vsel %vm3985, %v3976, %v3978
  %v3990 = vsel %vm3985, %v3974, %v3976
  %v3991 = vsel %vm3985, %v3972, %v3974
  %v3992 = vsel %vm3985, %v3970, %v3972
  %v3993 = vsel %vm3985, %v3968, %v3970
  %v3994 = vsel %vm3985, %v3984, %v3968
  %3995 = vst [vmem:[#allocation3 + $0x168] sm:$0xff] %v3992
  %3996 = vst [vmem:[#allocation3 + $0x170] sm:$0xff] %v3991
  %3997 = vst [vmem:[#allocation3 + $0x178] sm:$0xff] %v3990
  %3998 = vst [vmem:[#allocation3 + $0x180] sm:$0xff] %v3989
  %3999 = vst [vmem:[#allocation3 + $0x188] sm:$0xff] %v3988
  %4000 = vst [vmem:[#allocation3 + $0x190] sm:$0xff] %v3987
  %4001 = vst [vmem:[#allocation3 + $0x198] sm:$0xff] %v3986
  %4002 = vst [vmem:[#allocation3 + $0x1a0] sm:$0xff] %v3994
  %4003 = vst [vmem:[#allocation3 + $0x1a8] sm:$0xff] %v3993
  %4004 = vrot.lane.b32.xlu0 %v3801, 100
  %v4005 = vpop.permute.xlu0 %4004
  %4006 = vrot.lane.b32.xlu0 %v3802, 100
  %v4007 = vpop.permute.xlu0 %4006
  %4008 = vrot.lane.b32.xlu0 %v3803, 100
  %v4009 = vpop.permute.xlu0 %4008
  %4010 = vrot.lane.b32.xlu0 %v3804, 100
  %v4011 = vpop.permute.xlu0 %4010
  %4012 = vrot.lane.b32.xlu0 %v3805, 100
  %v4013 = vpop.permute.xlu0 %4012
  %4014 = vrot.lane.b32.xlu0 %v3806, 100
  %v4015 = vpop.permute.xlu0 %4014
  %4016 = vrot.lane.b32.xlu0 %v3807, 100
  %v4017 = vpop.permute.xlu0 %4016
  %4018 = vrot.lane.b32.xlu0 %v3808, 100
  %v4019 = vpop.permute.xlu0 %4018
  %4020 = vrot.lane.b32.xlu0 %v3809, 100
  %v4021 = vpop.permute.xlu0 %4020
  %v4022 = vsel %vm1490, %v4019, %v4021
  %v4023 = vsel %vm1490, %v4017, %v4019
  %v4024 = vsel %vm1490, %v4015, %v4017
  %v4025 = vsel %vm1490, %v4013, %v4015
  %v4026 = vsel %vm1490, %v4011, %v4013
  %v4027 = vsel %vm1490, %v4009, %v4011
  %v4028 = vsel %vm1490, %v4007, %v4009
  %v4029 = vsel %vm1490, %v4005, %v4007
  %v4030 = vsel %vm1490, %v4021, %v4005
  %4031 = vst [vmem:[#allocation3 + $0x1b0] sm:$0xff] %v4028
  %4032 = vst [vmem:[#allocation3 + $0x1b8] sm:$0xff] %v4027
  %4033 = vst [vmem:[#allocation3 + $0x1c0] sm:$0xff] %v4026
  %4034 = vst [vmem:[#allocation3 + $0x1c8] sm:$0xff] %v4025
  %4035 = vst [vmem:[#allocation3 + $0x1d0] sm:$0xff] %v4024
  %4036 = vst [vmem:[#allocation3 + $0x1d8] sm:$0xff] %v4023
  %4037 = vst [vmem:[#allocation3 + $0x1e0] sm:$0xff] %v4022
  %4038 = vst [vmem:[#allocation3 + $0x1e8] sm:$0xff] %v4030
  %4039 = vst [vmem:[#allocation3 + $0x1f0] sm:$0xff] %v4029
  %4040 = vrot.lane.b32.xlu0 %v3801, 99
  %v4041 = vpop.permute.xlu0 %4040
  %4042 = vrot.lane.b32.xlu0 %v3802, 99
  %v4043 = vpop.permute.xlu0 %4042
  %4044 = vrot.lane.b32.xlu0 %v3803, 99
  %v4045 = vpop.permute.xlu0 %4044
  %4046 = vrot.lane.b32.xlu0 %v3804, 99
  %v4047 = vpop.permute.xlu0 %4046
  %4048 = vrot.lane.b32.xlu0 %v3805, 99
  %v4049 = vpop.permute.xlu0 %4048
  %4050 = vrot.lane.b32.xlu0 %v3806, 99
  %v4051 = vpop.permute.xlu0 %4050
  %4052 = vrot.lane.b32.xlu0 %v3807, 99
  %v4053 = vpop.permute.xlu0 %4052
  %4054 = vrot.lane.b32.xlu0 %v3808, 99
  %v4055 = vpop.permute.xlu0 %4054
  %4056 = vrot.lane.b32.xlu0 %v3809, 99
  %v4057 = vpop.permute.xlu0 %4056
  %vm4058 = vcmp.lt.s32.totalorder %v1333, 99
  %v4059 = vsel %vm4058, %v4055, %v4057
  %v4060 = vsel %vm4058, %v4053, %v4055
  %v4061 = vsel %vm4058, %v4051, %v4053
  %v4062 = vsel %vm4058, %v4049, %v4051
  %v4063 = vsel %vm4058, %v4047, %v4049
  %v4064 = vsel %vm4058, %v4045, %v4047
  %v4065 = vsel %vm4058, %v4043, %v4045
  %v4066 = vsel %vm4058, %v4041, %v4043
  %v4067 = vsel %vm4058, %v4057, %v4041
  %4068 = vst [vmem:[#allocation3 + $0x1f8] sm:$0xff] %v4065
  %4069 = vst [vmem:[#allocation3 + $0x200] sm:$0xff] %v4064
  %4070 = vst [vmem:[#allocation3 + $0x208] sm:$0xff] %v4063
  %4071 = vst [vmem:[#allocation3 + $0x210] sm:$0xff] %v4062
  %4072 = vst [vmem:[#allocation3 + $0x218] sm:$0xff] %v4061
  %4073 = vst [vmem:[#allocation3 + $0x220] sm:$0xff] %v4060
  %4074 = vst [vmem:[#allocation3 + $0x228] sm:$0xff] %v4059
  %4075 = vst [vmem:[#allocation3 + $0x230] sm:$0xff] %v4067
  %4076 = vst [vmem:[#allocation3 + $0x238] sm:$0xff] %v4066
  %v4077 = vld [vmem:[%s10] sm:$0xff]
  %v4078 = vld [vmem:[#allocation3] sm:$0xff]
  %v4079 = vld [vmem:[#allocation3 + $0x8] sm:$0xff]
  %v4080 = vld [vmem:[#allocation3 + $0x10] sm:$0xff]
  %v4081 = vld [vmem:[#allocation3 + $0x18] sm:$0xff]
  %v4082 = vld [vmem:[#allocation3 + $0x20] sm:$0xff]
  %v4083 = vld [vmem:[#allocation3 + $0x28] sm:$0xff]
  %v4084 = vld [vmem:[#allocation3 + $0x30] sm:$0xff]
  %v4085 = vld [vmem:[#allocation3 + $0x38] sm:$0xff]
  %v4086 = vld [vmem:[#allocation3 + $0x40] sm:$0xff]
  %v4087 = vld [vmem:[#allocation3 + $0x48] sm:$0xff]
  %v4088 = vld [vmem:[#allocation3 + $0x50] sm:$0xff]
  %v4089 = vld [vmem:[#allocation3 + $0x58] sm:$0xff]
  %v4090 = vld [vmem:[#allocation3 + $0x60] sm:$0xff]
  %v4091 = vld [vmem:[#allocation3 + $0x68] sm:$0xff]
  %v4092 = vld [vmem:[#allocation3 + $0x70] sm:$0xff]
  %v4093 = vld [vmem:[#allocation3 + $0x78] sm:$0xff]
  %v4094 = vld [vmem:[#allocation3 + $0x80] sm:$0xff]
  %v4095 = vld [vmem:[#allocation3 + $0x88] sm:$0xff]
  %v4096 = vld [vmem:[#allocation3 + $0x90] sm:$0xff]
  %v4097 = vld [vmem:[#allocation3 + $0x98] sm:$0xff]
  %v4098 = vld [vmem:[#allocation3 + $0xa0] sm:$0xff]
  %v4099 = vld [vmem:[#allocation3 + $0xa8] sm:$0xff]
  %v4100 = vld [vmem:[#allocation3 + $0xb0] sm:$0xff]
  %v4101 = vld [vmem:[#allocation3 + $0xb8] sm:$0xff]
  %v4102 = vld [vmem:[#allocation3 + $0xc0] sm:$0xff]
  %v4103 = vld [vmem:[#allocation3 + $0xc8] sm:$0xff]
  %v4104 = vld [vmem:[#allocation3 + $0xd0] sm:$0xff]
  %v4105 = vld [vmem:[#allocation3 + $0xd8] sm:$0xff]
  %v4106 = vld [vmem:[#allocation3 + $0xe0] sm:$0xff]
  %v4107 = vld [vmem:[#allocation3 + $0xe8] sm:$0xff]
  %v4108 = vld [vmem:[#allocation3 + $0xf0] sm:$0xff]
  %v4109 = vld [vmem:[#allocation3 + $0xf8] sm:$0xff]
  %v4110 = vld [vmem:[#allocation3 + $0x100] sm:$0xff]
  %v4111 = vld [vmem:[#allocation3 + $0x108] sm:$0xff]
  %v4112 = vld [vmem:[#allocation3 + $0x110] sm:$0xff]
  %v4113 = vld [vmem:[#allocation3 + $0x118] sm:$0xff]
  %v4114 = vld [vmem:[#allocation3 + $0x120] sm:$0xff]
  %v4115 = vld [vmem:[#allocation3 + $0x128] sm:$0xff]
  %v4116 = vld [vmem:[#allocation3 + $0x130] sm:$0xff]
  %v4117 = vld [vmem:[#allocation3 + $0x138] sm:$0xff]
  %v4118 = vld [vmem:[#allocation3 + $0x140] sm:$0xff]
  %v4119 = vld [vmem:[#allocation3 + $0x148] sm:$0xff]
  %v4120 = vld [vmem:[#allocation3 + $0x150] sm:$0xff]
  %v4121 = vld [vmem:[#allocation3 + $0x158] sm:$0xff]
  %v4122 = vld [vmem:[#allocation3 + $0x160] sm:$0xff]
  %v4123 = vld [vmem:[#allocation3 + $0x168] sm:$0xff]
  %v4124 = vld [vmem:[#allocation3 + $0x170] sm:$0xff]
  %v4125 = vld [vmem:[#allocation3 + $0x178] sm:$0xff]
  %v4126 = vld [vmem:[#allocation3 + $0x180] sm:$0xff]
  %v4127 = vld [vmem:[#allocation3 + $0x188] sm:$0xff]
  %v4128 = vld [vmem:[#allocation3 + $0x190] sm:$0xff]
  %v4129 = vld [vmem:[#allocation3 + $0x198] sm:$0xff]
  %v4130 = vld [vmem:[#allocation3 + $0x1a0] sm:$0xff]
  %v4131 = vld [vmem:[#allocation3 + $0x1a8] sm:$0xff]
  %v4132 = vld [vmem:[#allocation3 + $0x1b0] sm:$0xff]
  %v4133 = vld [vmem:[#allocation3 + $0x1b8] sm:$0xff]
  %v4134 = vld [vmem:[#allocation3 + $0x1c0] sm:$0xff]
  %v4135 = vld [vmem:[#allocation3 + $0x1c8] sm:$0xff]
  %v4136 = vld [vmem:[#allocation3 + $0x1d0] sm:$0xff]
  %v4137 = vld [vmem:[#allocation3 + $0x1d8] sm:$0xff]
  %v4138 = vld [vmem:[#allocation3 + $0x1e0] sm:$0xff]
  %v4139 = vld [vmem:[#allocation3 + $0x1e8] sm:$0xff]
  %v4140 = vld [vmem:[#allocation3 + $0x1f0] sm:$0xff]
  %v4141 = vld [vmem:[#allocation3 + $0x1f8] sm:$0xff]
  %v4142 = vld [vmem:[#allocation3 + $0x200] sm:$0xff]
  %v4143 = vld [vmem:[#allocation3 + $0x208] sm:$0xff]
  %v4144 = vld [vmem:[#allocation3 + $0x210] sm:$0xff]
  %v4145 = vld [vmem:[#allocation3 + $0x218] sm:$0xff]
  %v4146 = vld [vmem:[#allocation3 + $0x220] sm:$0xff]
  %v4147 = vld [vmem:[#allocation3 + $0x228] sm:$0xff]
  %v4148 = vld [vmem:[#allocation3 + $0x230] sm:$0xff]
  %v4149 = vld [vmem:[#allocation3 + $0x238] sm:$0xff]
  %v4150 = vld [vmem:[%s11] sm:$0xff]
  %4152 = vset.pattern.permute.xlu0 0
  %4153 = vperm.xlu0 %4152, %v4150
  %v4154 = vpop.permute.xlu0 %4153
  %vm4156 = vcmask 523264
  %v4158 = vsel %vm4156, %v4077, 0
  %4160 = vmatprep.subr.mxu0 %v4079
  %4161 = vmatpush1.msra.mxu0 %v4078
  %4162 = vmatprep.subr.mxu0 %v4088
  %4163 = vmatpush1.msra.mxu0 %v4087
  %4164 = vmatprep.subr.mxu0 %v4097
  %4165 = vmatpush1.msra.mxu0 %v4096
  %4166 = vmatprep.subr.mxu0 %v4106
  %4167 = vmatpush1.msra.mxu0 %v4105
  %4168 = vmatprep.subr.mxu0 %v4115
  %4169 = vmatpush1.msra.mxu0 %v4114
  %4170 = vmatprep.subr.mxu0 %v4124
  %4171 = vmatpush1.msra.mxu0 %v4123
  %4172 = vmatprep.subr.mxu0 %v4133
  %4173 = vmatpush1.msra.mxu0 %v4132
  %4174 = vmatprep.subr.mxu0 %v4142
  %4175 = vmatpush1.msra.mxu0 %v4141
  %4176 = vmatprep.subr.mxu0 0.0
  %4177 = vmatpush1.msra.mxu0 0.0
  %4178 = vmatprep.subr.mxu0 0.0
  %4179 = vmatpush1.msra.mxu0 0.0
  %4180 = vmatprep.subr.mxu0 0.0
  %4181 = vmatpush1.msra.mxu0 0.0
  %4182 = vmatprep.subr.mxu0 0.0
  %4183 = vmatpush1.msra.mxu0 0.0
  %4184 = vmatprep.subr.mxu0 0.0
  %4185 = vmatpush1.msra.mxu0 0.0
  %4186 = vmatprep.subr.mxu0 0.0
  %4187 = vmatpush1.msra.mxu0 0.0
  %4188 = vmatprep.subr.mxu0 0.0
  %4189 = vmatpush1.msra.mxu0 0.0
  %4190 = vmatprep.subr.mxu0 0.0
  %4191 = vmatpush1.msra.mxu0 0.0
  %4192 = vmatprep.subr.mxu0 0.0
  %4193 = vmatpush1.msra.mxu0 0.0
  %4194 = vmatprep.subr.mxu0 0.0
  %4195 = vmatpush1.msra.mxu0 0.0
  %4196 = vmatprep.subr.mxu0 0.0
  %4197 = vmatpush1.msra.mxu0 0.0
  %4198 = vmatprep.subr.mxu0 0.0
  %4199 = vmatpush1.msra.mxu0 0.0
  %4200 = vmatprep.subr.mxu0 0.0
  %4201 = vmatpush1.msra.mxu0 0.0
  %4202 = vmatprep.subr.mxu0 0.0
  %4203 = vmatpush1.msra.mxu0 0.0
  %4204 = vmatprep.subr.mxu0 0.0
  %4205 = vmatpush1.msra.mxu0 0.0
  %4206 = vmatprep.subr.mxu0 0.0
  %4207 = vmatpush1.msra.mxu0 0.0
  %4208 = vmatprep.subr.mxu0 0.0
  %4209 = vmatpush1.msra.mxu0 0.0
  %4210 = vmatprep.subr.mxu0 0.0
  %4211 = vmatpush1.msra.mxu0 0.0
  %4212 = vmatprep.subr.mxu0 0.0
  %4213 = vmatpush1.msra.mxu0 0.0
  %4214 = vmatprep.subr.mxu0 0.0
  %4215 = vmatpush1.msra.mxu0 0.0
  %4216 = vmatprep.subr.mxu0 0.0
  %4217 = vmatpush1.msra.mxu0 0.0
  %4218 = vmatprep.subr.mxu0 0.0
  %4219 = vmatpush1.msra.mxu0 0.0
  %4220 = vmatprep.subr.mxu0 0.0
  %4221 = vmatpush1.msra.mxu0 0.0
  %4222 = vmatprep.subr.mxu0 0.0
  %4223 = vmatpush1.msra.mxu0 0.0
  %4224 = vmatprep.mubr.f32.mxu0 0.0
  %4225 = vmatmul.mubr.f32.gmra.mrb[0].mxu0 %v4158
  %v4226 = vpop.f32.mrb[0].mxu0
  %v4227 = vadd.f32 %v4154, %v4226
  %v4228 = vpop.f32.mrb[0].mxu0
  %v4229 = vadd.f32 %v4154, %v4228
  %4230 = vdwg.mxu0
  %4231 = vmatprep.subr.mxu0 %v4081
  %4232 = vmatpush1.msra.mxu0 %v4080
  %4233 = vmatprep.subr.mxu0 %v4090
  %4234 = vmatpush1.msra.mxu0 %v4089
  %4235 = vmatprep.subr.mxu0 %v4099
  %4236 = vmatpush1.msra.mxu0 %v4098
  %4237 = vmatprep.subr.mxu0 %v4108
  %4238 = vmatpush1.msra.mxu0 %v4107
  %4239 = vmatprep.subr.mxu0 %v4117
  %4240 = vmatpush1.msra.mxu0 %v4116
  %4241 = vmatprep.subr.mxu0 %v4126
  %4242 = vmatpush1.msra.mxu0 %v4125
  %4243 = vmatprep.subr.mxu0 %v4135
  %4244 = vmatpush1.msra.mxu0 %v4134
  %4245 = vmatprep.subr.mxu0 %v4144
  %4246 = vmatpush1.msra.mxu0 %v4143
  %4247 = vmatprep.subr.mxu0 0.0
  %4248 = vmatpush1.msra.mxu0 0.0
  %4249 = vmatprep.subr.mxu0 0.0
  %4250 = vmatpush1.msra.mxu0 0.0
  %4251 = vmatprep.subr.mxu0 0.0
  %4252 = vmatpush1.msra.mxu0 0.0
  %4253 = vmatprep.subr.mxu0 0.0
  %4254 = vmatpush1.msra.mxu0 0.0
  %4255 = vmatprep.subr.mxu0 0.0
  %4256 = vmatpush1.msra.mxu0 0.0
  %4257 = vmatprep.subr.mxu0 0.0
  %4258 = vmatpush1.msra.mxu0 0.0
  %4259 = vmatprep.subr.mxu0 0.0
  %4260 = vmatpush1.msra.mxu0 0.0
  %4261 = vmatprep.subr.mxu0 0.0
  %4262 = vmatpush1.msra.mxu0 0.0
  %4263 = vmatprep.subr.mxu0 0.0
  %4264 = vmatpush1.msra.mxu0 0.0
  %4265 = vmatprep.subr.mxu0 0.0
  %4266 = vmatpush1.msra.mxu0 0.0
  %4267 = vmatprep.subr.mxu0 0.0
  %4268 = vmatpush1.msra.mxu0 0.0
  %4269 = vmatprep.subr.mxu0 0.0
  %4270 = vmatpush1.msra.mxu0 0.0
  %4271 = vmatprep.subr.mxu0 0.0
  %4272 = vmatpush1.msra.mxu0 0.0
  %4273 = vmatprep.subr.mxu0 0.0
  %4274 = vmatpush1.msra.mxu0 0.0
  %4275 = vmatprep.subr.mxu0 0.0
  %4276 = vmatpush1.msra.mxu0 0.0
  %4277 = vmatprep.subr.mxu0 0.0
  %4278 = vmatpush1.msra.mxu0 0.0
  %4279 = vmatprep.subr.mxu0 0.0
  %4280 = vmatpush1.msra.mxu0 0.0
  %4281 = vmatprep.subr.mxu0 0.0
  %4282 = vmatpush1.msra.mxu0 0.0
  %4283 = vmatprep.subr.mxu0 0.0
  %4284 = vmatpush1.msra.mxu0 0.0
  %4285 = vmatprep.subr.mxu0 0.0
  %4286 = vmatpush1.msra.mxu0 0.0
  %4287 = vmatprep.subr.mxu0 0.0
  %4288 = vmatpush1.msra.mxu0 0.0
  %4289 = vmatprep.subr.mxu0 0.0
  %4290 = vmatpush1.msra.mxu0 0.0
  %4291 = vmatprep.subr.mxu0 0.0
  %4292 = vmatpush1.msra.mxu0 0.0
  %4293 = vmatprep.subr.mxu0 0.0
  %4294 = vmatpush1.msra.mxu0 0.0
  %4295 = vmatprep.mubr.f32.mxu0 0.0
  %4296 = vmatmul.mubr.f32.gmra.mrb[0].mxu0 %v4158
  %v4297 = vpop.f32.mrb[0].mxu0
  %v4298 = vadd.f32 %v4154, %v4297
  %v4299 = vpop.f32.mrb[0].mxu0
  %v4300 = vadd.f32 %v4154, %v4299
  %4301 = vdwg.mxu0
  %4302 = vmatprep.subr.mxu0 %v4083
  %4303 = vmatpush1.msra.mxu0 %v4082
  %4304 = vmatprep.subr.mxu0 %v4092
  %4305 = vmatpush1.msra.mxu0 %v4091
  %4306 = vmatprep.subr.mxu0 %v4101
  %4307 = vmatpush1.msra.mxu0 %v4100
  %4308 = vmatprep.subr.mxu0 %v4110
  %4309 = vmatpush1.msra.mxu0 %v4109
  %4310 = vmatprep.subr.mxu0 %v4119
  %4311 = vmatpush1.msra.mxu0 %v4118
  %4312 = vmatprep.subr.mxu0 %v4128
  %4313 = vmatpush1.msra.mxu0 %v4127
  %4314 = vmatprep.subr.mxu0 %v4137
  %4315 = vmatpush1.msra.mxu0 %v4136
  %4316 = vmatprep.subr.mxu0 %v4146
  %4317 = vmatpush1.msra.mxu0 %v4145
  %4318 = vmatprep.subr.mxu0 0.0
  %4319 = vmatpush1.msra.mxu0 0.0
  %4320 = vmatprep.subr.mxu0 0.0
  %4321 = vmatpush1.msra.mxu0 0.0
  %4322 = vmatprep.subr.mxu0 0.0
  %4323 = vmatpush1.msra.mxu0 0.0
  %4324 = vmatprep.subr.mxu0 0.0
  %4325 = vmatpush1.msra.mxu0 0.0
  %4326 = vmatprep.subr.mxu0 0.0
  %4327 = vmatpush1.msra.mxu0 0.0
  %4328 = vmatprep.subr.mxu0 0.0
  %4329 = vmatpush1.msra.mxu0 0.0
  %4330 = vmatprep.subr.mxu0 0.0
  %4331 = vmatpush1.msra.mxu0 0.0
  %4332 = vmatprep.subr.mxu0 0.0
  %4333 = vmatpush1.msra.mxu0 0.0
  %4334 = vmatprep.subr.mxu0 0.0
  %4335 = vmatpush1.msra.mxu0 0.0
  %4336 = vmatprep.subr.mxu0 0.0
  %4337 = vmatpush1.msra.mxu0 0.0
  %4338 = vmatprep.subr.mxu0 0.0
  %4339 = vmatpush1.msra.mxu0 0.0
  %4340 = vmatprep.subr.mxu0 0.0
  %4341 = vmatpush1.msra.mxu0 0.0
  %4342 = vmatprep.subr.mxu0 0.0
  %4343 = vmatpush1.msra.mxu0 0.0
  %4344 = vmatprep.subr.mxu0 0.0
  %4345 = vmatpush1.msra.mxu0 0.0
  %4346 = vmatprep.subr.mxu0 0.0
  %4347 = vmatpush1.msra.mxu0 0.0
  %4348 = vmatprep.subr.mxu0 0.0
  %4349 = vmatpush1.msra.mxu0 0.0
  %4350 = vmatprep.subr.mxu0 0.0
  %4351 = vmatpush1.msra.mxu0 0.0
  %4352 = vmatprep.subr.mxu0 0.0
  %4353 = vmatpush1.msra.mxu0 0.0
  %4354 = vmatprep.subr.mxu0 0.0
  %4355 = vmatpush1.msra.mxu0 0.0
  %4356 = vmatprep.subr.mxu0 0.0
  %4357 = vmatpush1.msra.mxu0 0.0
  %4358 = vmatprep.subr.mxu0 0.0
  %4359 = vmatpush1.msra.mxu0 0.0
  %4360 = vmatprep.subr.mxu0 0.0
  %4361 = vmatpush1.msra.mxu0 0.0
  %4362 = vmatprep.subr.mxu0 0.0
  %4363 = vmatpush1.msra.mxu0 0.0
  %4364 = vmatprep.subr.mxu0 0.0
  %4365 = vmatpush1.msra.mxu0 0.0
  %4366 = vmatprep.mubr.f32.mxu0 0.0
  %4367 = vmatmul.mubr.f32.gmra.mrb[0].mxu0 %v4158
  %v4368 = vpop.f32.mrb[0].mxu0
  %v4369 = vadd.f32 %v4154, %v4368
  %v4370 = vpop.f32.mrb[0].mxu0
  %v4371 = vadd.f32 %v4154, %v4370
  %4372 = vdwg.mxu0
  %4373 = vmatprep.subr.mxu0 %v4085
  %4374 = vmatpush1.msra.mxu0 %v4084
  %4375 = vmatprep.subr.mxu0 %v4094
  %4376 = vmatpush1.msra.mxu0 %v4093
  %4377 = vmatprep.subr.mxu0 %v4103
  %4378 = vmatpush1.msra.mxu0 %v4102
  %4379 = vmatprep.subr.mxu0 %v4112
  %4380 = vmatpush1.msra.mxu0 %v4111
  %4381 = vmatprep.subr.mxu0 %v4121
  %4382 = vmatpush1.msra.mxu0 %v4120
  %4383 = vmatprep.subr.mxu0 %v4130
  %4384 = vmatpush1.msra.mxu0 %v4129
  %4385 = vmatprep.subr.mxu0 %v4139
  %4386 = vmatpush1.msra.mxu0 %v4138
  %4387 = vmatprep.subr.mxu0 %v4148
  %4388 = vmatpush1.msra.mxu0 %v4147
  %4389 = vmatprep.subr.mxu0 0.0
  %4390 = vmatpush1.msra.mxu0 0.0
  %4391 = vmatprep.subr.mxu0 0.0
  %4392 = vmatpush1.msra.mxu0 0.0
  %4393 = vmatprep.subr.mxu0 0.0
  %4394 = vmatpush1.msra.mxu0 0.0
  %4395 = vmatprep.subr.mxu0 0.0
  %4396 = vmatpush1.msra.mxu0 0.0
  %4397 = vmatprep.subr.mxu0 0.0
  %4398 = vmatpush1.msra.mxu0 0.0
  %4399 = vmatprep.subr.mxu0 0.0
  %4400 = vmatpush1.msra.mxu0 0.0
  %4401 = vmatprep.subr.mxu0 0.0
  %4402 = vmatpush1.msra.mxu0 0.0
  %4403 = vmatprep.subr.mxu0 0.0
  %4404 = vmatpush1.msra.mxu0 0.0
  %4405 = vmatprep.subr.mxu0 0.0
  %4406 = vmatpush1.msra.mxu0 0.0
  %4407 = vmatprep.subr.mxu0 0.0
  %4408 = vmatpush1.msra.mxu0 0.0
  %4409 = vmatprep.subr.mxu0 0.0
  %4410 = vmatpush1.msra.mxu0 0.0
  %4411 = vmatprep.subr.mxu0 0.0
  %4412 = vmatpush1.msra.mxu0 0.0
  %4413 = vmatprep.subr.mxu0 0.0
  %4414 = vmatpush1.msra.mxu0 0.0
  %4415 = vmatprep.subr.mxu0 0.0
  %4416 = vmatpush1.msra.mxu0 0.0
  %4417 = vmatprep.subr.mxu0 0.0
  %4418 = vmatpush1.msra.mxu0 0.0
  %4419 = vmatprep.subr.mxu0 0.0
  %4420 = vmatpush1.msra.mxu0 0.0
  %4421 = vmatprep.subr.mxu0 0.0
  %4422 = vmatpush1.msra.mxu0 0.0
  %4423 = vmatprep.subr.mxu0 0.0
  %4424 = vmatpush1.msra.mxu0 0.0
  %4425 = vmatprep.subr.mxu0 0.0
  %4426 = vmatpush1.msra.mxu0 0.0
  %4427 = vmatprep.subr.mxu0 0.0
  %4428 = vmatpush1.msra.mxu0 0.0
  %4429 = vmatprep.subr.mxu0 0.0
  %4430 = vmatpush1.msra.mxu0 0.0
  %4431 = vmatprep.subr.mxu0 0.0
  %4432 = vmatpush1.msra.mxu0 0.0
  %4433 = vmatprep.subr.mxu0 0.0
  %4434 = vmatpush1.msra.mxu0 0.0
  %4435 = vmatprep.subr.mxu0 0.0
  %4436 = vmatpush1.msra.mxu0 0.0
  %4437 = vmatprep.mubr.f32.mxu0 0.0
  %4438 = vmatmul.mubr.f32.gmra.mrb[0].mxu0 %v4158
  %v4439 = vpop.f32.mrb[0].mxu0
  %v4440 = vadd.f32 %v4154, %v4439
  %v4441 = vpop.f32.mrb[0].mxu0
  %v4442 = vadd.f32 %v4154, %v4441
  %4443 = vdwg.mxu0
  %4444 = vmatprep.subr.mxu0 0.0
  %4445 = vmatpush1.msra.mxu0 %v4086
  %4446 = vmatprep.subr.mxu0 0.0
  %4447 = vmatpush1.msra.mxu0 %v4095
  %4448 = vmatprep.subr.mxu0 0.0
  %4449 = vmatpush1.msra.mxu0 %v4104
  %4450 = vmatprep.subr.mxu0 0.0
  %4451 = vmatpush1.msra.mxu0 %v4113
  %4452 = vmatprep.subr.mxu0 0.0
  %4453 = vmatpush1.msra.mxu0 %v4122
  %4454 = vmatprep.subr.mxu0 0.0
  %4455 = vmatpush1.msra.mxu0 %v4131
  %4456 = vmatprep.subr.mxu0 0.0
  %4457 = vmatpush1.msra.mxu0 %v4140
  %4458 = vmatprep.subr.mxu0 0.0
  %4459 = vmatpush1.msra.mxu0 %v4149
  %4460 = vmatprep.subr.mxu0 0.0
  %4461 = vmatpush1.msra.mxu0 0.0
  %4462 = vmatprep.subr.mxu0 0.0
  %4463 = vmatpush1.msra.mxu0 0.0
  %4464 = vmatprep.subr.mxu0 0.0
  %4465 = vmatpush1.msra.mxu0 0.0
  %4466 = vmatprep.subr.mxu0 0.0
  %4467 = vmatpush1.msra.mxu0 0.0
  %4468 = vmatprep.subr.mxu0 0.0
  %4469 = vmatpush1.msra.mxu0 0.0
  %4470 = vmatprep.subr.mxu0 0.0
  %4471 = vmatpush1.msra.mxu0 0.0
  %4472 = vmatprep.subr.mxu0 0.0
  %4473 = vmatpush1.msra.mxu0 0.0
  %4474 = vmatprep.subr.mxu0 0.0
  %4475 = vmatpush1.msra.mxu0 0.0
  %4476 = vmatprep.subr.mxu0 0.0
  %4477 = vmatpush1.msra.mxu0 0.0
  %4478 = vmatprep.subr.mxu0 0.0
  %4479 = vmatpush1.msra.mxu0 0.0
  %4480 = vmatprep.subr.mxu0 0.0
  %4481 = vmatpush1.msra.mxu0 0.0
  %4482 = vmatprep.subr.mxu0 0.0
  %4483 = vmatpush1.msra.mxu0 0.0
  %4484 = vmatprep.subr.mxu0 0.0
  %4485 = vmatpush1.msra.mxu0 0.0
  %4486 = vmatprep.subr.mxu0 0.0
  %4487 = vmatpush1.msra.mxu0 0.0
  %4488 = vmatprep.subr.mxu0 0.0
  %4489 = vmatpush1.msra.mxu0 0.0
  %4490 = vmatprep.subr.mxu0 0.0
  %4491 = vmatpush1.msra.mxu0 0.0
  %4492 = vmatprep.subr.mxu0 0.0
  %4493 = vmatpush1.msra.mxu0 0.0
  %4494 = vmatprep.subr.mxu0 0.0
  %4495 = vmatpush1.msra.mxu0 0.0
  %4496 = vmatprep.subr.mxu0 0.0
  %4497 = vmatpush1.msra.mxu0 0.0
  %4498 = vmatprep.subr.mxu0 0.0
  %4499 = vmatpush1.msra.mxu0 0.0
  %4500 = vmatprep.subr.mxu0 0.0
  %4501 = vmatpush1.msra.mxu0 0.0
  %4502 = vmatprep.subr.mxu0 0.0
  %4503 = vmatpush1.msra.mxu0 0.0
  %4504 = vmatprep.subr.mxu0 0.0
  %4505 = vmatpush1.msra.mxu0 0.0
  %4506 = vmatprep.subr.mxu0 0.0
  %4507 = vmatpush1.msra.mxu0 0.0
  %4508 = vmatprep.mubr.f32.mxu0 0.0
  %4509 = vmatmul.mubr.f32.gmra.mrb[0].mxu0 %v4158
  %v4510 = vpop.f32.mrb[0].mxu0
  %v4511 = vadd.f32 %v4154, %v4510
  %v4512 = vpop.f32.mrb[0].mxu0
  %4513 = vdwg.mxu0
  %4514 = vst [vmem:[%s12] sm:$0xff] %v4227
  %4515 = vst [vmem:[%s12 + $0x8] sm:$0xff] %v4229
  %4516 = vst [vmem:[%s12 + $0x10] sm:$0xff] %v4298
  %4517 = vst [vmem:[%s12 + $0x18] sm:$0xff] %v4300
  %4518 = vst [vmem:[%s12 + $0x20] sm:$0xff] %v4369
  %4519 = vst [vmem:[%s12 + $0x28] sm:$0xff] %v4371
  %4520 = vst [vmem:[%s12 + $0x30] sm:$0xff] %v4440
  %4521 = vst [vmem:[%s12 + $0x38] sm:$0xff] %v4442
  %4522 = vst [vmem:[%s12 + $0x40] sm:$0xff] %v4511
  // Predicated region
  $region50: #{dsb_forward.1} parent=0 // pred_check
    _
  $region51: #{dsb_forward.1} parent=0 // pred_check_branch
    %4524 = sbr.rel (0) target = $region53
  $region52: #{dsb_forward.1} parent=0 // pred_region
    _
  $region53: #{dsb_forward.1} parent=0 // pred_fallthru
    _
  // Predicated region
  $region54: #{dsb_forward.1} parent=0 // pred_check
    _
  $region55: #{dsb_forward.1} parent=0 // pred_check_branch
    %4526 = sbr.rel (0) target = $region57
  $region56: #{dsb_forward.1} parent=0 // pred_region
    _
  $region57: #{dsb_forward.1} parent=0 // pred_fallthru
    _

</llo_original>
